<compile_context>
chip_gen: v7x
topology: tpu7x:2x2x1
jax: 0.10.0
libtpu: 0.0.40
codegen_flags: <defaults>
</compile_context>

<pallas_src>
import math

import jax
import jax.numpy as jnp
from jax.experimental import pallas as pl
from jax.experimental.pallas import tpu as pltpu

# ---------------- small-shape configuration ----------------
B = 2
IMG_H = IMG_W = 32
IMG_C = 3
BACKBONE_STRIDES = [4, 8]          # synthetic backbone strides
BACKBONE_CHANNELS = [8, 16]        # synthetic backbone channel counts
D_MODEL = 64                       # hidden_dim / d_model
N_HEAD = 4
N_LEVELS = 3                       # num_feature_levels (-> one extra 3x3/s2 level)
N_POINTS = 2                       # enc_n_points
D_FFN = 128                        # dim_feedforward
N_ENC_LAYERS = 2
GN_GROUPS = 32
LN_EPS = 1e-5
GN_EPS = 1e-5

N_OFF = N_HEAD * N_LEVELS * N_POINTS * 2     # 48 sampling-offset columns
N_ATT = N_HEAD * N_LEVELS * N_POINTS         # 24 attention-logit columns
VPAD = 128                                   # lane-dense width of the value slab
HPAD = 128                                   # lane-dense width of the (offset|attn) slab


def _full2d(shape):
    """Whole-array BlockSpec for a grid=(1,) call."""
    return pl.BlockSpec(shape, lambda i: (0, 0))


# =====================================================================
# Pallas kernels
# =====================================================================
def _msda_proj_kernel(s_ref, pos_ref, keep_ref, ref_ref, invn_ref, amask_ref,
                      hsum_ref, hbc_ref, wv_ref, bv_ref, wh_ref, bh_ref, o_ref):
    """Fused MSDeformAttn front end for the whole token slab (single grid step).

    Emits one lane-dense [M, 256] slab:
      cols   0:128  value projection (padded, zeroed at padded tokens via `keep`)
      cols 128:176  sampling locations  = ref + offsets / offset_normalizer
      cols 176:200  attention weights   = grouped softmax over the 6 (level,point) logits
      cols 200:256  zero padding
    """
    s = s_ref[...].astype(jnp.float32)
    q = s + pos_ref[...].astype(jnp.float32)

    # value projection: bf16 x bf16 -> f32 accumulate, padded to 128 lanes
    val = (jnp.dot(s.astype(jnp.bfloat16), wv_ref[...],
                   preferred_element_type=jnp.float32) + bv_ref[...]) * keep_ref[...]

    # merged (sampling-offset | attention-logit) head: one 128-wide matmul on q
    heads = jnp.dot(q.astype(jnp.bfloat16), wh_ref[...],
                    preferred_element_type=jnp.float32) + bh_ref[...]

    amask = amask_ref[...]                                     # [1,128], 1.0 on attn columns
    # sampling locations on the offset columns (ref/invn are zero elsewhere)
    samp = ref_ref[...] + heads * invn_ref[...]

    # grouped softmax over each head's 6 (level,point) logits.
    # Subtracting the per-row max over the attn columns is a per-group constant shift,
    # so per-group softmax is unchanged; masking *before* exp keeps non-attn columns at 0.
    neg = jnp.float32(-1e30)
    logits = jnp.where(amask > 0, heads, neg)
    m = jnp.max(logits, axis=-1, keepdims=True)
    e = jnp.exp(logits - m)                                    # exactly 0 in non-attn columns
    gsum = jnp.dot(e, hsum_ref[...], preferred_element_type=jnp.float32)    # [M, nH]
    den = jnp.dot(gsum, hbc_ref[...], preferred_element_type=jnp.float32)   # [M, 128]
    den = jnp.where(amask > 0, jnp.maximum(den, 1e-30), 1.0)
    attw = e * pl.reciprocal(den, approx=True)

    o_ref[:, :VPAD] = val.astype(o_ref.dtype)
    o_ref[:, VPAD:] = jnp.where(amask > 0, attw, samp).astype(o_ref.dtype)


def msda_projections_pallas(s2, pos2, keep, ref_full, inv_norm, amask, hsum, hbc, pk):
    """s2/pos2: [M, D]; keep: [M, 1]; ref_full/inv_norm/amask: lane-dense helper slabs.
    Returns a single [M, VPAD + HPAD] slab (value | sampling_locs | attn_weights | pad)."""
    M, D = s2.shape
    return pl.pallas_call(
        _msda_proj_kernel,
        out_shape=jax.ShapeDtypeStruct((M, VPAD + HPAD), jnp.float32),
        grid=(1,),
        in_specs=[
            _full2d((M, D)), _full2d((M, D)), _full2d((M, 1)),
            _full2d((M, HPAD)), _full2d((1, HPAD)), _full2d((1, HPAD)),
            _full2d((HPAD, N_HEAD)), _full2d((N_HEAD, HPAD)),
            _full2d((D, VPAD)), _full2d((1, VPAD)),
            _full2d((D, HPAD)), _full2d((1, HPAD)),
        ],
        out_specs=_full2d((M, VPAD + HPAD)),
    )(s2, pos2, keep, ref_full, inv_norm, amask, hsum, hbc,
      pk['w_value_p'], pk['b_value_p'], pk['w_heads'], pk['b_heads'])


def _attn_tail_kernel(a_ref, src_ref, wo_ref, bo_ref, g1_ref, be1_ref,
                      w1_ref, b1_ref, w2_ref, b2_ref, g2_ref, be2_ref, o_ref):
    """output_proj -> residual -> LN1 -> FFN(relu) -> residual -> LN2, fused (single step).
    Matmuls in bf16 with f32 accumulation; LN/residual math in f32.  Dropout = identity (eval)."""
    src = src_ref[...].astype(jnp.float32)
    y = src + jnp.dot(a_ref[...].astype(jnp.bfloat16), wo_ref[...],
                      preferred_element_type=jnp.float32) + bo_ref[...]
    mu = jnp.mean(y, axis=-1, keepdims=True)
    var = jnp.mean((y - mu) * (y - mu), axis=-1, keepdims=True)
    x = (y - mu) * jax.lax.rsqrt(var + LN_EPS) * g1_ref[...] + be1_ref[...]
    h = jnp.maximum(jnp.dot(x.astype(jnp.bfloat16), w1_ref[...],
                            preferred_element_type=jnp.float32) + b1_ref[...], 0.0)
    z = x + jnp.dot(h.astype(jnp.bfloat16), w2_ref[...],
                    preferred_element_type=jnp.float32) + b2_ref[...]
    mu2 = jnp.mean(z, axis=-1, keepdims=True)
    var2 = jnp.mean((z - mu2) * (z - mu2), axis=-1, keepdims=True)
    o_ref[...] = ((z - mu2) * jax.lax.rsqrt(var2 + LN_EPS) * g2_ref[...] + be2_ref[...]).astype(o_ref.dtype)


def attn_tail_pallas(sampled2, src2, p):
    """sampled2/src2: [M, D].  Whole post-sampling per-layer tail in one launch."""
    M, D = src2.shape
    F = p['lin1_w'].shape[1]
    pa = p['attn']
    return pl.pallas_call(
        _attn_tail_kernel,
        out_shape=jax.ShapeDtypeStruct((M, D), src2.dtype),
        grid=(1,),
        in_specs=[
            _full2d((M, D)), _full2d((M, D)),
            _full2d((D, D)), _full2d((1, D)),
            _full2d((1, D)), _full2d((1, D)),
            _full2d((D, F)), _full2d((1, F)),
            _full2d((F, D)), _full2d((1, D)),
            _full2d((1, D)), _full2d((1, D)),
        ],
        out_specs=_full2d((M, D)),
    )(sampled2, src2,
      pa['w_out'], pa['b_out'].reshape(1, D),
      p['norm1_g'].reshape(1, D), p['norm1_b'].reshape(1, D),
      p['lin1_w'], p['lin1_b'].reshape(1, F),
      p['lin2_w'], p['lin2_b'].reshape(1, D),
      p['norm2_g'].reshape(1, D), p['norm2_b'].reshape(1, D))


def _proj_gn_kernel(x_ref, w_ref, b_ref, g_ref, be_ref, gavg_ref, o_ref):
    """(1x1 / im2col'd 3x3 conv as matmul) + GroupNorm for one batch element.
    Centered two-pass variance; group-sum + broadcast-back done with ONE precomputed
    [Cout, Cout] block-diagonal averaging matrix (2 matvecs total instead of 4)."""
    y = jnp.dot(x_ref[...].astype(jnp.bfloat16), w_ref[...],
                preferred_element_type=jnp.float32) + b_ref[...]
    mean_c = jnp.dot(jnp.mean(y, axis=0, keepdims=True), gavg_ref[...],
                     preferred_element_type=jnp.float32)        # per-channel group mean [1, Cout]
    d = y - mean_c
    var_c = jnp.dot(jnp.mean(d * d, axis=0, keepdims=True), gavg_ref[...],
                    preferred_element_type=jnp.float32)         # centered two-pass group variance
    o_ref[...] = (d * jax.lax.rsqrt(var_c + GN_EPS) * g_ref[...] + be_ref[...]).astype(o_ref.dtype)


def proj_groupnorm_pallas(x_tok, w_bf16, b, gamma, beta, n_groups=GN_GROUPS):
    """Fused (conv as matmul) + GroupNorm; grid over batch (keeps v7x's 2nd TC busy,
    near-zero cost on single-TC v5e/v6e).  x_tok: [B, HW, Cin], w_bf16: [Cin, Cout] bf16."""
    Bb, HW, Cin = x_tok.shape
    Cout = w_bf16.shape[1]
    cpg = Cout // n_groups
    gavg = ((jnp.arange(Cout)[:, None] // cpg) ==
            (jnp.arange(Cout)[None, :] // cpg)).astype(jnp.float32) / float(cpg)   # [Cout, Cout]
    return pl.pallas_call(
        _proj_gn_kernel,
        out_shape=jax.ShapeDtypeStruct((Bb, HW, Cout), jnp.float32),
        grid=(Bb,),
        in_specs=[
            pl.BlockSpec((None, HW, Cin), lambda bi: (bi, 0, 0)),
            pl.BlockSpec((Cin, Cout), lambda bi: (0, 0)),
            pl.BlockSpec((1, Cout), lambda bi: (0, 0)),
            pl.BlockSpec((1, Cout), lambda bi: (0, 0)),
            pl.BlockSpec((1, Cout), lambda bi: (0, 0)),
            pl.BlockSpec((Cout, Cout), lambda bi: (0, 0)),
        ],
        out_specs=pl.BlockSpec((None, HW, Cout), lambda bi: (bi, 0, 0)),
        compiler_params=pltpu.CompilerParams(dimension_semantics=("parallel",)),
    )(x_tok, w_bf16, b.reshape(1, Cout), gamma.reshape(1, Cout), beta.reshape(1, Cout), gavg)


# =====================================================================
# JAX glue: synthetic backbone, positional embeddings, deformable attention sampling
# =====================================================================
def nearest_downsample_mask(mask, h, w):
    _, H, W = mask.shape
    ry = (jnp.arange(h) * H // h).astype(jnp.int32)
    rx = (jnp.arange(w) * W // w).astype(jnp.int32)
    return mask[:, ry][:, :, rx]


def pos_sine(mask, num_pos_feats, temperature=10000.0):
    """PositionEmbeddingSine (normalize=True). Returns NHWC [B, H, W, 2*num_pos_feats]."""
    Bb, H, W = mask.shape
    not_mask = (~mask).astype(jnp.float32)
    y_embed = jnp.cumsum(not_mask, axis=1)
    x_embed = jnp.cumsum(not_mask, axis=2)
    eps = 1e-6
    scale = 2.0 * math.pi
    y_embed = y_embed / (y_embed[:, -1:, :] + eps) * scale
    x_embed = x_embed / (x_embed[:, :, -1:] + eps) * scale
    dim_t = jnp.arange(num_pos_feats, dtype=jnp.float32)
    dim_t = temperature ** (2.0 * jnp.floor(dim_t / 2.0) / num_pos_feats)
    pos_x = x_embed[:, :, :, None] / dim_t
    pos_y = y_embed[:, :, :, None] / dim_t
    pos_x = jnp.stack([jnp.sin(pos_x[:, :, :, 0::2]), jnp.cos(pos_x[:, :, :, 1::2])], axis=4).reshape(Bb, H, W, -1)
    pos_y = jnp.stack([jnp.sin(pos_y[:, :, :, 0::2]), jnp.cos(pos_y[:, :, :, 1::2])], axis=4).reshape(Bb, H, W, -1)
    return jnp.concatenate([pos_y, pos_x], axis=3)


def synthetic_backbone(images_nchw, mask, params):
    """Tiny deterministic stand-in for the (external) backbone: avg-pool + channel mix.
    Returns NHWC features, per-level masks, per-level sine pos embeddings."""
    x = jnp.transpose(images_nchw, (0, 2, 3, 1))       # NCHW -> NHWC
    Bb, H, W, C = x.shape
    feats, masks, poses = [], [], []
    for lvl, stride in enumerate(BACKBONE_STRIDES):
        h, w = H // stride, W // stride
        pooled = x.reshape(Bb, h, stride, w, stride, C).mean(axis=(2, 4))
        feat = jnp.einsum('bhwc,cd->bhwd', pooled, params['stem_w'][lvl]) + params['stem_b'][lvl]
        m = nearest_downsample_mask(mask, h, w)
        pos = pos_sine(m, D_MODEL // 2)
        feats.append(feat)
        masks.append(m)
        poses.append(pos)
    return feats, masks, poses


def im2col_3x3_s2(x_nhwc):
    """im2col for a 3x3 / stride-2 / pad-1 conv (extra feature levels)."""
    Bb, H, W, C = x_nhwc.shape
    Ho = (H + 2 - 3) // 2 + 1
    Wo = (W + 2 - 3) // 2 + 1
    xp = jnp.pad(x_nhwc, ((0, 0), (1, 1), (1, 1), (0, 0)))
    cols = []
    for ky in range(3):
        for kx in range(3):
            cols.append(xp[:, ky:ky + 2 * Ho:2, kx:kx + 2 * Wo:2, :])
    return jnp.concatenate(cols, axis=-1), Ho, Wo       # [B, Ho, Wo, 9*C], (ky, kx, c) order


def get_valid_ratio(mask):
    _, H, W = mask.shape
    valid_H = jnp.sum(~mask[:, :, 0], axis=1).astype(jnp.float32)
    valid_W = jnp.sum(~mask[:, 0, :], axis=1).astype(jnp.float32)
    return jnp.stack([valid_W / W, valid_H / H], axis=-1)


def get_reference_points(spatial_shapes_list, valid_ratios):
    ref_list = []
    for lvl, (H, W) in enumerate(spatial_shapes_list):
        ref_y, ref_x = jnp.meshgrid(jnp.linspace(0.5, H - 0.5, H),
                                    jnp.linspace(0.5, W - 0.5, W), indexing='ij')
        ref_y = ref_y.reshape(-1)[None] / (valid_ratios[:, None, lvl, 1] * H)
        ref_x = ref_x.reshape(-1)[None] / (valid_ratios[:, None, lvl, 0] * W)
        ref_list.append(jnp.stack([ref_x, ref_y], axis=-1))
    reference_points = jnp.concatenate(ref_list, axis=1)                   # [B, L, 2]
    return reference_points[:, :, None] * valid_ratios[:, None]            # [B, L, nlvl, 2]


def ms_deform_attn_core(value, spatial_shapes_list, sampling_locations, attention_weights):
    """Bilinear multi-scale sampling (grid_sample, align_corners=False, zero padding)."""
    # TODO(synk): the bilinear grid-sample gather has no clean Pallas TPU equivalent; uses XLA gather.
    # The attw-weighted (levels,points) reduction deliberately stays here so XLA fuses it with the gather.
    Bb, S, nH, Dh = value.shape
    _, Lq, _, nL, nP, _ = sampling_locations.shape
    sampled = []
    start = 0
    for lvl, (H, W) in enumerate(spatial_shapes_list):
        v = value[:, start:start + H * W]                                   # [B, HW, nH, Dh]
        start += H * W
        v = jnp.transpose(v, (0, 2, 1, 3)).reshape(Bb * nH, H * W, Dh)
        grid = jnp.transpose(sampling_locations[:, :, :, lvl], (0, 2, 1, 3, 4)).reshape(Bb * nH, Lq, nP, 2)
        gx = grid[..., 0] * W - 0.5                                         # ((2g-1)+1)*W/2 - 0.5
        gy = grid[..., 1] * H - 0.5
        x0 = jnp.floor(gx)
        y0 = jnp.floor(gy)
        x1 = x0 + 1.0
        y1 = y0 + 1.0
        wx1 = gx - x0
        wx0 = 1.0 - wx1
        wy1 = gy - y0
        wy0 = 1.0 - wy1

        def corner(ix, iy, v=v, H=H, W=W):
            valid = ((ix >= 0) & (ix <= W - 1) & (iy >= 0) & (iy <= H - 1)).astype(value.dtype)
            ixc = jnp.clip(ix, 0, W - 1).astype(jnp.int32)
            iyc = jnp.clip(iy, 0, H - 1).astype(jnp.int32)
            flat_idx = (iyc * W + ixc).reshape(Bb * nH, Lq * nP, 1)
            g = jnp.take_along_axis(v, flat_idx, axis=1).reshape(Bb * nH, Lq, nP, Dh)
            return g * valid[..., None]

        samp = (corner(x0, y0) * (wx0 * wy0)[..., None]
                + corner(x1, y0) * (wx1 * wy0)[..., None]
                + corner(x0, y1) * (wx0 * wy1)[..., None]
                + corner(x1, y1) * (wx1 * wy1)[..., None])                   # [B*nH, Lq, nP, Dh]
        sampled.append(samp)
    sampled = jnp.stack(sampled, axis=2)                                     # [B*nH, Lq, nL, nP, Dh]
    attw = jnp.transpose(attention_weights, (0, 2, 1, 3, 4)).reshape(Bb * nH, Lq, nL, nP)
    out = jnp.sum(sampled * attw[..., None], axis=(2, 3))                    # [B*nH, Lq, Dh]
    return out.reshape(Bb, nH, Lq, Dh).transpose(0, 2, 1, 3).reshape(Bb, Lq, nH * Dh)


def ms_deform_attn(src, pos, ref_full, inv_norm, amask, hsum, hbc,
                   spatial_shapes_list, padding_mask, pk):
    """MSDeformAttn minus the output projection (fused into the per-layer tail kernel)."""
    Bb, Lq, D = src.shape
    nH, nL, nP = N_HEAD, N_LEVELS, N_POINTS
    Dh = D // nH
    M = Bb * Lq
    s2 = src.reshape(M, D)
    p2 = pos.reshape(M, D)
    keep = (~padding_mask).astype(jnp.float32).reshape(M, 1)
    combo = msda_projections_pallas(s2, p2, keep, ref_full, inv_norm, amask, hsum, hbc, pk)
    value = combo[:, :D].reshape(Bb, Lq, nH, Dh)
    sampling_locations = combo[:, VPAD:VPAD + N_OFF].reshape(Bb, Lq, nH, nL, nP, 2)
    attn = combo[:, VPAD + N_OFF:VPAD + N_OFF + N_ATT].reshape(Bb, Lq, nH, nL, nP)
    return ms_deform_attn_core(value, spatial_shapes_list, sampling_locations, attn)   # [B, Lq, D]


def encoder_layer(src, pos, ref_full, inv_norm, amask, hsum, hbc,
                  spatial_shapes_list, padding_mask, p):
    Bb, L, D = src.shape
    M = Bb * L
    sampled = ms_deform_attn(src, pos, ref_full, inv_norm, amask, hsum, hbc,
                             spatial_shapes_list, padding_mask, p['attn'])
    out = attn_tail_pallas(sampled.reshape(M, D), src.reshape(M, D), p)
    return out.reshape(Bb, L, D)


# =====================================================================
# Full forward (mirrors SpatialEncoderTransformer.forward)
# =====================================================================
def spatial_encoder_transformer_forward(images, img_mask, params):
    feats, masks, pos = synthetic_backbone(images, img_mask, params)

    srcs = []
    for l, feat in enumerate(feats):                        # 1x1 conv + GroupNorm per backbone level
        Bb, h, w, c = feat.shape
        pp = params['proj'][l]
        src = proj_groupnorm_pallas(feat.reshape(Bb, h * w, c), pp['w'], pp['b'],
                                    pp['gn_g'], pp['gn_b']).reshape(Bb, h, w, D_MODEL)
        srcs.append(src)

    if N_LEVELS > len(srcs):                                # extra levels: 3x3/s2 conv + GroupNorm
        _len_srcs = len(srcs)
        for l in range(_len_srcs, N_LEVELS):
            src_in = feats[-1] if l == _len_srcs else srcs[-1]
            patches, Ho, Wo = im2col_3x3_s2(src_in)
            pp = params['proj'][l]
            Bb = patches.shape[0]
            src = proj_groupnorm_pallas(patches.reshape(Bb, Ho * Wo, -1), pp['w'], pp['b'],
                                        pp['gn_g'], pp['gn_b']).reshape(Bb, Ho, Wo, D_MODEL)
            m = nearest_downsample_mask(img_mask, Ho, Wo)
            pos_l = pos_sine(m, D_MODEL // 2)
            srcs.append(src)
            masks.append(m)
            pos.append(pos_l)

    src_flat, mask_flat, lvl_pos_flat, spatial_shapes_list = [], [], [], []
    for lvl, (src, m, p_emb) in enumerate(zip(srcs, masks, pos)):
        Bb, h, w, c = src.shape
        spatial_shapes_list.append((h, w))
        src_flat.append(src.reshape(Bb, h * w, c))
        mask_flat.append(m.reshape(Bb, h * w))
        lvl_pos_flat.append(p_emb.reshape(Bb, h * w, D_MODEL) + params['level_embed'][lvl][None, None, :])
    src_flat = jnp.concatenate(src_flat, axis=1)
    mask_flat = jnp.concatenate(mask_flat, axis=1)
    lvl_pos_flat = jnp.concatenate(lvl_pos_flat, axis=1)
    spatial_shapes = jnp.array(spatial_shapes_list, dtype=jnp.int32)
    valid_ratios = jnp.stack([get_valid_ratio(m) for m in masks], axis=1)   # [B, nlvl, 2]

    reference_points = get_reference_points(spatial_shapes_list, valid_ratios)   # [B, L, nlvl, 2]

    # ---- lane-dense helper slabs for the fused MSDA kernel (shared across layers) ----
    Bb, L_tot, _ = src_flat.shape
    M = Bb * L_tot
    ref48 = jnp.broadcast_to(reference_points[:, :, None, :, None, :],
                             (Bb, L_tot, N_HEAD, N_LEVELS, N_POINTS, 2)).reshape(M, N_OFF)
    ref_full = jnp.concatenate([ref48, jnp.zeros((M, HPAD - N_OFF), jnp.float32)], axis=1)
    norm_wh = jnp.array([[w, h] for (h, w) in spatial_shapes_list], jnp.float32)     # [nL, 2] = (W, H)
    inv48 = jnp.broadcast_to((1.0 / norm_wh)[None, :, None, :],
                             (N_HEAD, N_LEVELS, N_POINTS, 2)).reshape(1, N_OFF)
    inv_norm = jnp.concatenate([inv48, jnp.zeros((1, HPAD - N_OFF), jnp.float32)], axis=1)
    col = jnp.arange(HPAD)
    is_att = (col >= N_OFF) & (col < N_OFF + N_ATT)
    amask = is_att.astype(jnp.float32)[None, :]                                       # [1, 128]
    head_of_col = jnp.where(is_att, (col - N_OFF) // (N_LEVELS * N_POINTS), N_HEAD)
    hsum = (head_of_col[:, None] == jnp.arange(N_HEAD)[None, :]).astype(jnp.float32)  # [128, nH]
    hbc = hsum.T                                                                      # [nH, 128]

    memory = src_flat
    for p_layer in params['layers']:
        memory = encoder_layer(memory, lvl_pos_flat, ref_full, inv_norm, amask, hsum, hbc,
                               spatial_shapes_list, mask_flat, p_layer)

    e_h, e_w = spatial_shapes_list[-1]
    single_feature_memory = memory[:, -e_h * e_w:]
    single_feature_mask = mask_flat[:, -e_h * e_w:]
    return single_feature_memory, single_feature_mask, spatial_shapes[-1:], valid_ratios[:, -1]


# =====================================================================
# Deterministic parameter init (xavier / zeros / MSDeformAttn reset scheme)
# Matmul weights are packed lane-dense and stored bf16 (accumulation stays f32 in-kernel).
# =====================================================================
def xavier_uniform(key, shape, fan_in, fan_out):
    limit = math.sqrt(6.0 / (fan_in + fan_out))
    return jax.random.uniform(key, shape, jnp.float32, -limit, limit)


def init_params(key):
    keys = iter(jax.random.split(key, 64))
    params = {}
    params['stem_w'] = [xavier_uniform(next(keys), (IMG_C, c), IMG_C, c) for c in BACKBONE_CHANNELS]
    params['stem_b'] = [jnp.zeros((c,), jnp.float32) for c in BACKBONE_CHANNELS]

    proj = []
    for l in range(len(BACKBONE_CHANNELS)):                 # 1x1 conv projections
        cin = BACKBONE_CHANNELS[l]
        proj.append(dict(w=xavier_uniform(next(keys), (cin, D_MODEL), cin, D_MODEL).astype(jnp.bfloat16),
                         b=jnp.zeros((D_MODEL,), jnp.float32),
                         gn_g=jnp.ones((D_MODEL,), jnp.float32),
                         gn_b=jnp.zeros((D_MODEL,), jnp.float32)))
    cin = BACKBONE_CHANNELS[-1]
    for l in range(len(BACKBONE_CHANNELS), N_LEVELS):       # extra 3x3 / stride-2 projections
        w3 = xavier_uniform(next(keys), (3, 3, cin, D_MODEL), cin * 9, D_MODEL).reshape(9 * cin, D_MODEL)
        proj.append(dict(w=w3.astype(jnp.bfloat16), b=jnp.zeros((D_MODEL,), jnp.float32),
                         gn_g=jnp.ones((D_MODEL,), jnp.float32),
                         gn_b=jnp.zeros((D_MODEL,), jnp.float32)))
        cin = D_MODEL
    params['proj'] = proj

    params['level_embed'] = jax.random.normal(next(keys), (N_LEVELS, D_MODEL), jnp.float32)

    # MSDeformAttn._reset_parameters: offsets weight=0, bias=grid_init; attn weights/bias=0
    thetas = jnp.arange(N_HEAD, dtype=jnp.float32) * (2.0 * math.pi / N_HEAD)
    grid_init = jnp.stack([jnp.cos(thetas), jnp.sin(thetas)], axis=-1)
    grid_init = grid_init / jnp.max(jnp.abs(grid_init), axis=-1, keepdims=True)
    grid_init = jnp.tile(grid_init[:, None, None, :], (1, N_LEVELS, N_POINTS, 1))
    grid_init = grid_init * (jnp.arange(N_POINTS, dtype=jnp.float32) + 1.0)[None, None, :, None]
    b_off = grid_init.reshape(-1)                                    # [N_OFF]

    layers = []
    for _ in range(N_ENC_LAYERS):
        w_value = xavier_uniform(next(keys), (D_MODEL, D_MODEL), D_MODEL, D_MODEL)
        b_value = jnp.zeros((D_MODEL,), jnp.float32)
        w_off = jnp.zeros((D_MODEL, N_OFF), jnp.float32)
        w_att = jnp.zeros((D_MODEL, N_ATT), jnp.float32)
        b_att = jnp.zeros((N_ATT,), jnp.float32)
        w_out = xavier_uniform(next(keys), (D_MODEL, D_MODEL), D_MODEL, D_MODEL)

        # lane-dense packed kernel weights (value padded to 128; offset|attn merged into 128)
        w_value_p = jnp.zeros((D_MODEL, VPAD), jnp.float32).at[:, :D_MODEL].set(w_value).astype(jnp.bfloat16)
        b_value_p = jnp.zeros((1, VPAD), jnp.float32).at[0, :D_MODEL].set(b_value)
        w_heads = jnp.zeros((D_MODEL, HPAD), jnp.float32)
        w_heads = w_heads.at[:, :N_OFF].set(w_off).at[:, N_OFF:N_OFF + N_ATT].set(w_att).astype(jnp.bfloat16)
        b_heads = jnp.zeros((1, HPAD), jnp.float32)
        b_heads = b_heads.at[0, :N_OFF].set(b_off).at[0, N_OFF:N_OFF + N_ATT].set(b_att)

        attn = dict(w_value_p=w_value_p, b_value_p=b_value_p,
                    w_heads=w_heads, b_heads=b_heads,
                    w_out=w_out.astype(jnp.bfloat16), b_out=jnp.zeros((D_MODEL,), jnp.float32))
        layers.append(dict(
            attn=attn,
            norm1_g=jnp.ones((D_MODEL,), jnp.float32), norm1_b=jnp.zeros((D_MODEL,), jnp.float32),
            lin1_w=xavier_uniform(next(keys), (D_MODEL, D_FFN), D_MODEL, D_FFN).astype(jnp.bfloat16),
            lin1_b=jnp.zeros((D_FFN,), jnp.float32),
            lin2_w=xavier_uniform(next(keys), (D_FFN, D_MODEL), D_FFN, D_MODEL).astype(jnp.bfloat16),
            lin2_b=jnp.zeros((D_MODEL,), jnp.float32),
            norm2_g=jnp.ones((D_MODEL,), jnp.float32), norm2_b=jnp.zeros((D_MODEL,), jnp.float32)))
    params['layers'] = layers
    return params


if __name__ == "__main__":
    key = jax.random.PRNGKey(0)
    k_img, k_param = jax.random.split(key)
    images = jax.random.normal(k_img, (B, IMG_C, IMG_H, IMG_W), jnp.float32)   # NCHW like PyTorch
    mask = jnp.zeros((B, IMG_H, IMG_W), dtype=bool)                            # True = padded
    mask = mask.at[1, 24:, :].set(True)
    mask = mask.at[1, :, 28:].set(True)
    params = init_params(k_param)

    fwd = jax.jit(spatial_encoder_transformer_forward)
    mem, m_out, ss, vr = fwd(images, mask, params)
    jax.block_until_ready((mem, m_out, ss, vr))

    assert mem.shape == (B, 4, D_MODEL)     # last level is 2x2 -> 4 tokens
    assert m_out.shape == (B, 4)
    assert ss.shape == (1, 2)
    assert vr.shape == (B, 2)
    assert bool(jnp.all(jnp.isfinite(mem)))
    print("KERNEL_OK")
</pallas_src>

<mosaic_0001>
module attributes {stable_mosaic.version = 11 : i64} {
  func.func @_proj_gn_kernel(%arg0: i32, %arg1: memref<1x4x144xf32, #tpu.memory_space<vmem>>, %arg2: memref<144x64xbf16, #tpu.memory_space<vmem>>, %arg3: memref<1x64xf32, #tpu.memory_space<vmem>>, %arg4: memref<1x64xf32, #tpu.memory_space<vmem>>, %arg5: memref<1x64xf32, #tpu.memory_space<vmem>>, %arg6: memref<64x64xf32, #tpu.memory_space<vmem>>, %arg7: memref<1x4x64xf32, #tpu.memory_space<vmem>>) attributes {dimension_semantics = [#tpu.dimension_semantics<parallel>], iteration_bounds = array<i64: 2>, scalar_prefetch = 0 : i64, scratch_operands = 0 : i64, tpu.core_type = #tpu.core_type<tc>, window_params = [{transform_indices = @transform_0, window_bounds = array<i64: 1, 4, 144>}, {pipeline_mode = #tpu.pipeline_mode<synchronous>, transform_indices = @transform_1, window_bounds = array<i64: 144, 64>}, {pipeline_mode = #tpu.pipeline_mode<synchronous>, transform_indices = @transform_2, window_bounds = array<i64: 1, 64>}, {pipeline_mode = #tpu.pipeline_mode<synchronous>, transform_indices = @transform_3, window_bounds = array<i64: 1, 64>}, {pipeline_mode = #tpu.pipeline_mode<synchronous>, transform_indices = @transform_4, window_bounds = array<i64: 1, 64>}, {pipeline_mode = #tpu.pipeline_mode<synchronous>, transform_indices = @transform_5, window_bounds = array<i64: 64, 64>}, {transform_indices = @transform_6, window_bounds = array<i64: 1, 4, 64>}]} {
    %c0 = arith.constant 0 : index
    %c0_0 = arith.constant 0 : index
    %c0_1 = arith.constant 0 : index
    %0 = vector.load %arg1[%c0, %c0_0, %c0_1] : memref<1x4x144xf32, #tpu.memory_space<vmem>>, vector<1x4x144xf32>
    %1 = vector.shape_cast %0 : vector<1x4x144xf32> to vector<4x144xf32>
    %2 = arith.truncf %1 : vector<4x144xf32> to vector<4x144xbf16>
    %c0_2 = arith.constant 0 : index
    %c0_3 = arith.constant 0 : index
    %3 = vector.load %arg2[%c0_2, %c0_3] : memref<144x64xbf16, #tpu.memory_space<vmem>>, vector<144x64xbf16>
    %cst = arith.constant dense<0.000000e+00> : vector<4x64xf32>
    %4 = tpu.matmul %2, %3, %cst {dimension_numbers = #tpu.dot_dimension_numbers<[1], [0], [0], [1], [0, 0, 1, 1], [], []>} : vector<4x144xbf16>, vector<144x64xbf16>, vector<4x64xf32> -> vector<4x64xf32>
    %c0_4 = arith.constant 0 : index
    %c0_5 = arith.constant 0 : index
    %5 = vector.load %arg3[%c0_4, %c0_5] : memref<1x64xf32, #tpu.memory_space<vmem>>, vector<1x64xf32>
    %6 = vector.broadcast %5 : vector<1x64xf32> to vector<4x64xf32>
    %7 = arith.addf %4, %6 : vector<4x64xf32>
    %cst_6 = arith.constant dense<0.000000e+00> : vector<64xf32>
    %8 = vector.multi_reduction <add>, %7, %cst_6 [0] : vector<4x64xf32> to vector<64xf32>
    %9 = vector.shape_cast %8 : vector<64xf32> to vector<1x64xf32>
    %cst_7 = arith.constant 4.000000e+00 : f32
    %10 = vector.broadcast %cst_7 : f32 to vector<1x64xf32>
    %11 = arith.divf %9, %10 : vector<1x64xf32>
    %c0_8 = arith.constant 0 : index
    %c0_9 = arith.constant 0 : index
    %12 = vector.load %arg6[%c0_8, %c0_9] : memref<64x64xf32, #tpu.memory_space<vmem>>, vector<64x64xf32>
    %cst_10 = arith.constant dense<0.000000e+00> : vector<1x64xf32>
    %13 = tpu.matmul %11, %12, %cst_10 {dimension_numbers = #tpu.dot_dimension_numbers<[1], [0], [0], [1], [0, 0, 1, 1], [], []>} : vector<1x64xf32>, vector<64x64xf32>, vector<1x64xf32> -> vector<1x64xf32>
    %14 = vector.broadcast %13 : vector<1x64xf32> to vector<4x64xf32>
    %15 = arith.subf %7, %14 : vector<4x64xf32>
    %16 = arith.mulf %15, %15 : vector<4x64xf32>
    %cst_11 = arith.constant dense<0.000000e+00> : vector<64xf32>
    %17 = vector.multi_reduction <add>, %16, %cst_11 [0] : vector<4x64xf32> to vector<64xf32>
    %18 = vector.shape_cast %17 : vector<64xf32> to vector<1x64xf32>
    %cst_12 = arith.constant 4.000000e+00 : f32
    %19 = vector.broadcast %cst_12 : f32 to vector<1x64xf32>
    %20 = arith.divf %18, %19 : vector<1x64xf32>
    %c0_13 = arith.constant 0 : index
    %c0_14 = arith.constant 0 : index
    %21 = vector.load %arg6[%c0_13, %c0_14] : memref<64x64xf32, #tpu.memory_space<vmem>>, vector<64x64xf32>
    %cst_15 = arith.constant dense<0.000000e+00> : vector<1x64xf32>
    %22 = tpu.matmul %20, %21, %cst_15 {dimension_numbers = #tpu.dot_dimension_numbers<[1], [0], [0], [1], [0, 0, 1, 1], [], []>} : vector<1x64xf32>, vector<64x64xf32>, vector<1x64xf32> -> vector<1x64xf32>
    %cst_16 = arith.constant 9.99999974E-6 : f32
    %23 = vector.broadcast %cst_16 : f32 to vector<1x64xf32>
    %24 = arith.addf %22, %23 : vector<1x64xf32>
    %25 = math.rsqrt %24 : vector<1x64xf32>
    %26 = vector.broadcast %25 : vector<1x64xf32> to vector<4x64xf32>
    %27 = arith.mulf %15, %26 : vector<4x64xf32>
    %c0_17 = arith.constant 0 : index
    %c0_18 = arith.constant 0 : index
    %28 = vector.load %arg4[%c0_17, %c0_18] : memref<1x64xf32, #tpu.memory_space<vmem>>, vector<1x64xf32>
    %29 = vector.broadcast %28 : vector<1x64xf32> to vector<4x64xf32>
    %30 = arith.mulf %27, %29 : vector<4x64xf32>
    %c0_19 = arith.constant 0 : index
    %c0_20 = arith.constant 0 : index
    %31 = vector.load %arg5[%c0_19, %c0_20] : memref<1x64xf32, #tpu.memory_space<vmem>>, vector<1x64xf32>
    %32 = vector.broadcast %31 : vector<1x64xf32> to vector<4x64xf32>
    %33 = arith.addf %30, %32 : vector<4x64xf32>
    %c0_21 = arith.constant 0 : index
    %c0_22 = arith.constant 0 : index
    %c0_23 = arith.constant 0 : index
    %34 = vector.load %arg7[%c0_21, %c0_22, %c0_23] : memref<1x4x64xf32, #tpu.memory_space<vmem>>, vector<1x4x64xf32>
    %35 = vector.shape_cast %34 : vector<1x4x64xf32> to vector<4x64xf32>
    %36 = vector.shape_cast %33 : vector<4x64xf32> to vector<1x4x64xf32>
    tpu.vector_store %arg7[%c0_21, %c0_22, %c0_23], %36 {strides = array<i32>} : memref<1x4x64xf32, #tpu.memory_space<vmem>>, vector<1x4x64xf32>,
    return
  }
  func.func @transform_0(%arg0: i32) -> (i32, i32, i32) {
    %c0_i32 = arith.constant 0 : i32
    %c0_i32_0 = arith.constant 0 : i32
    %c0_i32_1 = arith.constant 0 : i32
    return %arg0, %c0_i32, %c0_i32_0 : i32, i32, i32
  }
  func.func @transform_1(%arg0: i32) -> (i32, i32) {
    %c0_i32 = arith.constant 0 : i32
    %c0_i32_0 = arith.constant 0 : i32
    %c0_i32_1 = arith.constant 0 : i32
    return %c0_i32, %c0_i32_0 : i32, i32
  }
  func.func @transform_2(%arg0: i32) -> (i32, i32) {
    %c0_i32 = arith.constant 0 : i32
    %c0_i32_0 = arith.constant 0 : i32
    %c0_i32_1 = arith.constant 0 : i32
    return %c0_i32, %c0_i32_0 : i32, i32
  }
  func.func @transform_3(%arg0: i32) -> (i32, i32) {
    %c0_i32 = arith.constant 0 : i32
    %c0_i32_0 = arith.constant 0 : i32
    %c0_i32_1 = arith.constant 0 : i32
    return %c0_i32, %c0_i32_0 : i32, i32
  }
  func.func @transform_4(%arg0: i32) -> (i32, i32) {
    %c0_i32 = arith.constant 0 : i32
    %c0_i32_0 = arith.constant 0 : i32
    %c0_i32_1 = arith.constant 0 : i32
    return %c0_i32, %c0_i32_0 : i32, i32
  }
  func.func @transform_5(%arg0: i32) -> (i32, i32) {
    %c0_i32 = arith.constant 0 : i32
    %c0_i32_0 = arith.constant 0 : i32
    %c0_i32_1 = arith.constant 0 : i32
    return %c0_i32, %c0_i32_0 : i32, i32
  }
  func.func @transform_6(%arg0: i32) -> (i32, i32, i32) {
    %c0_i32 = arith.constant 0 : i32
    %c0_i32_0 = arith.constant 0 : i32
    %c0_i32_1 = arith.constant 0 : i32
    return %arg0, %c0_i32, %c0_i32_0 : i32, i32, i32
  }
}

module attributes {stable_mosaic.version = 11 : i64} {
  func.func @_proj_gn_kernel(%arg0: i32, %arg1: memref<1x16x16xf32, #tpu.memory_space<vmem>>, %arg2: memref<16x64xbf16, #tpu.memory_space<vmem>>, %arg3: memref<1x64xf32, #tpu.memory_space<vmem>>, %arg4: memref<1x64xf32, #tpu.memory_space<vmem>>, %arg5: memref<1x64xf32, #tpu.memory_space<vmem>>, %arg6: memref<64x64xf32, #tpu.memory_space<vmem>>, %arg7: memref<1x16x64xf32, #tpu.memory_space<vmem>>) attributes {dimension_semantics = [#tpu.dimension_semantics<parallel>], iteration_bounds = array<i64: 2>, scalar_prefetch = 0 : i64, scratch_operands = 0 : i64, tpu.core_type = #tpu.core_type<tc>, window_params = [{transform_indices = @transform_0, window_bounds = array<i64: 1, 16, 16>}, {pipeline_mode = #tpu.pipeline_mode<synchronous>, transform_indices = @transform_1, window_bounds = array<i64: 16, 64>}, {pipeline_mode = #tpu.pipeline_mode<synchronous>, transform_indices = @transform_2, window_bounds = array<i64: 1, 64>}, {pipeline_mode = #tpu.pipeline_mode<synchronous>, transform_indices = @transform_3, window_bounds = array<i64: 1, 64>}, {pipeline_mode = #tpu.pipeline_mode<synchronous>, transform_indices = @transform_4, window_bounds = array<i64: 1, 64>}, {pipeline_mode = #tpu.pipeline_mode<synchronous>, transform_indices = @transform_5, window_bounds = array<i64: 64, 64>}, {transform_indices = @transform_6, window_bounds = array<i64: 1, 16, 64>}]} {
    %c0 = arith.constant 0 : index
    %c0_0 = arith.constant 0 : index
    %c0_1 = arith.constant 0 : index
    %0 = vector.load %arg1[%c0, %c0_0, %c0_1] : memref<1x16x16xf32, #tpu.memory_space<vmem>>, vector<1x16x16xf32>
    %1 = vector.shape_cast %0 : vector<1x16x16xf32> to vector<16x16xf32>
    %2 = arith.truncf %1 : vector<16x16xf32> to vector<16x16xbf16>
    %c0_2 = arith.constant 0 : index
    %c0_3 = arith.constant 0 : index
    %3 = vector.load %arg2[%c0_2, %c0_3] : memref<16x64xbf16, #tpu.memory_space<vmem>>, vector<16x64xbf16>
    %cst = arith.constant dense<0.000000e+00> : vector<16x64xf32>
    %4 = tpu.matmul %2, %3, %cst {dimension_numbers = #tpu.dot_dimension_numbers<[1], [0], [0], [1], [0, 0, 1, 1], [], []>} : vector<16x16xbf16>, vector<16x64xbf16>, vector<16x64xf32> -> vector<16x64xf32>
    %c0_4 = arith.constant 0 : index
    %c0_5 = arith.constant 0 : index
    %5 = vector.load %arg3[%c0_4, %c0_5] : memref<1x64xf32, #tpu.memory_space<vmem>>, vector<1x64xf32>
    %6 = vector.broadcast %5 : vector<1x64xf32> to vector<16x64xf32>
    %7 = arith.addf %4, %6 : vector<16x64xf32>
    %cst_6 = arith.constant dense<0.000000e+00> : vector<64xf32>
    %8 = vector.multi_reduction <add>, %7, %cst_6 [0] : vector<16x64xf32> to vector<64xf32>
    %9 = vector.shape_cast %8 : vector<64xf32> to vector<1x64xf32>
    %cst_7 = arith.constant 1.600000e+01 : f32
    %10 = vector.broadcast %cst_7 : f32 to vector<1x64xf32>
    %11 = arith.divf %9, %10 : vector<1x64xf32>
    %c0_8 = arith.constant 0 : index
    %c0_9 = arith.constant 0 : index
    %12 = vector.load %arg6[%c0_8, %c0_9] : memref<64x64xf32, #tpu.memory_space<vmem>>, vector<64x64xf32>
    %cst_10 = arith.constant dense<0.000000e+00> : vector<1x64xf32>
    %13 = tpu.matmul %11, %12, %cst_10 {dimension_numbers = #tpu.dot_dimension_numbers<[1], [0], [0], [1], [0, 0, 1, 1], [], []>} : vector<1x64xf32>, vector<64x64xf32>, vector<1x64xf32> -> vector<1x64xf32>
    %14 = vector.broadcast %13 : vector<1x64xf32> to vector<16x64xf32>
    %15 = arith.subf %7, %14 : vector<16x64xf32>
    %16 = arith.mulf %15, %15 : vector<16x64xf32>
    %cst_11 = arith.constant dense<0.000000e+00> : vector<64xf32>
    %17 = vector.multi_reduction <add>, %16, %cst_11 [0] : vector<16x64xf32> to vector<64xf32>
    %18 = vector.shape_cast %17 : vector<64xf32> to vector<1x64xf32>
    %cst_12 = arith.constant 1.600000e+01 : f32
    %19 = vector.broadcast %cst_12 : f32 to vector<1x64xf32>
    %20 = arith.divf %18, %19 : vector<1x64xf32>
    %c0_13 = arith.constant 0 : index
    %c0_14 = arith.constant 0 : index
    %21 = vector.load %arg6[%c0_13, %c0_14] : memref<64x64xf32, #tpu.memory_space<vmem>>, vector<64x64xf32>
    %cst_15 = arith.constant dense<0.000000e+00> : vector<1x64xf32>
    %22 = tpu.matmul %20, %21, %cst_15 {dimension_numbers = #tpu.dot_dimension_numbers<[1], [0], [0], [1], [0, 0, 1, 1], [], []>} : vector<1x64xf32>, vector<64x64xf32>, vector<1x64xf32> -> vector<1x64xf32>
    %cst_16 = arith.constant 9.99999974E-6 : f32
    %23 = vector.broadcast %cst_16 : f32 to vector<1x64xf32>
    %24 = arith.addf %22, %23 : vector<1x64xf32>
    %25 = math.rsqrt %24 : vector<1x64xf32>
    %26 = vector.broadcast %25 : vector<1x64xf32> to vector<16x64xf32>
    %27 = arith.mulf %15, %26 : vector<16x64xf32>
    %c0_17 = arith.constant 0 : index
    %c0_18 = arith.constant 0 : index
    %28 = vector.load %arg4[%c0_17, %c0_18] : memref<1x64xf32, #tpu.memory_space<vmem>>, vector<1x64xf32>
    %29 = vector.broadcast %28 : vector<1x64xf32> to vector<16x64xf32>
    %30 = arith.mulf %27, %29 : vector<16x64xf32>
    %c0_19 = arith.constant 0 : index
    %c0_20 = arith.constant 0 : index
    %31 = vector.load %arg5[%c0_19, %c0_20] : memref<1x64xf32, #tpu.memory_space<vmem>>, vector<1x64xf32>
    %32 = vector.broadcast %31 : vector<1x64xf32> to vector<16x64xf32>
    %33 = arith.addf %30, %32 : vector<16x64xf32>
    %c0_21 = arith.constant 0 : index
    %c0_22 = arith.constant 0 : index
    %c0_23 = arith.constant 0 : index
    %34 = vector.load %arg7[%c0_21, %c0_22, %c0_23] : memref<1x16x64xf32, #tpu.memory_space<vmem>>, vector<1x16x64xf32>
    %35 = vector.shape_cast %34 : vector<1x16x64xf32> to vector<16x64xf32>
    %36 = vector.shape_cast %33 : vector<16x64xf32> to vector<1x16x64xf32>
    tpu.vector_store %arg7[%c0_21, %c0_22, %c0_23], %36 {strides = array<i32>} : memref<1x16x64xf32, #tpu.memory_space<vmem>>, vector<1x16x64xf32>,
    return
  }
  func.func @transform_0(%arg0: i32) -> (i32, i32, i32) {
    %c0_i32 = arith.constant 0 : i32
    %c0_i32_0 = arith.constant 0 : i32
    %c0_i32_1 = arith.constant 0 : i32
    return %arg0, %c0_i32, %c0_i32_0 : i32, i32, i32
  }
  func.func @transform_1(%arg0: i32) -> (i32, i32) {
    %c0_i32 = arith.constant 0 : i32
    %c0_i32_0 = arith.constant 0 : i32
    %c0_i32_1 = arith.constant 0 : i32
    return %c0_i32, %c0_i32_0 : i32, i32
  }
  func.func @transform_2(%arg0: i32) -> (i32, i32) {
    %c0_i32 = arith.constant 0 : i32
    %c0_i32_0 = arith.constant 0 : i32
    %c0_i32_1 = arith.constant 0 : i32
    return %c0_i32, %c0_i32_0 : i32, i32
  }
  func.func @transform_3(%arg0: i32) -> (i32, i32) {
    %c0_i32 = arith.constant 0 : i32
    %c0_i32_0 = arith.constant 0 : i32
    %c0_i32_1 = arith.constant 0 : i32
    return %c0_i32, %c0_i32_0 : i32, i32
  }
  func.func @transform_4(%arg0: i32) -> (i32, i32) {
    %c0_i32 = arith.constant 0 : i32
    %c0_i32_0 = arith.constant 0 : i32
    %c0_i32_1 = arith.constant 0 : i32
    return %c0_i32, %c0_i32_0 : i32, i32
  }
  func.func @transform_5(%arg0: i32) -> (i32, i32) {
    %c0_i32 = arith.constant 0 : i32
    %c0_i32_0 = arith.constant 0 : i32
    %c0_i32_1 = arith.constant 0 : i32
    return %c0_i32, %c0_i32_0 : i32, i32
  }
  func.func @transform_6(%arg0: i32) -> (i32, i32, i32) {
    %c0_i32 = arith.constant 0 : i32
    %c0_i32_0 = arith.constant 0 : i32
    %c0_i32_1 = arith.constant 0 : i32
    return %arg0, %c0_i32, %c0_i32_0 : i32, i32, i32
  }
}

module attributes {stable_mosaic.version = 11 : i64} {
  func.func @_proj_gn_kernel(%arg0: i32, %arg1: memref<1x64x8xf32, #tpu.memory_space<vmem>>, %arg2: memref<8x64xbf16, #tpu.memory_space<vmem>>, %arg3: memref<1x64xf32, #tpu.memory_space<vmem>>, %arg4: memref<1x64xf32, #tpu.memory_space<vmem>>, %arg5: memref<1x64xf32, #tpu.memory_space<vmem>>, %arg6: memref<64x64xf32, #tpu.memory_space<vmem>>, %arg7: memref<1x64x64xf32, #tpu.memory_space<vmem>>) attributes {dimension_semantics = [#tpu.dimension_semantics<parallel>], iteration_bounds = array<i64: 2>, scalar_prefetch = 0 : i64, scratch_operands = 0 : i64, tpu.core_type = #tpu.core_type<tc>, window_params = [{transform_indices = @transform_0, window_bounds = array<i64: 1, 64, 8>}, {pipeline_mode = #tpu.pipeline_mode<synchronous>, transform_indices = @transform_1, window_bounds = array<i64: 8, 64>}, {pipeline_mode = #tpu.pipeline_mode<synchronous>, transform_indices = @transform_2, window_bounds = array<i64: 1, 64>}, {pipeline_mode = #tpu.pipeline_mode<synchronous>, transform_indices = @transform_3, window_bounds = array<i64: 1, 64>}, {pipeline_mode = #tpu.pipeline_mode<synchronous>, transform_indices = @transform_4, window_bounds = array<i64: 1, 64>}, {pipeline_mode = #tpu.pipeline_mode<synchronous>, transform_indices = @transform_5, window_bounds = array<i64: 64, 64>}, {transform_indices = @transform_6, window_bounds = array<i64: 1, 64, 64>}]} {
    %c0 = arith.constant 0 : index
    %c0_0 = arith.constant 0 : index
    %c0_1 = arith.constant 0 : index
    %0 = vector.load %arg1[%c0, %c0_0, %c0_1] : memref<1x64x8xf32, #tpu.memory_space<vmem>>, vector<1x64x8xf32>
    %1 = vector.shape_cast %0 : vector<1x64x8xf32> to vector<64x8xf32>
    %2 = arith.truncf %1 : vector<64x8xf32> to vector<64x8xbf16>
    %c0_2 = arith.constant 0 : index
    %c0_3 = arith.constant 0 : index
    %3 = vector.load %arg2[%c0_2, %c0_3] : memref<8x64xbf16, #tpu.memory_space<vmem>>, vector<8x64xbf16>
    %cst = arith.constant dense<0.000000e+00> : vector<64x64xf32>
    %4 = tpu.matmul %2, %3, %cst {dimension_numbers = #tpu.dot_dimension_numbers<[1], [0], [0], [1], [0, 0, 1, 1], [], []>} : vector<64x8xbf16>, vector<8x64xbf16>, vector<64x64xf32> -> vector<64x64xf32>
    %c0_4 = arith.constant 0 : index
    %c0_5 = arith.constant 0 : index
    %5 = vector.load %arg3[%c0_4, %c0_5] : memref<1x64xf32, #tpu.memory_space<vmem>>, vector<1x64xf32>
    %6 = vector.broadcast %5 : vector<1x64xf32> to vector<64x64xf32>
    %7 = arith.addf %4, %6 : vector<64x64xf32>
    %cst_6 = arith.constant dense<0.000000e+00> : vector<64xf32>
    %8 = vector.multi_reduction <add>, %7, %cst_6 [0] : vector<64x64xf32> to vector<64xf32>
    %9 = vector.shape_cast %8 : vector<64xf32> to vector<1x64xf32>
    %cst_7 = arith.constant 6.400000e+01 : f32
    %10 = vector.broadcast %cst_7 : f32 to vector<1x64xf32>
    %11 = arith.divf %9, %10 : vector<1x64xf32>
    %c0_8 = arith.constant 0 : index
    %c0_9 = arith.constant 0 : index
    %12 = vector.load %arg6[%c0_8, %c0_9] : memref<64x64xf32, #tpu.memory_space<vmem>>, vector<64x64xf32>
    %cst_10 = arith.constant dense<0.000000e+00> : vector<1x64xf32>
    %13 = tpu.matmul %11, %12, %cst_10 {dimension_numbers = #tpu.dot_dimension_numbers<[1], [0], [0], [1], [0, 0, 1, 1], [], []>} : vector<1x64xf32>, vector<64x64xf32>, vector<1x64xf32> -> vector<1x64xf32>
    %14 = vector.broadcast %13 : vector<1x64xf32> to vector<64x64xf32>
    %15 = arith.subf %7, %14 : vector<64x64xf32>
    %16 = arith.mulf %15, %15 : vector<64x64xf32>
    %cst_11 = arith.constant dense<0.000000e+00> : vector<64xf32>
    %17 = vector.multi_reduction <add>, %16, %cst_11 [0] : vector<64x64xf32> to vector<64xf32>
    %18 = vector.shape_cast %17 : vector<64xf32> to vector<1x64xf32>
    %cst_12 = arith.constant 6.400000e+01 : f32
    %19 = vector.broadcast %cst_12 : f32 to vector<1x64xf32>
    %20 = arith.divf %18, %19 : vector<1x64xf32>
    %c0_13 = arith.constant 0 : index
    %c0_14 = arith.constant 0 : index
    %21 = vector.load %arg6[%c0_13, %c0_14] : memref<64x64xf32, #tpu.memory_space<vmem>>, vector<64x64xf32>
    %cst_15 = arith.constant dense<0.000000e+00> : vector<1x64xf32>
    %22 = tpu.matmul %20, %21, %cst_15 {dimension_numbers = #tpu.dot_dimension_numbers<[1], [0], [0], [1], [0, 0, 1, 1], [], []>} : vector<1x64xf32>, vector<64x64xf32>, vector<1x64xf32> -> vector<1x64xf32>
    %cst_16 = arith.constant 9.99999974E-6 : f32
    %23 = vector.broadcast %cst_16 : f32 to vector<1x64xf32>
    %24 = arith.addf %22, %23 : vector<1x64xf32>
    %25 = math.rsqrt %24 : vector<1x64xf32>
    %26 = vector.broadcast %25 : vector<1x64xf32> to vector<64x64xf32>
    %27 = arith.mulf %15, %26 : vector<64x64xf32>
    %c0_17 = arith.constant 0 : index
    %c0_18 = arith.constant 0 : index
    %28 = vector.load %arg4[%c0_17, %c0_18] : memref<1x64xf32, #tpu.memory_space<vmem>>, vector<1x64xf32>
    %29 = vector.broadcast %28 : vector<1x64xf32> to vector<64x64xf32>
    %30 = arith.mulf %27, %29 : vector<64x64xf32>
    %c0_19 = arith.constant 0 : index
    %c0_20 = arith.constant 0 : index
    %31 = vector.load %arg5[%c0_19, %c0_20] : memref<1x64xf32, #tpu.memory_space<vmem>>, vector<1x64xf32>
    %32 = vector.broadcast %31 : vector<1x64xf32> to vector<64x64xf32>
    %33 = arith.addf %30, %32 : vector<64x64xf32>
    %c0_21 = arith.constant 0 : index
    %c0_22 = arith.constant 0 : index
    %c0_23 = arith.constant 0 : index
    %34 = vector.load %arg7[%c0_21, %c0_22, %c0_23] : memref<1x64x64xf32, #tpu.memory_space<vmem>>, vector<1x64x64xf32>
    %35 = vector.shape_cast %34 : vector<1x64x64xf32> to vector<64x64xf32>
    %36 = vector.shape_cast %33 : vector<64x64xf32> to vector<1x64x64xf32>
    tpu.vector_store %arg7[%c0_21, %c0_22, %c0_23], %36 {strides = array<i32>} : memref<1x64x64xf32, #tpu.memory_space<vmem>>, vector<1x64x64xf32>,
    return
  }
  func.func @transform_0(%arg0: i32) -> (i32, i32, i32) {
    %c0_i32 = arith.constant 0 : i32
    %c0_i32_0 = arith.constant 0 : i32
    %c0_i32_1 = arith.constant 0 : i32
    return %arg0, %c0_i32, %c0_i32_0 : i32, i32, i32
  }
  func.func @transform_1(%arg0: i32) -> (i32, i32) {
    %c0_i32 = arith.constant 0 : i32
    %c0_i32_0 = arith.constant 0 : i32
    %c0_i32_1 = arith.constant 0 : i32
    return %c0_i32, %c0_i32_0 : i32, i32
  }
  func.func @transform_2(%arg0: i32) -> (i32, i32) {
    %c0_i32 = arith.constant 0 : i32
    %c0_i32_0 = arith.constant 0 : i32
    %c0_i32_1 = arith.constant 0 : i32
    return %c0_i32, %c0_i32_0 : i32, i32
  }
  func.func @transform_3(%arg0: i32) -> (i32, i32) {
    %c0_i32 = arith.constant 0 : i32
    %c0_i32_0 = arith.constant 0 : i32
    %c0_i32_1 = arith.constant 0 : i32
    return %c0_i32, %c0_i32_0 : i32, i32
  }
  func.func @transform_4(%arg0: i32) -> (i32, i32) {
    %c0_i32 = arith.constant 0 : i32
    %c0_i32_0 = arith.constant 0 : i32
    %c0_i32_1 = arith.constant 0 : i32
    return %c0_i32, %c0_i32_0 : i32, i32
  }
  func.func @transform_5(%arg0: i32) -> (i32, i32) {
    %c0_i32 = arith.constant 0 : i32
    %c0_i32_0 = arith.constant 0 : i32
    %c0_i32_1 = arith.constant 0 : i32
    return %c0_i32, %c0_i32_0 : i32, i32
  }
  func.func @transform_6(%arg0: i32) -> (i32, i32, i32) {
    %c0_i32 = arith.constant 0 : i32
    %c0_i32_0 = arith.constant 0 : i32
    %c0_i32_1 = arith.constant 0 : i32
    return %arg0, %c0_i32, %c0_i32_0 : i32, i32, i32
  }
}

module attributes {stable_mosaic.version = 11 : i64} {
  func.func @_msda_proj_kernel(%arg0: i32, %arg1: memref<168x64xf32, #tpu.memory_space<vmem>>, %arg2: memref<168x64xf32, #tpu.memory_space<vmem>>, %arg3: memref<168x1xf32, #tpu.memory_space<vmem>>, %arg4: memref<168x128xf32, #tpu.memory_space<vmem>>, %arg5: memref<1x128xf32, #tpu.memory_space<vmem>>, %arg6: memref<1x128xf32, #tpu.memory_space<vmem>>, %arg7: memref<128x4xf32, #tpu.memory_space<vmem>>, %arg8: memref<4x128xf32, #tpu.memory_space<vmem>>, %arg9: memref<64x128xbf16, #tpu.memory_space<vmem>>, %arg10: memref<1x128xf32, #tpu.memory_space<vmem>>, %arg11: memref<64x128xbf16, #tpu.memory_space<vmem>>, %arg12: memref<1x128xf32, #tpu.memory_space<vmem>>, %arg13: memref<168x256xf32, #tpu.memory_space<vmem>>) attributes {dimension_semantics = [#tpu.dimension_semantics<arbitrary>], iteration_bounds = array<i64: 1>, scalar_prefetch = 0 : i64, scratch_operands = 0 : i64, tpu.core_type = #tpu.core_type<tc>, window_params = [{pipeline_mode = #tpu.pipeline_mode<synchronous>, transform_indices = @transform_0, window_bounds = array<i64: 168, 64>}, {pipeline_mode = #tpu.pipeline_mode<synchronous>, transform_indices = @transform_1, window_bounds = array<i64: 168, 64>}, {pipeline_mode = #tpu.pipeline_mode<synchronous>, transform_indices = @transform_2, window_bounds = array<i64: 168, 1>}, {pipeline_mode = #tpu.pipeline_mode<synchronous>, transform_indices = @transform_3, window_bounds = array<i64: 168, 128>}, {pipeline_mode = #tpu.pipeline_mode<synchronous>, transform_indices = @transform_4, window_bounds = array<i64: 1, 128>}, {pipeline_mode = #tpu.pipeline_mode<synchronous>, transform_indices = @transform_5, window_bounds = array<i64: 1, 128>}, {pipeline_mode = #tpu.pipeline_mode<synchronous>, transform_indices = @transform_6, window_bounds = array<i64: 128, 4>}, {pipeline_mode = #tpu.pipeline_mode<synchronous>, transform_indices = @transform_7, window_bounds = array<i64: 4, 128>}, {pipeline_mode = #tpu.pipeline_mode<synchronous>, transform_indices = @transform_8, window_bounds = array<i64: 64, 128>}, {pipeline_mode = #tpu.pipeline_mode<synchronous>, transform_indices = @transform_9, window_bounds = array<i64: 1, 128>}, {pipeline_mode = #tpu.pipeline_mode<synchronous>, transform_indices = @transform_10, window_bounds = array<i64: 64, 128>}, {pipeline_mode = #tpu.pipeline_mode<synchronous>, transform_indices = @transform_11, window_bounds = array<i64: 1, 128>}, {pipeline_mode = #tpu.pipeline_mode<synchronous>, transform_indices = @transform_12, window_bounds = array<i64: 168, 256>}]} {
    %c0 = arith.constant 0 : index
    %c0_0 = arith.constant 0 : index
    %0 = vector.load %arg1[%c0, %c0_0] : memref<168x64xf32, #tpu.memory_space<vmem>>, vector<168x64xf32>
    %c0_1 = arith.constant 0 : index
    %c0_2 = arith.constant 0 : index
    %1 = vector.load %arg2[%c0_1, %c0_2] : memref<168x64xf32, #tpu.memory_space<vmem>>, vector<168x64xf32>
    %2 = arith.addf %0, %1 : vector<168x64xf32>
    %3 = arith.truncf %0 : vector<168x64xf32> to vector<168x64xbf16>
    %c0_3 = arith.constant 0 : index
    %c0_4 = arith.constant 0 : index
    %4 = vector.load %arg9[%c0_3, %c0_4] : memref<64x128xbf16, #tpu.memory_space<vmem>>, vector<64x128xbf16>
    %cst = arith.constant dense<0.000000e+00> : vector<168x128xf32>
    %5 = tpu.matmul %3, %4, %cst {dimension_numbers = #tpu.dot_dimension_numbers<[1], [0], [0], [1], [0, 0, 1, 1], [], []>} : vector<168x64xbf16>, vector<64x128xbf16>, vector<168x128xf32> -> vector<168x128xf32>
    %c0_5 = arith.constant 0 : index
    %c0_6 = arith.constant 0 : index
    %6 = vector.load %arg10[%c0_5, %c0_6] : memref<1x128xf32, #tpu.memory_space<vmem>>, vector<1x128xf32>
    %7 = vector.broadcast %6 : vector<1x128xf32> to vector<168x128xf32>
    %8 = arith.addf %5, %7 : vector<168x128xf32>
    %c0_7 = arith.constant 0 : index
    %c0_8 = arith.constant 0 : index
    %9 = vector.load %arg3[%c0_7, %c0_8] : memref<168x1xf32, #tpu.memory_space<vmem>>, vector<168x1xf32>
    %10 = vector.broadcast %9 : vector<168x1xf32> to vector<168x128xf32>
    %11 = arith.mulf %8, %10 : vector<168x128xf32>
    %12 = arith.truncf %2 : vector<168x64xf32> to vector<168x64xbf16>
    %c0_9 = arith.constant 0 : index
    %c0_10 = arith.constant 0 : index
    %13 = vector.load %arg11[%c0_9, %c0_10] : memref<64x128xbf16, #tpu.memory_space<vmem>>, vector<64x128xbf16>
    %cst_11 = arith.constant dense<0.000000e+00> : vector<168x128xf32>
    %14 = tpu.matmul %12, %13, %cst_11 {dimension_numbers = #tpu.dot_dimension_numbers<[1], [0], [0], [1], [0, 0, 1, 1], [], []>} : vector<168x64xbf16>, vector<64x128xbf16>, vector<168x128xf32> -> vector<168x128xf32>
    %c0_12 = arith.constant 0 : index
    %c0_13 = arith.constant 0 : index
    %15 = vector.load %arg12[%c0_12, %c0_13] : memref<1x128xf32, #tpu.memory_space<vmem>>, vector<1x128xf32>
    %16 = vector.broadcast %15 : vector<1x128xf32> to vector<168x128xf32>
    %17 = arith.addf %14, %16 : vector<168x128xf32>
    %c0_14 = arith.constant 0 : index
    %c0_15 = arith.constant 0 : index
    %18 = vector.load %arg6[%c0_14, %c0_15] : memref<1x128xf32, #tpu.memory_space<vmem>>, vector<1x128xf32>
    %c0_16 = arith.constant 0 : index
    %c0_17 = arith.constant 0 : index
    %19 = vector.load %arg4[%c0_16, %c0_17] : memref<168x128xf32, #tpu.memory_space<vmem>>, vector<168x128xf32>
    %c0_18 = arith.constant 0 : index
    %c0_19 = arith.constant 0 : index
    %20 = vector.load %arg5[%c0_18, %c0_19] : memref<1x128xf32, #tpu.memory_space<vmem>>, vector<1x128xf32>
    %21 = vector.broadcast %20 : vector<1x128xf32> to vector<168x128xf32>
    %22 = arith.mulf %17, %21 : vector<168x128xf32>
    %23 = arith.addf %19, %22 : vector<168x128xf32>
    %cst_20 = arith.constant 0.000000e+00 : f32
    %24 = vector.broadcast %cst_20 : f32 to vector<1x128xf32>
    %25 = arith.cmpf ogt, %18, %24 : vector<1x128xf32>
    %cst_21 = arith.constant -1.000000e+30 : f32
    %26 = vector.shape_cast %25 : vector<1x128xi1> to vector<1x128xi1>
    %27 = vector.broadcast %26 : vector<1x128xi1> to vector<168x128xi1>
    %28 = vector.broadcast %cst_21 : f32 to vector<168x128xf32>
    %29 = arith.select %27, %17, %28 : vector<168x128xi1>, vector<168x128xf32>
    %cst_22 = arith.constant dense<0xFF800000> : vector<168xf32>
    %30 = vector.multi_reduction <maximumf>, %29, %cst_22 [1] : vector<168x128xf32> to vector<168xf32>
    %31 = vector.shape_cast %30 : vector<168xf32> to vector<168x1xf32>
    %32 = vector.broadcast %31 : vector<168x1xf32> to vector<168x128xf32>
    %33 = arith.subf %29, %32 : vector<168x128xf32>
    %34 = math.exp %33 : vector<168x128xf32>
    %c0_23 = arith.constant 0 : index
    %c0_24 = arith.constant 0 : index
    %35 = vector.load %arg7[%c0_23, %c0_24] : memref<128x4xf32, #tpu.memory_space<vmem>>, vector<128x4xf32>
    %cst_25 = arith.constant dense<0.000000e+00> : vector<168x4xf32>
    %36 = tpu.matmul %34, %35, %cst_25 {dimension_numbers = #tpu.dot_dimension_numbers<[1], [0], [0], [1], [0, 0, 1, 1], [], []>} : vector<168x128xf32>, vector<128x4xf32>, vector<168x4xf32> -> vector<168x4xf32>
    %c0_26 = arith.constant 0 : index
    %c0_27 = arith.constant 0 : index
    %37 = vector.load %arg8[%c0_26, %c0_27] : memref<4x128xf32, #tpu.memory_space<vmem>>, vector<4x128xf32>
    %cst_28 = arith.constant dense<0.000000e+00> : vector<168x128xf32>
    %38 = tpu.matmul %36, %37, %cst_28 {dimension_numbers = #tpu.dot_dimension_numbers<[1], [0], [0], [1], [0, 0, 1, 1], [], []>} : vector<168x4xf32>, vector<4x128xf32>, vector<168x128xf32> -> vector<168x128xf32>
    %cst_29 = arith.constant 0.000000e+00 : f32
    %39 = vector.broadcast %cst_29 : f32 to vector<1x128xf32>
    %40 = arith.cmpf ogt, %18, %39 : vector<1x128xf32>
    %cst_30 = arith.constant 1.000000e-30 : f32
    %41 = vector.broadcast %cst_30 : f32 to vector<168x128xf32>
    %42 = arith.maximumf %38, %41 : vector<168x128xf32>
    %cst_31 = arith.constant 1.000000e+00 : f32
    %43 = vector.shape_cast %40 : vector<1x128xi1> to vector<1x128xi1>
    %44 = vector.broadcast %43 : vector<1x128xi1> to vector<168x128xi1>
    %45 = vector.broadcast %cst_31 : f32 to vector<168x128xf32>
    %46 = arith.select %44, %42, %45 : vector<168x128xi1>, vector<168x128xf32>
    %47 = tpu.reciprocal %46 {approx = true} : vector<168x128xf32> -> vector<168x128xf32>
    %48 = arith.mulf %34, %47 : vector<168x128xf32>
    %c0_32 = arith.constant 0 : index
    %c0_33 = arith.constant 0 : index
    %49 = vector.load %arg13[%c0_32, %c0_33] : memref<168x256xf32, #tpu.memory_space<vmem>>, vector<168x128xf32>
    tpu.vector_store %arg13[%c0_32, %c0_33], %11 {strides = array<i32>} : memref<168x256xf32, #tpu.memory_space<vmem>>, vector<168x128xf32>,
    %cst_34 = arith.constant 0.000000e+00 : f32
    %50 = vector.broadcast %cst_34 : f32 to vector<1x128xf32>
    %51 = arith.cmpf ogt, %18, %50 : vector<1x128xf32>
    %52 = vector.shape_cast %51 : vector<1x128xi1> to vector<1x128xi1>
    %53 = vector.broadcast %52 : vector<1x128xi1> to vector<168x128xi1>
    %54 = arith.select %53, %48, %23 : vector<168x128xi1>, vector<168x128xf32>
    %c0_35 = arith.constant 0 : index
    %c128 = arith.constant 128 : index
    %55 = vector.load %arg13[%c0_35, %c128] : memref<168x256xf32, #tpu.memory_space<vmem>>, vector<168x128xf32>
    tpu.vector_store %arg13[%c0_35, %c128], %54 {strides = array<i32>} : memref<168x256xf32, #tpu.memory_space<vmem>>, vector<168x128xf32>,
    return
  }
  func.func @transform_0(%arg0: i32) -> (i32, i32) {
    %c0_i32 = arith.constant 0 : i32
    %c0_i32_0 = arith.constant 0 : i32
    %c0_i32_1 = arith.constant 0 : i32
    return %c0_i32, %c0_i32_0 : i32, i32
  }
  func.func @transform_1(%arg0: i32) -> (i32, i32) {
    %c0_i32 = arith.constant 0 : i32
    %c0_i32_0 = arith.constant 0 : i32
    %c0_i32_1 = arith.constant 0 : i32
    return %c0_i32, %c0_i32_0 : i32, i32
  }
  func.func @transform_2(%arg0: i32) -> (i32, i32) {
    %c0_i32 = arith.constant 0 : i32
    %c0_i32_0 = arith.constant 0 : i32
    %c0_i32_1 = arith.constant 0 : i32
    return %c0_i32, %c0_i32_0 : i32, i32
  }
  func.func @transform_3(%arg0: i32) -> (i32, i32) {
    %c0_i32 = arith.constant 0 : i32
    %c0_i32_0 = arith.constant 0 : i32
    %c0_i32_1 = arith.constant 0 : i32
    return %c0_i32, %c0_i32_0 : i32, i32
  }
  func.func @transform_4(%arg0: i32) -> (i32, i32) {
    %c0_i32 = arith.constant 0 : i32
    %c0_i32_0 = arith.constant 0 : i32
    %c0_i32_1 = arith.constant 0 : i32
    return %c0_i32, %c0_i32_0 : i32, i32
  }
  func.func @transform_5(%arg0: i32) -> (i32, i32) {
    %c0_i32 = arith.constant 0 : i32
    %c0_i32_0 = arith.constant 0 : i32
    %c0_i32_1 = arith.constant 0 : i32
    return %c0_i32, %c0_i32_0 : i32, i32
  }
  func.func @transform_6(%arg0: i32) -> (i32, i32) {
    %c0_i32 = arith.constant 0 : i32
    %c0_i32_0 = arith.constant 0 : i32
    %c0_i32_1 = arith.constant 0 : i32
    return %c0_i32, %c0_i32_0 : i32, i32
  }
  func.func @transform_7(%arg0: i32) -> (i32, i32) {
    %c0_i32 = arith.constant 0 : i32
    %c0_i32_0 = arith.constant 0 : i32
    %c0_i32_1 = arith.constant 0 : i32
    return %c0_i32, %c0_i32_0 : i32, i32
  }
  func.func @transform_8(%arg0: i32) -> (i32, i32) {
    %c0_i32 = arith.constant 0 : i32
    %c0_i32_0 = arith.constant 0 : i32
    %c0_i32_1 = arith.constant 0 : i32
    return %c0_i32, %c0_i32_0 : i32, i32
  }
  func.func @transform_9(%arg0: i32) -> (i32, i32) {
    %c0_i32 = arith.constant 0 : i32
    %c0_i32_0 = arith.constant 0 : i32
    %c0_i32_1 = arith.constant 0 : i32
    return %c0_i32, %c0_i32_0 : i32, i32
  }
  func.func @transform_10(%arg0: i32) -> (i32, i32) {
    %c0_i32 = arith.constant 0 : i32
    %c0_i32_0 = arith.constant 0 : i32
    %c0_i32_1 = arith.constant 0 : i32
    return %c0_i32, %c0_i32_0 : i32, i32
  }
  func.func @transform_11(%arg0: i32) -> (i32, i32) {
    %c0_i32 = arith.constant 0 : i32
    %c0_i32_0 = arith.constant 0 : i32
    %c0_i32_1 = arith.constant 0 : i32
    return %c0_i32, %c0_i32_0 : i32, i32
  }
  func.func @transform_12(%arg0: i32) -> (i32, i32) {
    %c0_i32 = arith.constant 0 : i32
    %c0_i32_0 = arith.constant 0 : i32
    %c0_i32_1 = arith.constant 0 : i32
    return %c0_i32, %c0_i32_0 : i32, i32
  }
}

module attributes {stable_mosaic.version = 11 : i64} {
  func.func @_attn_tail_kernel(%arg0: i32, %arg1: memref<168x64xf32, #tpu.memory_space<vmem>>, %arg2: memref<168x64xf32, #tpu.memory_space<vmem>>, %arg3: memref<64x64xbf16, #tpu.memory_space<vmem>>, %arg4: memref<1x64xf32, #tpu.memory_space<vmem>>, %arg5: memref<1x64xf32, #tpu.memory_space<vmem>>, %arg6: memref<1x64xf32, #tpu.memory_space<vmem>>, %arg7: memref<64x128xbf16, #tpu.memory_space<vmem>>, %arg8: memref<1x128xf32, #tpu.memory_space<vmem>>, %arg9: memref<128x64xbf16, #tpu.memory_space<vmem>>, %arg10: memref<1x64xf32, #tpu.memory_space<vmem>>, %arg11: memref<1x64xf32, #tpu.memory_space<vmem>>, %arg12: memref<1x64xf32, #tpu.memory_space<vmem>>, %arg13: memref<168x64xf32, #tpu.memory_space<vmem>>) attributes {dimension_semantics = [#tpu.dimension_semantics<arbitrary>], iteration_bounds = array<i64: 1>, scalar_prefetch = 0 : i64, scratch_operands = 0 : i64, tpu.core_type = #tpu.core_type<tc>, window_params = [{pipeline_mode = #tpu.pipeline_mode<synchronous>, transform_indices = @transform_0, window_bounds = array<i64: 168, 64>}, {pipeline_mode = #tpu.pipeline_mode<synchronous>, transform_indices = @transform_1, window_bounds = array<i64: 168, 64>}, {pipeline_mode = #tpu.pipeline_mode<synchronous>, transform_indices = @transform_2, window_bounds = array<i64: 64, 64>}, {pipeline_mode = #tpu.pipeline_mode<synchronous>, transform_indices = @transform_3, window_bounds = array<i64: 1, 64>}, {pipeline_mode = #tpu.pipeline_mode<synchronous>, transform_indices = @transform_4, window_bounds = array<i64: 1, 64>}, {pipeline_mode = #tpu.pipeline_mode<synchronous>, transform_indices = @transform_5, window_bounds = array<i64: 1, 64>}, {pipeline_mode = #tpu.pipeline_mode<synchronous>, transform_indices = @transform_6, window_bounds = array<i64: 64, 128>}, {pipeline_mode = #tpu.pipeline_mode<synchronous>, transform_indices = @transform_7, window_bounds = array<i64: 1, 128>}, {pipeline_mode = #tpu.pipeline_mode<synchronous>, transform_indices = @transform_8, window_bounds = array<i64: 128, 64>}, {pipeline_mode = #tpu.pipeline_mode<synchronous>, transform_indices = @transform_9, window_bounds = array<i64: 1, 64>}, {pipeline_mode = #tpu.pipeline_mode<synchronous>, transform_indices = @transform_10, window_bounds = array<i64: 1, 64>}, {pipeline_mode = #tpu.pipeline_mode<synchronous>, transform_indices = @transform_11, window_bounds = array<i64: 1, 64>}, {pipeline_mode = #tpu.pipeline_mode<synchronous>, transform_indices = @transform_12, window_bounds = array<i64: 168, 64>}]} {
    %c0 = arith.constant 0 : index
    %c0_0 = arith.constant 0 : index
    %0 = vector.load %arg2[%c0, %c0_0] : memref<168x64xf32, #tpu.memory_space<vmem>>, vector<168x64xf32>
    %c0_1 = arith.constant 0 : index
    %c0_2 = arith.constant 0 : index
    %1 = vector.load %arg1[%c0_1, %c0_2] : memref<168x64xf32, #tpu.memory_space<vmem>>, vector<168x64xf32>
    %2 = arith.truncf %1 : vector<168x64xf32> to vector<168x64xbf16>
    %c0_3 = arith.constant 0 : index
    %c0_4 = arith.constant 0 : index
    %3 = vector.load %arg3[%c0_3, %c0_4] : memref<64x64xbf16, #tpu.memory_space<vmem>>, vector<64x64xbf16>
    %cst = arith.constant dense<0.000000e+00> : vector<168x64xf32>
    %4 = tpu.matmul %2, %3, %cst {dimension_numbers = #tpu.dot_dimension_numbers<[1], [0], [0], [1], [0, 0, 1, 1], [], []>} : vector<168x64xbf16>, vector<64x64xbf16>, vector<168x64xf32> -> vector<168x64xf32>
    %5 = arith.addf %0, %4 : vector<168x64xf32>
    %c0_5 = arith.constant 0 : index
    %c0_6 = arith.constant 0 : index
    %6 = vector.load %arg4[%c0_5, %c0_6] : memref<1x64xf32, #tpu.memory_space<vmem>>, vector<1x64xf32>
    %7 = vector.broadcast %6 : vector<1x64xf32> to vector<168x64xf32>
    %8 = arith.addf %5, %7 : vector<168x64xf32>
    %cst_7 = arith.constant dense<0.000000e+00> : vector<168xf32>
    %9 = vector.multi_reduction <add>, %8, %cst_7 [1] : vector<168x64xf32> to vector<168xf32>
    %10 = vector.shape_cast %9 : vector<168xf32> to vector<168x1xf32>
    %cst_8 = arith.constant 6.400000e+01 : f32
    %11 = vector.broadcast %cst_8 : f32 to vector<168x1xf32>
    %12 = arith.divf %10, %11 : vector<168x1xf32>
    %13 = vector.broadcast %12 : vector<168x1xf32> to vector<168x64xf32>
    %14 = arith.subf %8, %13 : vector<168x64xf32>
    %15 = vector.broadcast %12 : vector<168x1xf32> to vector<168x64xf32>
    %16 = arith.subf %8, %15 : vector<168x64xf32>
    %17 = arith.mulf %14, %16 : vector<168x64xf32>
    %cst_9 = arith.constant dense<0.000000e+00> : vector<168xf32>
    %18 = vector.multi_reduction <add>, %17, %cst_9 [1] : vector<168x64xf32> to vector<168xf32>
    %19 = vector.shape_cast %18 : vector<168xf32> to vector<168x1xf32>
    %cst_10 = arith.constant 6.400000e+01 : f32
    %20 = vector.broadcast %cst_10 : f32 to vector<168x1xf32>
    %21 = arith.divf %19, %20 : vector<168x1xf32>
    %22 = vector.broadcast %12 : vector<168x1xf32> to vector<168x64xf32>
    %23 = arith.subf %8, %22 : vector<168x64xf32>
    %cst_11 = arith.constant 9.99999974E-6 : f32
    %24 = vector.broadcast %cst_11 : f32 to vector<168x1xf32>
    %25 = arith.addf %21, %24 : vector<168x1xf32>
    %26 = math.rsqrt %25 : vector<168x1xf32>
    %27 = vector.broadcast %26 : vector<168x1xf32> to vector<168x64xf32>
    %28 = arith.mulf %23, %27 : vector<168x64xf32>
    %c0_12 = arith.constant 0 : index
    %c0_13 = arith.constant 0 : index
    %29 = vector.load %arg5[%c0_12, %c0_13] : memref<1x64xf32, #tpu.memory_space<vmem>>, vector<1x64xf32>
    %30 = vector.broadcast %29 : vector<1x64xf32> to vector<168x64xf32>
    %31 = arith.mulf %28, %30 : vector<168x64xf32>
    %c0_14 = arith.constant 0 : index
    %c0_15 = arith.constant 0 : index
    %32 = vector.load %arg6[%c0_14, %c0_15] : memref<1x64xf32, #tpu.memory_space<vmem>>, vector<1x64xf32>
    %33 = vector.broadcast %32 : vector<1x64xf32> to vector<168x64xf32>
    %34 = arith.addf %31, %33 : vector<168x64xf32>
    %35 = arith.truncf %34 : vector<168x64xf32> to vector<168x64xbf16>
    %c0_16 = arith.constant 0 : index
    %c0_17 = arith.constant 0 : index
    %36 = vector.load %arg7[%c0_16, %c0_17] : memref<64x128xbf16, #tpu.memory_space<vmem>>, vector<64x128xbf16>
    %cst_18 = arith.constant dense<0.000000e+00> : vector<168x128xf32>
    %37 = tpu.matmul %35, %36, %cst_18 {dimension_numbers = #tpu.dot_dimension_numbers<[1], [0], [0], [1], [0, 0, 1, 1], [], []>} : vector<168x64xbf16>, vector<64x128xbf16>, vector<168x128xf32> -> vector<168x128xf32>
    %c0_19 = arith.constant 0 : index
    %c0_20 = arith.constant 0 : index
    %38 = vector.load %arg8[%c0_19, %c0_20] : memref<1x128xf32, #tpu.memory_space<vmem>>, vector<1x128xf32>
    %39 = vector.broadcast %38 : vector<1x128xf32> to vector<168x128xf32>
    %40 = arith.addf %37, %39 : vector<168x128xf32>
    %cst_21 = arith.constant 0.000000e+00 : f32
    %41 = vector.broadcast %cst_21 : f32 to vector<168x128xf32>
    %42 = arith.maximumf %40, %41 : vector<168x128xf32>
    %43 = arith.truncf %42 : vector<168x128xf32> to vector<168x128xbf16>
    %c0_22 = arith.constant 0 : index
    %c0_23 = arith.constant 0 : index
    %44 = vector.load %arg9[%c0_22, %c0_23] : memref<128x64xbf16, #tpu.memory_space<vmem>>, vector<128x64xbf16>
    %cst_24 = arith.constant dense<0.000000e+00> : vector<168x64xf32>
    %45 = tpu.matmul %43, %44, %cst_24 {dimension_numbers = #tpu.dot_dimension_numbers<[1], [0], [0], [1], [0, 0, 1, 1], [], []>} : vector<168x128xbf16>, vector<128x64xbf16>, vector<168x64xf32> -> vector<168x64xf32>
    %46 = arith.addf %34, %45 : vector<168x64xf32>
    %c0_25 = arith.constant 0 : index
    %c0_26 = arith.constant 0 : index
    %47 = vector.load %arg10[%c0_25, %c0_26] : memref<1x64xf32, #tpu.memory_space<vmem>>, vector<1x64xf32>
    %48 = vector.broadcast %47 : vector<1x64xf32> to vector<168x64xf32>
    %49 = arith.addf %46, %48 : vector<168x64xf32>
    %cst_27 = arith.constant dense<0.000000e+00> : vector<168xf32>
    %50 = vector.multi_reduction <add>, %49, %cst_27 [1] : vector<168x64xf32> to vector<168xf32>
    %51 = vector.shape_cast %50 : vector<168xf32> to vector<168x1xf32>
    %cst_28 = arith.constant 6.400000e+01 : f32
    %52 = vector.broadcast %cst_28 : f32 to vector<168x1xf32>
    %53 = arith.divf %51, %52 : vector<168x1xf32>
    %54 = vector.broadcast %53 : vector<168x1xf32> to vector<168x64xf32>
    %55 = arith.subf %49, %54 : vector<168x64xf32>
    %56 = vector.broadcast %53 : vector<168x1xf32> to vector<168x64xf32>
    %57 = arith.subf %49, %56 : vector<168x64xf32>
    %58 = arith.mulf %55, %57 : vector<168x64xf32>
    %cst_29 = arith.constant dense<0.000000e+00> : vector<168xf32>
    %59 = vector.multi_reduction <add>, %58, %cst_29 [1] : vector<168x64xf32> to vector<168xf32>
    %60 = vector.shape_cast %59 : vector<168xf32> to vector<168x1xf32>
    %cst_30 = arith.constant 6.400000e+01 : f32
    %61 = vector.broadcast %cst_30 : f32 to vector<168x1xf32>
    %62 = arith.divf %60, %61 : vector<168x1xf32>
    %63 = vector.broadcast %53 : vector<168x1xf32> to vector<168x64xf32>
    %64 = arith.subf %49, %63 : vector<168x64xf32>
    %cst_31 = arith.constant 9.99999974E-6 : f32
    %65 = vector.broadcast %cst_31 : f32 to vector<168x1xf32>
    %66 = arith.addf %62, %65 : vector<168x1xf32>
    %67 = math.rsqrt %66 : vector<168x1xf32>
    %68 = vector.broadcast %67 : vector<168x1xf32> to vector<168x64xf32>
    %69 = arith.mulf %64, %68 : vector<168x64xf32>
    %c0_32 = arith.constant 0 : index
    %c0_33 = arith.constant 0 : index
    %70 = vector.load %arg11[%c0_32, %c0_33] : memref<1x64xf32, #tpu.memory_space<vmem>>, vector<1x64xf32>
    %71 = vector.broadcast %70 : vector<1x64xf32> to vector<168x64xf32>
    %72 = arith.mulf %69, %71 : vector<168x64xf32>
    %c0_34 = arith.constant 0 : index
    %c0_35 = arith.constant 0 : index
    %73 = vector.load %arg12[%c0_34, %c0_35] : memref<1x64xf32, #tpu.memory_space<vmem>>, vector<1x64xf32>
    %74 = vector.broadcast %73 : vector<1x64xf32> to vector<168x64xf32>
    %75 = arith.addf %72, %74 : vector<168x64xf32>
    %c0_36 = arith.constant 0 : index
    %c0_37 = arith.constant 0 : index
    %76 = vector.load %arg13[%c0_36, %c0_37] : memref<168x64xf32, #tpu.memory_space<vmem>>, vector<168x64xf32>
    tpu.vector_store %arg13[%c0_36, %c0_37], %75 {strides = array<i32>} : memref<168x64xf32, #tpu.memory_space<vmem>>, vector<168x64xf32>,
    return
  }
  func.func @transform_0(%arg0: i32) -> (i32, i32) {
    %c0_i32 = arith.constant 0 : i32
    %c0_i32_0 = arith.constant 0 : i32
    %c0_i32_1 = arith.constant 0 : i32
    return %c0_i32, %c0_i32_0 : i32, i32
  }
  func.func @transform_1(%arg0: i32) -> (i32, i32) {
    %c0_i32 = arith.constant 0 : i32
    %c0_i32_0 = arith.constant 0 : i32
    %c0_i32_1 = arith.constant 0 : i32
    return %c0_i32, %c0_i32_0 : i32, i32
  }
  func.func @transform_2(%arg0: i32) -> (i32, i32) {
    %c0_i32 = arith.constant 0 : i32
    %c0_i32_0 = arith.constant 0 : i32
    %c0_i32_1 = arith.constant 0 : i32
    return %c0_i32, %c0_i32_0 : i32, i32
  }
  func.func @transform_3(%arg0: i32) -> (i32, i32) {
    %c0_i32 = arith.constant 0 : i32
    %c0_i32_0 = arith.constant 0 : i32
    %c0_i32_1 = arith.constant 0 : i32
    return %c0_i32, %c0_i32_0 : i32, i32
  }
  func.func @transform_4(%arg0: i32) -> (i32, i32) {
    %c0_i32 = arith.constant 0 : i32
    %c0_i32_0 = arith.constant 0 : i32
    %c0_i32_1 = arith.constant 0 : i32
    return %c0_i32, %c0_i32_0 : i32, i32
  }
  func.func @transform_5(%arg0: i32) -> (i32, i32) {
    %c0_i32 = arith.constant 0 : i32
    %c0_i32_0 = arith.constant 0 : i32
    %c0_i32_1 = arith.constant 0 : i32
    return %c0_i32, %c0_i32_0 : i32, i32
  }
  func.func @transform_6(%arg0: i32) -> (i32, i32) {
    %c0_i32 = arith.constant 0 : i32
    %c0_i32_0 = arith.constant 0 : i32
    %c0_i32_1 = arith.constant 0 : i32
    return %c0_i32, %c0_i32_0 : i32, i32
  }
  func.func @transform_7(%arg0: i32) -> (i32, i32) {
    %c0_i32 = arith.constant 0 : i32
    %c0_i32_0 = arith.constant 0 : i32
    %c0_i32_1 = arith.constant 0 : i32
    return %c0_i32, %c0_i32_0 : i32, i32
  }
  func.func @transform_8(%arg0: i32) -> (i32, i32) {
    %c0_i32 = arith.constant 0 : i32
    %c0_i32_0 = arith.constant 0 : i32
    %c0_i32_1 = arith.constant 0 : i32
    return %c0_i32, %c0_i32_0 : i32, i32
  }
  func.func @transform_9(%arg0: i32) -> (i32, i32) {
    %c0_i32 = arith.constant 0 : i32
    %c0_i32_0 = arith.constant 0 : i32
    %c0_i32_1 = arith.constant 0 : i32
    return %c0_i32, %c0_i32_0 : i32, i32
  }
  func.func @transform_10(%arg0: i32) -> (i32, i32) {
    %c0_i32 = arith.constant 0 : i32
    %c0_i32_0 = arith.constant 0 : i32
    %c0_i32_1 = arith.constant 0 : i32
    return %c0_i32, %c0_i32_0 : i32, i32
  }
  func.func @transform_11(%arg0: i32) -> (i32, i32) {
    %c0_i32 = arith.constant 0 : i32
    %c0_i32_0 = arith.constant 0 : i32
    %c0_i32_1 = arith.constant 0 : i32
    return %c0_i32, %c0_i32_0 : i32, i32
  }
  func.func @transform_12(%arg0: i32) -> (i32, i32) {
    %c0_i32 = arith.constant 0 : i32
    %c0_i32_0 = arith.constant 0 : i32
    %c0_i32_1 = arith.constant 0 : i32
    return %c0_i32, %c0_i32_0 : i32, i32
  }
}

</mosaic_0001>

<llo_original>
// kernel: spatial_encoder_transformer_forward.8
$region0: #{spatial_encoder_transformer_forward.8}
  #allocation0 [shape = 'u32[]', space=smem, size = 0x4, offset = 0x4, fixed_abs, tag = 'smem constant byte address 0x4 - core index']
  #allocation1 [shape = 'u32[144,128]{1,0:T(1,128)}', space=vmem, size = 0x12000, scoped, tag = 'internal scratch']
  %s0 = inlined_call_operand.vmem [shape: f32[2,16,16], index: 0, kind: input, shape index: {}]
  %s1 = inlined_call_operand.vmem [shape: bf16[16,64], index: 1, kind: input, shape index: {}]
  %s2 = inlined_call_operand.vmem [shape: f32[1,64], index: 2, kind: input, shape index: {}]
  %s3 = inlined_call_operand.vmem [shape: f32[1,64], index: 3, kind: input, shape index: {}]
  %s4 = inlined_call_operand.vmem [shape: f32[1,64], index: 4, kind: input, shape index: {}]
  %s5 = inlined_call_operand.vmem [shape: f32[64,64], index: 5, kind: input, shape index: {}]
  %s6 = inlined_call_operand.vmem [shape: f32[2,16,64], index: 6, kind: output, shape index: {}]
  %s7 = sld [smem:[#allocation0]]
  $region57: #{spatial_encoder_transformer_forward.8} parent=0
    _
  %s9 = ssub.s32 1, %s7
  %s10 = scalar_select 0, %s9, %s7
  loop: start=0, step=1, limit=4
  $region2: #{spatial_encoder_transformer_forward.8} parent=0 // loop_pre_header
    _
  $region3: #{spatial_encoder_transformer_forward.8} parent=0 // loop_header
    %s12 = sphi 0, %s16
    %p13 = scmp.ge.s32.totalorder %s12, 4
    %s22 = sphi 0, %s24
    %s25 = sphi 0, %s22
    %s26 = sphi 0, %s25
    %s42 = sphi 0, %s26
    %s46 = sphi 0, %s46
    %s48 = sphi 0, %s46
    %s49 = sphi 0, %s48
    %s63 = sphi 0, %s49
    %s67 = sphi 0, %s67
    %s69 = sphi 0, %s67
    %s70 = sphi 0, %s69
    %s84 = sphi 0, %s70
    %s88 = sphi 0, %s88
    %s90 = sphi 0, %s88
    %s91 = sphi 0, %s90
    %s105 = sphi 0, %s91
    %s109 = sphi 0, %s109
    %s111 = sphi 0, %s109
    %s112 = sphi 0, %s111
    %s126 = sphi 0, %s112
    %s130 = sphi 0, %s130
    %s132 = sphi 0, %s130
    %s133 = sphi 0, %s132
    %s147 = sphi 0, %s133
    %s153 = sphi 0, %s155
    %s156 = sphi 0, %s153
    %s157 = sphi 0, %s156
    %s173 = sphi 0, %s157
  $region4: #{spatial_encoder_transformer_forward.8} parent=0 // loop_header_branch
    %15 = sbr.rel (%p13) target = $region8
  $region5: #{spatial_encoder_transformer_forward.8} parent=0 // loop_body
    %s17 = ssub.s32 %s12, 1
    %s18 = ssub.s32 %s12, 2
    %s19 = sadd.s32 %s12, 1
    %s20 = ssub.s32 %s12, %s19
    %p21 = scmp.eq.s32.totalorder %s20, 0
    %s23 = sadd.s32 %s22, 1
    %s24 = scalar_select %p21, %s22, %s23
    %p27 = pneg %p21
    %p28 = scmp.eq.s32.totalorder %s12, 1
    %p29 = por %p27, %p28
    %p30 = scmp.ne.s32.totalorder %s22, %s25
    %p31 = scmp.eq.s32.totalorder %s12, 0
    %p32 = por %p30, %p31
    %p33 = scmp.ne.s32.totalorder %s22, %s25
    %p34 = scmp.eq.s32.totalorder %s17, 1
    %p35 = por %p33, %p34
    %p36 = scmp.ne.s32.totalorder %s25, %s26
    %p37 = scmp.eq.s32.totalorder %s17, 0
    %p38 = por %p36, %p37
    %p39 = scmp.ne.s32.totalorder %s25, %s26
    %p40 = scmp.eq.s32.totalorder %s18, 1
    %p41 = por %p39, %p40
    %p43 = scmp.ne.s32.totalorder %s26, %s42
    %p44 = scmp.eq.s32.totalorder %s18, 0
    %p45 = por %p43, %p44
    %s47 = sadd.s32 %s46, 1
    %p50 = scmp.eq.s32.totalorder %s12, 1
    %p51 = scmp.ne.s32.totalorder %s46, %s48
    %p52 = scmp.eq.s32.totalorder %s12, 0
    %p53 = por %p51, %p52
    %p54 = scmp.ne.s32.totalorder %s46, %s48
    %p55 = scmp.eq.s32.totalorder %s17, 1
    %p56 = por %p54, %p55
    %p57 = scmp.ne.s32.totalorder %s48, %s49
    %p58 = scmp.eq.s32.totalorder %s17, 0
    %p59 = por %p57, %p58
    %p60 = scmp.ne.s32.totalorder %s48, %s49
    %p61 = scmp.eq.s32.totalorder %s18, 1
    %p62 = por %p60, %p61
    %p64 = scmp.ne.s32.totalorder %s49, %s63
    %p65 = scmp.eq.s32.totalorder %s18, 0
    %p66 = por %p64, %p65
    %s68 = sadd.s32 %s67, 1
    %p71 = scmp.eq.s32.totalorder %s12, 1
    %p72 = scmp.ne.s32.totalorder %s67, %s69
    %p73 = scmp.eq.s32.totalorder %s12, 0
    %p74 = por %p72, %p73
    %p75 = scmp.ne.s32.totalorder %s67, %s69
    %p76 = scmp.eq.s32.totalorder %s17, 1
    %p77 = por %p75, %p76
    %p78 = scmp.ne.s32.totalorder %s69, %s70
    %p79 = scmp.eq.s32.totalorder %s17, 0
    %p80 = por %p78, %p79
    %p81 = scmp.ne.s32.totalorder %s69, %s70
    %p82 = scmp.eq.s32.totalorder %s18, 1
    %p83 = por %p81, %p82
    %p85 = scmp.ne.s32.totalorder %s70, %s84
    %p86 = scmp.eq.s32.totalorder %s18, 0
    %p87 = por %p85, %p86
    %s89 = sadd.s32 %s88, 1
    %p92 = scmp.eq.s32.totalorder %s12, 1
    %p93 = scmp.ne.s32.totalorder %s88, %s90
    %p94 = scmp.eq.s32.totalorder %s12, 0
    %p95 = por %p93, %p94
    %p96 = scmp.ne.s32.totalorder %s88, %s90
    %p97 = scmp.eq.s32.totalorder %s17, 1
    %p98 = por %p96, %p97
    %p99 = scmp.ne.s32.totalorder %s90, %s91
    %p100 = scmp.eq.s32.totalorder %s17, 0
    %p101 = por %p99, %p100
    %p102 = scmp.ne.s32.totalorder %s90, %s91
    %p103 = scmp.eq.s32.totalorder %s18, 1
    %p104 = por %p102, %p103
    %p106 = scmp.ne.s32.totalorder %s91, %s105
    %p107 = scmp.eq.s32.totalorder %s18, 0
    %p108 = por %p106, %p107
    %s110 = sadd.s32 %s109, 1
    %p113 = scmp.eq.s32.totalorder %s12, 1
    %p114 = scmp.ne.s32.totalorder %s109, %s111
    %p115 = scmp.eq.s32.totalorder %s12, 0
    %p116 = por %p114, %p115
    %p117 = scmp.ne.s32.totalorder %s109, %s111
    %p118 = scmp.eq.s32.totalorder %s17, 1
    %p119 = por %p117, %p118
    %p120 = scmp.ne.s32.totalorder %s111, %s112
    %p121 = scmp.eq.s32.totalorder %s17, 0
    %p122 = por %p120, %p121
    %p123 = scmp.ne.s32.totalorder %s111, %s112
    %p124 = scmp.eq.s32.totalorder %s18, 1
    %p125 = por %p123, %p124
    %p127 = scmp.ne.s32.totalorder %s112, %s126
    %p128 = scmp.eq.s32.totalorder %s18, 0
    %p129 = por %p127, %p128
    %s131 = sadd.s32 %s130, 1
    %p134 = scmp.eq.s32.totalorder %s12, 1
    %p135 = scmp.ne.s32.totalorder %s130, %s132
    %p136 = scmp.eq.s32.totalorder %s12, 0
    %p137 = por %p135, %p136
    %p138 = scmp.ne.s32.totalorder %s130, %s132
    %p139 = scmp.eq.s32.totalorder %s17, 1
    %p140 = por %p138, %p139
    %p141 = scmp.ne.s32.totalorder %s132, %s133
    %p142 = scmp.eq.s32.totalorder %s17, 0
    %p143 = por %p141, %p142
    %p144 = scmp.ne.s32.totalorder %s132, %s133
    %p145 = scmp.eq.s32.totalorder %s18, 1
    %p146 = por %p144, %p145
    %p148 = scmp.ne.s32.totalorder %s133, %s147
    %p149 = scmp.eq.s32.totalorder %s18, 0
    %p150 = por %p148, %p149
    %s151 = ssub.s32 %s12, %s19
    %p152 = scmp.eq.s32.totalorder %s151, 0
    %s154 = sadd.s32 %s153, 1
    %s155 = scalar_select %p152, %s153, %s154
    %p158 = pneg %p152
    %p159 = scmp.eq.s32.totalorder %s12, 1
    %p160 = por %p158, %p159
    %p161 = scmp.ne.s32.totalorder %s153, %s156
    %p162 = scmp.eq.s32.totalorder %s12, 0
    %p163 = por %p161, %p162
    %p164 = scmp.ne.s32.totalorder %s153, %s156
    %p165 = scmp.eq.s32.totalorder %s17, 1
    %p166 = por %p164, %p165
    %p167 = scmp.ne.s32.totalorder %s156, %s157
    %p168 = scmp.eq.s32.totalorder %s17, 0
    %p169 = por %p167, %p168
    %p170 = scmp.ne.s32.totalorder %s156, %s157
    %p171 = scmp.eq.s32.totalorder %s18, 1
    %p172 = por %p170, %p171
    %p174 = scmp.ne.s32.totalorder %s157, %s173
    %p175 = scmp.eq.s32.totalorder %s18, 0
    %p176 = por %p174, %p175
    %p177 = scmp.le.s32.totalorder 1, %s12
    %p178 = scmp.lt.s32.totalorder %s12, 3
    %p179 = pnand %p177, %p178
    %p180 = pneg %p179
    // Predicated region
    $region9: #{spatial_encoder_transformer_forward.8} parent=5 // pred_check
      _
    $region10: #{spatial_encoder_transformer_forward.8} parent=5 // pred_check_branch
      %182 = sbr.rel (%p179) target = $region12
    $region11: #{spatial_encoder_transformer_forward.8} parent=5 // pred_region
      %s183 = ssub.s32 %s12, 1
      // Predicated region
      $region13: #{spatial_encoder_transformer_forward.8} parent=11 // pred_check
        %p184 = pneg %p59
      $region14: #{spatial_encoder_transformer_forward.8} parent=11 // pred_check_branch
        %186 = sbr.rel (%p184) target = $region16
      $region15: #{spatial_encoder_transformer_forward.8} parent=11 // pred_region
        _
      $region16: #{spatial_encoder_transformer_forward.8} parent=11 // pred_fallthru
        _
      // Predicated region
      $region17: #{spatial_encoder_transformer_forward.8} parent=11 // pred_check
        %p187 = pneg %p80
      $region18: #{spatial_encoder_transformer_forward.8} parent=11 // pred_check_branch
        %189 = sbr.rel (%p187) target = $region20
      $region19: #{spatial_encoder_transformer_forward.8} parent=11 // pred_region
        _
      $region20: #{spatial_encoder_transformer_forward.8} parent=11 // pred_fallthru
        _
      // Predicated region
      $region21: #{spatial_encoder_transformer_forward.8} parent=11 // pred_check
        %p190 = pneg %p101
      $region22: #{spatial_encoder_transformer_forward.8} parent=11 // pred_check_branch
        %192 = sbr.rel (%p190) target = $region24
      $region23: #{spatial_encoder_transformer_forward.8} parent=11 // pred_region
        _
      $region24: #{spatial_encoder_transformer_forward.8} parent=11 // pred_fallthru
        _
      // Predicated region
      $region25: #{spatial_encoder_transformer_forward.8} parent=11 // pred_check
        %p193 = pneg %p122
      $region26: #{spatial_encoder_transformer_forward.8} parent=11 // pred_check_branch
        %195 = sbr.rel (%p193) target = $region28
      $region27: #{spatial_encoder_transformer_forward.8} parent=11 // pred_region
        _
      $region28: #{spatial_encoder_transformer_forward.8} parent=11 // pred_fallthru
        _
      // Predicated region
      $region29: #{spatial_encoder_transformer_forward.8} parent=11 // pred_check
        %p196 = pneg %p143
      $region30: #{spatial_encoder_transformer_forward.8} parent=11 // pred_check_branch
        %198 = sbr.rel (%p196) target = $region32
      $region31: #{spatial_encoder_transformer_forward.8} parent=11 // pred_region
        _
      $region32: #{spatial_encoder_transformer_forward.8} parent=11 // pred_fallthru
        _
    $region12: #{spatial_encoder_transformer_forward.8} parent=5 // pred_fallthru
      _
    %p199 = scmp.lt.s32.totalorder %s12, 2
    // Predicated region
    $region33: #{spatial_encoder_transformer_forward.8} parent=5 // pred_check
      %p200 = pneg %p199
    $region34: #{spatial_encoder_transformer_forward.8} parent=5 // pred_check_branch
      %202 = sbr.rel (%p200) target = $region36
    $region35: #{spatial_encoder_transformer_forward.8} parent=5 // pred_region
      // Predicated region
      $region37: #{spatial_encoder_transformer_forward.8} parent=35 // pred_check
        %p203 = pneg %p32
      $region38: #{spatial_encoder_transformer_forward.8} parent=35 // pred_check_branch
        %205 = sbr.rel (%p203) target = $region40
      $region39: #{spatial_encoder_transformer_forward.8} parent=35 // pred_region
        %p206 = scmp.lt.s32.totalorder %s12, 1
        %s207 = scalar_select %p206, %s12, 1
        %s208 = smul.addr %s207, 2
        %s209 = smul.addr %s208, 8
        %s210 = scalar_lea.vmem %s0, %s209
      $region40: #{spatial_encoder_transformer_forward.8} parent=35 // pred_fallthru
        _
    $region36: #{spatial_encoder_transformer_forward.8} parent=5 // pred_fallthru
      _
    %p211 = scmp.le.s32.totalorder 1, %s12
    %p212 = scmp.lt.s32.totalorder %s12, 3
    %p213 = pnand %p211, %p212
    %p214 = pneg %p213
    // Predicated region
    $region41: #{spatial_encoder_transformer_forward.8} parent=5 // pred_check
      _
    $region42: #{spatial_encoder_transformer_forward.8} parent=5 // pred_check_branch
      %216 = sbr.rel (%p213) target = $region44
    $region43: #{spatial_encoder_transformer_forward.8} parent=5 // pred_region
      %s217 = ssub.s32 %s12, 1
      %p218 = scmp.lt.s32.totalorder %s17, 1
      %s219 = scalar_select %p218, %s17, 1
      %s220 = smul.addr %s219, 2
      %s221 = smul.addr %s220, 8
      %s222 = scalar_lea.vmem %s0, %s221
      %p223 = pneg %p38
      %p224 = pneg %p35
      %p225 = pneg %p59
      %p226 = pneg %p56
      %p227 = pneg %p80
      %p228 = pneg %p77
      %p229 = pneg %p101
      %p230 = pneg %p98
      %p231 = pneg %p122
      %p232 = pneg %p119
      %p233 = pneg %p143
      %p234 = pneg %p140
      %p235 = pneg %p169
      %p236 = pneg %p166
      %p237 = scmp.lt.s32.totalorder %s17, 1
      %s238 = scalar_select %p237, %s17, 1
      %s239 = smul.addr %s238, 2
      %s240 = smul.addr %s239, 8
      %s241 = scalar_lea.vmem %s6, %s240
      %p242 = scmp.lt.s32.totalorder %s17, 1
      %s243 = scalar_select %p242, %s17, 1
      %s244 = smul.addr %s243, 2
      %s245 = smul.addr %s244, 8
      %s246 = scalar_lea.vmem %s0, %s245
      %p247 = scmp.lt.s32.totalorder %s17, 1
      %s248 = scalar_select %p247, %s17, 1
      %s249 = smul.addr %s248, 2
      %s250 = smul.addr %s249, 8
      %s251 = scalar_lea.vmem %s6, %s250
      %v253 = vld [vmem:[%s246] sm:$0xff]
      %v254 = vld [vmem:[%s246 + $0x8] sm:$0xff]
      %v255 = vpack.c.bf16 %v254, %v253
      %v256 = vld [vmem:[%s1] sm:$0xf]
      %v257 = vld [vmem:[%s1 + $0x4] sm:$0xf]
      %v258 = vld [vmem:[%s2] sm:$0x1]
      %v260 = vlaneseq
      %v261 = vshrl.u32 %v260, 7
      %v262 = vsub.s32 0, %v261
      %v263 = vrot.slane %v258, %v262
      %v267 = vunpack.c.l.b16 %v256
      %v268 = vunpack.c.l.b16 %v257
      %v269 = vpack.c.b16 %v268, %v267
      %vm271 = vcmask 130048
      %v273 = vsel %vm271, %v255, 0
      %275 = vmatprep.subr.bf16.mxu0 0
      %276 = vmatpush1.bf16.msra.mxu0 %v269
      %277 = vmatprep.subr.bf16.mxu0 0
      %278 = vmatpush1.bf16.msra.mxu0 0
      %279 = vmatprep.subr.bf16.mxu0 0
      %280 = vmatpush1.bf16.msra.mxu0 0
      %281 = vmatprep.subr.bf16.mxu0 0
      %282 = vmatpush1.bf16.msra.mxu0 0
      %283 = vmatprep.subr.bf16.mxu0 0
      %284 = vmatpush1.bf16.msra.mxu0 0
      %285 = vmatprep.subr.bf16.mxu0 0
      %286 = vmatpush1.bf16.msra.mxu0 0
      %287 = vmatprep.subr.bf16.mxu0 0
      %288 = vmatpush1.bf16.msra.mxu0 0
      %289 = vmatprep.subr.bf16.mxu0 0
      %290 = vmatpush1.bf16.msra.mxu0 0
      %291 = vmatprep.subr.bf16.mxu0 0
      %292 = vmatpush1.bf16.msra.mxu0 0
      %293 = vmatprep.subr.bf16.mxu0 0
      %294 = vmatpush1.bf16.msra.mxu0 0
      %295 = vmatprep.subr.bf16.mxu0 0
      %296 = vmatpush1.bf16.msra.mxu0 0
      %297 = vmatprep.subr.bf16.mxu0 0
      %298 = vmatpush1.bf16.msra.mxu0 0
      %299 = vmatprep.subr.bf16.mxu0 0
      %300 = vmatpush1.bf16.msra.mxu0 0
      %301 = vmatprep.subr.bf16.mxu0 0
      %302 = vmatpush1.bf16.msra.mxu0 0
      %303 = vmatprep.subr.bf16.mxu0 0
      %304 = vmatpush1.bf16.msra.mxu0 0
      %305 = vmatprep.subr.bf16.mxu0 0
      %306 = vmatpush1.bf16.msra.mxu0 0
      %307 = vmatprep.mubr.bf16.mxu0 0
      %308 = vmatmul.mubr.bf16.gmra.mrb[0].mxu0 %v273
      %v309 = vpop.f32.mrb[0].mxu0
      %v310 = vadd.f32 %v263, %v309
      %v311 = vpop.f32.mrb[0].mxu0
      %v312 = vpop.f32.mrb[0].mxu0
      %v313 = vadd.f32 %v263, %v312
      %v314 = vpop.f32.mrb[0].mxu0
      %315 = vdwg.mxu0
      %vm316 = vcmask 523264
      %v317 = vsel %vm316, %v310, 0.0
      %v318 = vsel %vm316, %v313, 0.0
      %v319 = vadd.f32 %v317, %v318
      %v320 = vrot.slane %v319, 4
      %v321 = vadd.f32 %v319, %v320
      %v322 = vrot.slane %v321, 2
      %v323 = vadd.f32 %v321, %v322
      %v324 = vrot.slane %v323, 1
      %v325 = vadd.f32 %v323, %v324
      %v326 = vrcp.pop 16.0
      %v327 = vmul.f32 %v325, %v326
      %v328 = vld [vmem:[%s5] sm:$0xff]
      %v329 = vld [vmem:[%s5 + $0x8] sm:$0xff]
      %v330 = vld [vmem:[%s5 + $0x10] sm:$0xff]
      %v331 = vld [vmem:[%s5 + $0x18] sm:$0xff]
      %v332 = vld [vmem:[%s5 + $0x20] sm:$0xff]
      %v333 = vld [vmem:[%s5 + $0x28] sm:$0xff]
      %v334 = vld [vmem:[%s5 + $0x30] sm:$0xff]
      %v335 = vld [vmem:[%s5 + $0x38] sm:$0xff]
      %v337 = vsel %vm316, %v327, 0
      %339 = vmatprep.subr.mxu0 0.0
      %340 = vmatpush1.msra.mxu0 %v328
      %341 = vmatprep.subr.mxu0 0.0
      %342 = vmatpush1.msra.mxu0 %v329
      %343 = vmatprep.subr.mxu0 0.0
      %344 = vmatpush1.msra.mxu0 %v330
      %345 = vmatprep.subr.mxu0 0.0
      %346 = vmatpush1.msra.mxu0 %v331
      %347 = vmatprep.subr.mxu0 0.0
      %348 = vmatpush1.msra.mxu0 %v332
      %349 = vmatprep.subr.mxu0 0.0
      %350 = vmatpush1.msra.mxu0 %v333
      %351 = vmatprep.subr.mxu0 0.0
      %352 = vmatpush1.msra.mxu0 %v334
      %353 = vmatprep.subr.mxu0 0.0
      %354 = vmatpush1.msra.mxu0 %v335
      %355 = vmatprep.subr.mxu0 0.0
      %356 = vmatpush1.msra.mxu0 0.0
      %357 = vmatprep.subr.mxu0 0.0
      %358 = vmatpush1.msra.mxu0 0.0
      %359 = vmatprep.subr.mxu0 0.0
      %360 = vmatpush1.msra.mxu0 0.0
      %361 = vmatprep.subr.mxu0 0.0
      %362 = vmatpush1.msra.mxu0 0.0
      %363 = vmatprep.subr.mxu0 0.0
      %364 = vmatpush1.msra.mxu0 0.0
      %365 = vmatprep.subr.mxu0 0.0
      %366 = vmatpush1.msra.mxu0 0.0
      %367 = vmatprep.subr.mxu0 0.0
      %368 = vmatpush1.msra.mxu0 0.0
      %369 = vmatprep.subr.mxu0 0.0
      %370 = vmatpush1.msra.mxu0 0.0
      %371 = vmatprep.subr.mxu0 0.0
      %372 = vmatpush1.msra.mxu0 0.0
      %373 = vmatprep.subr.mxu0 0.0
      %374 = vmatpush1.msra.mxu0 0.0
      %375 = vmatprep.subr.mxu0 0.0
      %376 = vmatpush1.msra.mxu0 0.0
      %377 = vmatprep.subr.mxu0 0.0
      %378 = vmatpush1.msra.mxu0 0.0
      %379 = vmatprep.subr.mxu0 0.0
      %380 = vmatpush1.msra.mxu0 0.0
      %381 = vmatprep.subr.mxu0 0.0
      %382 = vmatpush1.msra.mxu0 0.0
      %383 = vmatprep.subr.mxu0 0.0
      %384 = vmatpush1.msra.mxu0 0.0
      %385 = vmatprep.subr.mxu0 0.0
      %386 = vmatpush1.msra.mxu0 0.0
      %387 = vmatprep.subr.mxu0 0.0
      %388 = vmatpush1.msra.mxu0 0.0
      %389 = vmatprep.subr.mxu0 0.0
      %390 = vmatpush1.msra.mxu0 0.0
      %391 = vmatprep.subr.mxu0 0.0
      %392 = vmatpush1.msra.mxu0 0.0
      %393 = vmatprep.subr.mxu0 0.0
      %394 = vmatpush1.msra.mxu0 0.0
      %395 = vmatprep.subr.mxu0 0.0
      %396 = vmatpush1.msra.mxu0 0.0
      %397 = vmatprep.subr.mxu0 0.0
      %398 = vmatpush1.msra.mxu0 0.0
      %399 = vmatprep.subr.mxu0 0.0
      %400 = vmatpush1.msra.mxu0 0.0
      %401 = vmatprep.subr.mxu0 0.0
      %402 = vmatpush1.msra.mxu0 0.0
      %403 = vmatprep.mubr.f32.mxu0 0.0
      %404 = vmatmul.mubr.f32.gmra.mrb[0].mxu0 %v337
      %v405 = vpop.f32.mrb[0].mxu0
      %v406 = vadd.f32 0.0, %v405
      %v407 = vpop.f32.mrb[0].mxu0
      %408 = vdwg.mxu0
      %v409 = vlaneseq
      %v410 = vshrl.u32 %v409, 7
      %v411 = vsub.s32 0, %v410
      %v412 = vrot.slane %v406, %v411
      %v413 = vsub.f32 %v310, %v412
      %v414 = vsub.f32 %v313, %v412
      %v415 = vmul.f32 %v413, %v413
      %v416 = vmul.f32 %v414, %v414
      %v417 = vsel %vm316, %v415, 0.0
      %v418 = vsel %vm316, %v416, 0.0
      %v419 = vadd.f32 %v417, %v418
      %v420 = vrot.slane %v419, 4
      %v421 = vadd.f32 %v419, %v420
      %v422 = vrot.slane %v421, 2
      %v423 = vadd.f32 %v421, %v422
      %v424 = vrot.slane %v423, 1
      %v425 = vadd.f32 %v423, %v424
      %v426 = vmul.f32 %v425, %v326
      %v428 = vsel %vm316, %v426, 0
      %430 = vmatprep.subr.mxu0 0.0
      %431 = vmatpush1.msra.mxu0 %v328
      %432 = vmatprep.subr.mxu0 0.0
      %433 = vmatpush1.msra.mxu0 %v329
      %434 = vmatprep.subr.mxu0 0.0
      %435 = vmatpush1.msra.mxu0 %v330
      %436 = vmatprep.subr.mxu0 0.0
      %437 = vmatpush1.msra.mxu0 %v331
      %438 = vmatprep.subr.mxu0 0.0
      %439 = vmatpush1.msra.mxu0 %v332
      %440 = vmatprep.subr.mxu0 0.0
      %441 = vmatpush1.msra.mxu0 %v333
      %442 = vmatprep.subr.mxu0 0.0
      %443 = vmatpush1.msra.mxu0 %v334
      %444 = vmatprep.subr.mxu0 0.0
      %445 = vmatpush1.msra.mxu0 %v335
      %446 = vmatprep.subr.mxu0 0.0
      %447 = vmatpush1.msra.mxu0 0.0
      %448 = vmatprep.subr.mxu0 0.0
      %449 = vmatpush1.msra.mxu0 0.0
      %450 = vmatprep.subr.mxu0 0.0
      %451 = vmatpush1.msra.mxu0 0.0
      %452 = vmatprep.subr.mxu0 0.0
      %453 = vmatpush1.msra.mxu0 0.0
      %454 = vmatprep.subr.mxu0 0.0
      %455 = vmatpush1.msra.mxu0 0.0
      %456 = vmatprep.subr.mxu0 0.0
      %457 = vmatpush1.msra.mxu0 0.0
      %458 = vmatprep.subr.mxu0 0.0
      %459 = vmatpush1.msra.mxu0 0.0
      %460 = vmatprep.subr.mxu0 0.0
      %461 = vmatpush1.msra.mxu0 0.0
      %462 = vmatprep.subr.mxu0 0.0
      %463 = vmatpush1.msra.mxu0 0.0
      %464 = vmatprep.subr.mxu0 0.0
      %465 = vmatpush1.msra.mxu0 0.0
      %466 = vmatprep.subr.mxu0 0.0
      %467 = vmatpush1.msra.mxu0 0.0
      %468 = vmatprep.subr.mxu0 0.0
      %469 = vmatpush1.msra.mxu0 0.0
      %470 = vmatprep.subr.mxu0 0.0
      %471 = vmatpush1.msra.mxu0 0.0
      %472 = vmatprep.subr.mxu0 0.0
      %473 = vmatpush1.msra.mxu0 0.0
      %474 = vmatprep.subr.mxu0 0.0
      %475 = vmatpush1.msra.mxu0 0.0
      %476 = vmatprep.subr.mxu0 0.0
      %477 = vmatpush1.msra.mxu0 0.0
      %478 = vmatprep.subr.mxu0 0.0
      %479 = vmatpush1.msra.mxu0 0.0
      %480 = vmatprep.subr.mxu0 0.0
      %481 = vmatpush1.msra.mxu0 0.0
      %482 = vmatprep.subr.mxu0 0.0
      %483 = vmatpush1.msra.mxu0 0.0
      %484 = vmatprep.subr.mxu0 0.0
      %485 = vmatpush1.msra.mxu0 0.0
      %486 = vmatprep.subr.mxu0 0.0
      %487 = vmatpush1.msra.mxu0 0.0
      %488 = vmatprep.subr.mxu0 0.0
      %489 = vmatpush1.msra.mxu0 0.0
      %490 = vmatprep.subr.mxu0 0.0
      %491 = vmatpush1.msra.mxu0 0.0
      %492 = vmatprep.subr.mxu0 0.0
      %493 = vmatpush1.msra.mxu0 0.0
      %494 = vmatprep.mubr.f32.mxu0 0.0
      %495 = vmatmul.mubr.f32.gmra.mrb[0].mxu0 %v428
      %v496 = vpop.f32.mrb[0].mxu0
      %v497 = vadd.f32 1e-05, %v496
      %v498 = vpop.f32.mrb[0].mxu0
      %499 = vdwg.mxu0
      %v500 = vrsqrt.pop %v497
      %v501 = vlaneseq
      %v502 = vshrl.u32 %v501, 7
      %v503 = vsub.s32 0, %v502
      %v504 = vrot.slane %v500, %v503
      %v505 = vmul.f32 %v413, %v504
      %v506 = vmul.f32 %v414, %v504
      %v507 = vld [vmem:[%s3] sm:$0x1]
      %v509 = vlaneseq
      %v510 = vshrl.u32 %v509, 7
      %v511 = vsub.s32 0, %v510
      %v512 = vrot.slane %v507, %v511
      %v514 = vmul.f32 %v505, %v512
      %v515 = vmul.f32 %v506, %v512
      %v516 = vld [vmem:[%s4] sm:$0x1]
      %v518 = vlaneseq
      %v519 = vshrl.u32 %v518, 7
      %v520 = vsub.s32 0, %v519
      %v521 = vrot.slane %v516, %v520
      %v523 = vadd.f32 %v514, %v521
      %v524 = vadd.f32 %v515, %v521
      %525 = vst.msk [vmem:[%s251] sm:$0xff] %vm316, %v523
      %526 = vst.msk [vmem:[%s251 + $0x8] sm:$0xff] %vm316, %v524
      %p527 = scmp.lt.s32.totalorder %s17, 1
      %s528 = scalar_select %p527, %s17, 1
      %s529 = smul.addr %s528, 2
      %s530 = smul.addr %s529, 8
      %s531 = scalar_lea.vmem %s6, %s530
      // Predicated region
      $region45: #{spatial_encoder_transformer_forward.8} parent=43 // pred_check
        %p532 = pneg %p166
      $region46: #{spatial_encoder_transformer_forward.8} parent=43 // pred_check_branch
        %534 = sbr.rel (%p532) target = $region48
      $region47: #{spatial_encoder_transformer_forward.8} parent=43 // pred_region
        _
      $region48: #{spatial_encoder_transformer_forward.8} parent=43 // pred_fallthru
        _
    $region44: #{spatial_encoder_transformer_forward.8} parent=5 // pred_fallthru
      _
    %p535 = scmp.le.s32.totalorder 2, %s12
    // Predicated region
    $region49: #{spatial_encoder_transformer_forward.8} parent=5 // pred_check
      %p536 = pneg %p535
    $region50: #{spatial_encoder_transformer_forward.8} parent=5 // pred_check_branch
      %538 = sbr.rel (%p536) target = $region52
    $region51: #{spatial_encoder_transformer_forward.8} parent=5 // pred_region
      %s539 = ssub.s32 %s12, 2
      // Predicated region
      $region53: #{spatial_encoder_transformer_forward.8} parent=51 // pred_check
        %p540 = pneg %p172
      $region54: #{spatial_encoder_transformer_forward.8} parent=51 // pred_check_branch
        %542 = sbr.rel (%p540) target = $region56
      $region55: #{spatial_encoder_transformer_forward.8} parent=51 // pred_region
        %p543 = scmp.lt.s32.totalorder %s18, 1
        %s544 = scalar_select %p543, %s18, 1
        %s545 = smul.addr %s544, 2
        %s546 = smul.addr %s545, 8
        %s547 = scalar_lea.vmem %s6, %s546
      $region56: #{spatial_encoder_transformer_forward.8} parent=51 // pred_fallthru
        _
    $region52: #{spatial_encoder_transformer_forward.8} parent=5 // pred_fallthru
      _
  $region6: #{spatial_encoder_transformer_forward.8} parent=0 // loop_footer
    %s16 = sadd.s32 1, %s12
  $region7: #{spatial_encoder_transformer_forward.8} parent=0 // loop_footer_branch
    %11 = sbr.rel target = $region3
  $region8: #{spatial_encoder_transformer_forward.8} parent=0 // loop_exit
    _

// kernel: spatial_encoder_transformer_forward.9
$region0: #{spatial_encoder_transformer_forward.9}
  #allocation0 [shape = 'u32[]', space=smem, size = 0x4, offset = 0x4, fixed_abs, tag = 'smem constant byte address 0x4 - core index']
  #allocation1 [shape = 'u32[144,128]{1,0:T(1,128)}', space=vmem, size = 0x12000, scoped, tag = 'internal scratch']
  %s0 = inlined_call_operand.vmem [shape: f32[2,4,144], index: 0, kind: input, shape index: {}]
  %s1 = inlined_call_operand.vmem [shape: bf16[144,64], index: 1, kind: input, shape index: {}]
  %s2 = inlined_call_operand.vmem [shape: f32[1,64], index: 2, kind: input, shape index: {}]
  %s3 = inlined_call_operand.vmem [shape: f32[1,64], index: 3, kind: input, shape index: {}]
  %s4 = inlined_call_operand.vmem [shape: f32[1,64], index: 4, kind: input, shape index: {}]
  %s5 = inlined_call_operand.vmem [shape: f32[64,64], index: 5, kind: input, shape index: {}]
  %s6 = inlined_call_operand.vmem [shape: f32[2,4,64], index: 6, kind: output, shape index: {}]
  %s7 = sld [smem:[#allocation0]]
  $region57: #{spatial_encoder_transformer_forward.9} parent=0
    _
  %s9 = ssub.s32 1, %s7
  %s10 = scalar_select 0, %s9, %s7
  loop: start=0, step=1, limit=4
  $region2: #{spatial_encoder_transformer_forward.9} parent=0 // loop_pre_header
    _
  $region3: #{spatial_encoder_transformer_forward.9} parent=0 // loop_header
    %s12 = sphi 0, %s16
    %p13 = scmp.ge.s32.totalorder %s12, 4
    %s22 = sphi 0, %s24
    %s25 = sphi 0, %s22
    %s26 = sphi 0, %s25
    %s42 = sphi 0, %s26
    %s46 = sphi 0, %s46
    %s48 = sphi 0, %s46
    %s49 = sphi 0, %s48
    %s63 = sphi 0, %s49
    %s67 = sphi 0, %s67
    %s69 = sphi 0, %s67
    %s70 = sphi 0, %s69
    %s84 = sphi 0, %s70
    %s88 = sphi 0, %s88
    %s90 = sphi 0, %s88
    %s91 = sphi 0, %s90
    %s105 = sphi 0, %s91
    %s109 = sphi 0, %s109
    %s111 = sphi 0, %s109
    %s112 = sphi 0, %s111
    %s126 = sphi 0, %s112
    %s130 = sphi 0, %s130
    %s132 = sphi 0, %s130
    %s133 = sphi 0, %s132
    %s147 = sphi 0, %s133
    %s153 = sphi 0, %s155
    %s156 = sphi 0, %s153
    %s157 = sphi 0, %s156
    %s173 = sphi 0, %s157
  $region4: #{spatial_encoder_transformer_forward.9} parent=0 // loop_header_branch
    %15 = sbr.rel (%p13) target = $region8
  $region5: #{spatial_encoder_transformer_forward.9} parent=0 // loop_body
    %s17 = ssub.s32 %s12, 1
    %s18 = ssub.s32 %s12, 2
    %s19 = sadd.s32 %s12, 1
    %s20 = ssub.s32 %s12, %s19
    %p21 = scmp.eq.s32.totalorder %s20, 0
    %s23 = sadd.s32 %s22, 1
    %s24 = scalar_select %p21, %s22, %s23
    %p27 = pneg %p21
    %p28 = scmp.eq.s32.totalorder %s12, 1
    %p29 = por %p27, %p28
    %p30 = scmp.ne.s32.totalorder %s22, %s25
    %p31 = scmp.eq.s32.totalorder %s12, 0
    %p32 = por %p30, %p31
    %p33 = scmp.ne.s32.totalorder %s22, %s25
    %p34 = scmp.eq.s32.totalorder %s17, 1
    %p35 = por %p33, %p34
    %p36 = scmp.ne.s32.totalorder %s25, %s26
    %p37 = scmp.eq.s32.totalorder %s17, 0
    %p38 = por %p36, %p37
    %p39 = scmp.ne.s32.totalorder %s25, %s26
    %p40 = scmp.eq.s32.totalorder %s18, 1
    %p41 = por %p39, %p40
    %p43 = scmp.ne.s32.totalorder %s26, %s42
    %p44 = scmp.eq.s32.totalorder %s18, 0
    %p45 = por %p43, %p44
    %s47 = sadd.s32 %s46, 1
    %p50 = scmp.eq.s32.totalorder %s12, 1
    %p51 = scmp.ne.s32.totalorder %s46, %s48
    %p52 = scmp.eq.s32.totalorder %s12, 0
    %p53 = por %p51, %p52
    %p54 = scmp.ne.s32.totalorder %s46, %s48
    %p55 = scmp.eq.s32.totalorder %s17, 1
    %p56 = por %p54, %p55
    %p57 = scmp.ne.s32.totalorder %s48, %s49
    %p58 = scmp.eq.s32.totalorder %s17, 0
    %p59 = por %p57, %p58
    %p60 = scmp.ne.s32.totalorder %s48, %s49
    %p61 = scmp.eq.s32.totalorder %s18, 1
    %p62 = por %p60, %p61
    %p64 = scmp.ne.s32.totalorder %s49, %s63
    %p65 = scmp.eq.s32.totalorder %s18, 0
    %p66 = por %p64, %p65
    %s68 = sadd.s32 %s67, 1
    %p71 = scmp.eq.s32.totalorder %s12, 1
    %p72 = scmp.ne.s32.totalorder %s67, %s69
    %p73 = scmp.eq.s32.totalorder %s12, 0
    %p74 = por %p72, %p73
    %p75 = scmp.ne.s32.totalorder %s67, %s69
    %p76 = scmp.eq.s32.totalorder %s17, 1
    %p77 = por %p75, %p76
    %p78 = scmp.ne.s32.totalorder %s69, %s70
    %p79 = scmp.eq.s32.totalorder %s17, 0
    %p80 = por %p78, %p79
    %p81 = scmp.ne.s32.totalorder %s69, %s70
    %p82 = scmp.eq.s32.totalorder %s18, 1
    %p83 = por %p81, %p82
    %p85 = scmp.ne.s32.totalorder %s70, %s84
    %p86 = scmp.eq.s32.totalorder %s18, 0
    %p87 = por %p85, %p86
    %s89 = sadd.s32 %s88, 1
    %p92 = scmp.eq.s32.totalorder %s12, 1
    %p93 = scmp.ne.s32.totalorder %s88, %s90
    %p94 = scmp.eq.s32.totalorder %s12, 0
    %p95 = por %p93, %p94
    %p96 = scmp.ne.s32.totalorder %s88, %s90
    %p97 = scmp.eq.s32.totalorder %s17, 1
    %p98 = por %p96, %p97
    %p99 = scmp.ne.s32.totalorder %s90, %s91
    %p100 = scmp.eq.s32.totalorder %s17, 0
    %p101 = por %p99, %p100
    %p102 = scmp.ne.s32.totalorder %s90, %s91
    %p103 = scmp.eq.s32.totalorder %s18, 1
    %p104 = por %p102, %p103
    %p106 = scmp.ne.s32.totalorder %s91, %s105
    %p107 = scmp.eq.s32.totalorder %s18, 0
    %p108 = por %p106, %p107
    %s110 = sadd.s32 %s109, 1
    %p113 = scmp.eq.s32.totalorder %s12, 1
    %p114 = scmp.ne.s32.totalorder %s109, %s111
    %p115 = scmp.eq.s32.totalorder %s12, 0
    %p116 = por %p114, %p115
    %p117 = scmp.ne.s32.totalorder %s109, %s111
    %p118 = scmp.eq.s32.totalorder %s17, 1
    %p119 = por %p117, %p118
    %p120 = scmp.ne.s32.totalorder %s111, %s112
    %p121 = scmp.eq.s32.totalorder %s17, 0
    %p122 = por %p120, %p121
    %p123 = scmp.ne.s32.totalorder %s111, %s112
    %p124 = scmp.eq.s32.totalorder %s18, 1
    %p125 = por %p123, %p124
    %p127 = scmp.ne.s32.totalorder %s112, %s126
    %p128 = scmp.eq.s32.totalorder %s18, 0
    %p129 = por %p127, %p128
    %s131 = sadd.s32 %s130, 1
    %p134 = scmp.eq.s32.totalorder %s12, 1
    %p135 = scmp.ne.s32.totalorder %s130, %s132
    %p136 = scmp.eq.s32.totalorder %s12, 0
    %p137 = por %p135, %p136
    %p138 = scmp.ne.s32.totalorder %s130, %s132
    %p139 = scmp.eq.s32.totalorder %s17, 1
    %p140 = por %p138, %p139
    %p141 = scmp.ne.s32.totalorder %s132, %s133
    %p142 = scmp.eq.s32.totalorder %s17, 0
    %p143 = por %p141, %p142
    %p144 = scmp.ne.s32.totalorder %s132, %s133
    %p145 = scmp.eq.s32.totalorder %s18, 1
    %p146 = por %p144, %p145
    %p148 = scmp.ne.s32.totalorder %s133, %s147
    %p149 = scmp.eq.s32.totalorder %s18, 0
    %p150 = por %p148, %p149
    %s151 = ssub.s32 %s12, %s19
    %p152 = scmp.eq.s32.totalorder %s151, 0
    %s154 = sadd.s32 %s153, 1
    %s155 = scalar_select %p152, %s153, %s154
    %p158 = pneg %p152
    %p159 = scmp.eq.s32.totalorder %s12, 1
    %p160 = por %p158, %p159
    %p161 = scmp.ne.s32.totalorder %s153, %s156
    %p162 = scmp.eq.s32.totalorder %s12, 0
    %p163 = por %p161, %p162
    %p164 = scmp.ne.s32.totalorder %s153, %s156
    %p165 = scmp.eq.s32.totalorder %s17, 1
    %p166 = por %p164, %p165
    %p167 = scmp.ne.s32.totalorder %s156, %s157
    %p168 = scmp.eq.s32.totalorder %s17, 0
    %p169 = por %p167, %p168
    %p170 = scmp.ne.s32.totalorder %s156, %s157
    %p171 = scmp.eq.s32.totalorder %s18, 1
    %p172 = por %p170, %p171
    %p174 = scmp.ne.s32.totalorder %s157, %s173
    %p175 = scmp.eq.s32.totalorder %s18, 0
    %p176 = por %p174, %p175
    %p177 = scmp.le.s32.totalorder 1, %s12
    %p178 = scmp.lt.s32.totalorder %s12, 3
    %p179 = pnand %p177, %p178
    %p180 = pneg %p179
    // Predicated region
    $region9: #{spatial_encoder_transformer_forward.9} parent=5 // pred_check
      _
    $region10: #{spatial_encoder_transformer_forward.9} parent=5 // pred_check_branch
      %182 = sbr.rel (%p179) target = $region12
    $region11: #{spatial_encoder_transformer_forward.9} parent=5 // pred_region
      %s183 = ssub.s32 %s12, 1
      // Predicated region
      $region13: #{spatial_encoder_transformer_forward.9} parent=11 // pred_check
        %p184 = pneg %p59
      $region14: #{spatial_encoder_transformer_forward.9} parent=11 // pred_check_branch
        %186 = sbr.rel (%p184) target = $region16
      $region15: #{spatial_encoder_transformer_forward.9} parent=11 // pred_region
        _
      $region16: #{spatial_encoder_transformer_forward.9} parent=11 // pred_fallthru
        _
      // Predicated region
      $region17: #{spatial_encoder_transformer_forward.9} parent=11 // pred_check
        %p187 = pneg %p80
      $region18: #{spatial_encoder_transformer_forward.9} parent=11 // pred_check_branch
        %189 = sbr.rel (%p187) target = $region20
      $region19: #{spatial_encoder_transformer_forward.9} parent=11 // pred_region
        _
      $region20: #{spatial_encoder_transformer_forward.9} parent=11 // pred_fallthru
        _
      // Predicated region
      $region21: #{spatial_encoder_transformer_forward.9} parent=11 // pred_check
        %p190 = pneg %p101
      $region22: #{spatial_encoder_transformer_forward.9} parent=11 // pred_check_branch
        %192 = sbr.rel (%p190) target = $region24
      $region23: #{spatial_encoder_transformer_forward.9} parent=11 // pred_region
        _
      $region24: #{spatial_encoder_transformer_forward.9} parent=11 // pred_fallthru
        _
      // Predicated region
      $region25: #{spatial_encoder_transformer_forward.9} parent=11 // pred_check
        %p193 = pneg %p122
      $region26: #{spatial_encoder_transformer_forward.9} parent=11 // pred_check_branch
        %195 = sbr.rel (%p193) target = $region28
      $region27: #{spatial_encoder_transformer_forward.9} parent=11 // pred_region
        _
      $region28: #{spatial_encoder_transformer_forward.9} parent=11 // pred_fallthru
        _
      // Predicated region
      $region29: #{spatial_encoder_transformer_forward.9} parent=11 // pred_check
        %p196 = pneg %p143
      $region30: #{spatial_encoder_transformer_forward.9} parent=11 // pred_check_branch
        %198 = sbr.rel (%p196) target = $region32
      $region31: #{spatial_encoder_transformer_forward.9} parent=11 // pred_region
        _
      $region32: #{spatial_encoder_transformer_forward.9} parent=11 // pred_fallthru
        _
    $region12: #{spatial_encoder_transformer_forward.9} parent=5 // pred_fallthru
      _
    %p199 = scmp.lt.s32.totalorder %s12, 2
    // Predicated region
    $region33: #{spatial_encoder_transformer_forward.9} parent=5 // pred_check
      %p200 = pneg %p199
    $region34: #{spatial_encoder_transformer_forward.9} parent=5 // pred_check_branch
      %202 = sbr.rel (%p200) target = $region36
    $region35: #{spatial_encoder_transformer_forward.9} parent=5 // pred_region
      // Predicated region
      $region37: #{spatial_encoder_transformer_forward.9} parent=35 // pred_check
        %p203 = pneg %p32
      $region38: #{spatial_encoder_transformer_forward.9} parent=35 // pred_check_branch
        %205 = sbr.rel (%p203) target = $region40
      $region39: #{spatial_encoder_transformer_forward.9} parent=35 // pred_region
        %p206 = scmp.lt.s32.totalorder %s12, 1
        %s207 = scalar_select %p206, %s12, 1
        %s208 = smul.addr %s207, 2
        %s209 = smul.addr %s208, 4
        %s210 = scalar_lea.vmem %s0, %s209
      $region40: #{spatial_encoder_transformer_forward.9} parent=35 // pred_fallthru
        _
    $region36: #{spatial_encoder_transformer_forward.9} parent=5 // pred_fallthru
      _
    %p211 = scmp.le.s32.totalorder 1, %s12
    %p212 = scmp.lt.s32.totalorder %s12, 3
    %p213 = pnand %p211, %p212
    %p214 = pneg %p213
    // Predicated region
    $region41: #{spatial_encoder_transformer_forward.9} parent=5 // pred_check
      _
    $region42: #{spatial_encoder_transformer_forward.9} parent=5 // pred_check_branch
      %216 = sbr.rel (%p213) target = $region44
    $region43: #{spatial_encoder_transformer_forward.9} parent=5 // pred_region
      %s217 = ssub.s32 %s12, 1
      %p218 = scmp.lt.s32.totalorder %s17, 1
      %s219 = scalar_select %p218, %s17, 1
      %s220 = smul.addr %s219, 2
      %s221 = smul.addr %s220, 4
      %s222 = scalar_lea.vmem %s0, %s221
      %p223 = pneg %p38
      %p224 = pneg %p35
      %p225 = pneg %p59
      %p226 = pneg %p56
      %p227 = pneg %p80
      %p228 = pneg %p77
      %p229 = pneg %p101
      %p230 = pneg %p98
      %p231 = pneg %p122
      %p232 = pneg %p119
      %p233 = pneg %p143
      %p234 = pneg %p140
      %p235 = pneg %p169
      %p236 = pneg %p166
      %p237 = scmp.lt.s32.totalorder %s17, 1
      %s238 = scalar_select %p237, %s17, 1
      %s239 = smul.addr %s238, 4
      %s240 = scalar_lea.vmem %s6, %s239
      %p241 = scmp.lt.s32.totalorder %s17, 1
      %s242 = scalar_select %p241, %s17, 1
      %s243 = smul.addr %s242, 2
      %s244 = smul.addr %s243, 4
      %s245 = scalar_lea.vmem %s0, %s244
      %p246 = scmp.lt.s32.totalorder %s17, 1
      %s247 = scalar_select %p246, %s17, 1
      %s248 = smul.addr %s247, 4
      %s249 = scalar_lea.vmem %s6, %s248
      %v251 = vld [vmem:[%s245] sm:$0xff]
      %v253 = vcombine.high %v251, %v251
      %v255 = vpack.c.bf16 %v251, %v251
      %v256 = vpack.c.bf16 %v253, %v253
      %v257 = vld [vmem:[%s1] sm:$0xf]
      %v258 = vld [vmem:[%s1 + $0x4] sm:$0xf]
      %v259 = vld [vmem:[%s1 + $0x8] sm:$0xf]
      %v260 = vld [vmem:[%s1 + $0xc] sm:$0xf]
      %v261 = vld [vmem:[%s1 + $0x10] sm:$0xf]
      %v262 = vld [vmem:[%s1 + $0x14] sm:$0xf]
      %v263 = vld [vmem:[%s1 + $0x18] sm:$0xf]
      %v264 = vld [vmem:[%s1 + $0x1c] sm:$0xf]
      %v265 = vld [vmem:[%s1 + $0x20] sm:$0xf]
      %v266 = vld [vmem:[%s1 + $0x24] sm:$0xf]
      %v267 = vld [vmem:[%s1 + $0x28] sm:$0xf]
      %v268 = vld [vmem:[%s1 + $0x2c] sm:$0xf]
      %v269 = vld [vmem:[%s1 + $0x30] sm:$0xf]
      %v270 = vld [vmem:[%s1 + $0x34] sm:$0xf]
      %v271 = vld [vmem:[%s1 + $0x38] sm:$0xf]
      %v272 = vld [vmem:[%s1 + $0x3c] sm:$0xf]
      %v273 = vld [vmem:[%s1 + $0x40] sm:$0xf]
      %v274 = vld [vmem:[%s1 + $0x44] sm:$0xf]
      %v275 = vld [vmem:[%s2] sm:$0x1]
      %v277 = vlaneseq
      %v278 = vshrl.u32 %v277, 7
      %v279 = vsub.s32 0, %v278
      %v280 = vrot.slane %v275, %v279
      %v300 = vunpack.c.l.b16 %v257
      %v301 = vunpack.c.l.b16 %v258
      %v302 = vunpack.c.l.b16 %v259
      %v303 = vunpack.c.l.b16 %v260
      %v304 = vunpack.c.l.b16 %v261
      %v305 = vunpack.c.l.b16 %v262
      %v306 = vunpack.c.l.b16 %v263
      %v307 = vunpack.c.l.b16 %v264
      %v308 = vunpack.c.l.b16 %v265
      %v309 = vunpack.c.l.b16 %v266
      %v310 = vunpack.c.l.b16 %v267
      %v311 = vunpack.c.l.b16 %v268
      %v312 = vunpack.c.l.b16 %v269
      %v313 = vunpack.c.l.b16 %v270
      %v314 = vunpack.c.l.b16 %v271
      %v315 = vunpack.c.l.b16 %v272
      %v316 = vunpack.c.l.b16 %v273
      %v317 = vunpack.c.l.b16 %v274
      %v318 = vpack.c.b16 %v301, %v300
      %v319 = vpack.c.b16 %v303, %v302
      %v320 = vpack.c.b16 %v305, %v304
      %v321 = vpack.c.b16 %v307, %v306
      %v322 = vpack.c.b16 %v309, %v308
      %v323 = vpack.c.b16 %v311, %v310
      %v324 = vpack.c.b16 %v313, %v312
      %v325 = vpack.c.b16 %v315, %v314
      %v326 = vpack.c.b16 %v317, %v316
      %vm336 = vcmask 130048
      %v338 = vsel %vm336, %v256, 0
      %340 = vmatprep.subr.bf16.mxu0 0
      %341 = vmatpush1.bf16.msra.mxu0 %v318
      %342 = vmatprep.subr.bf16.mxu0 0
      %343 = vmatpush1.bf16.msra.mxu0 %v319
      %344 = vmatprep.subr.bf16.mxu0 0
      %345 = vmatpush1.bf16.msra.mxu0 %v320
      %346 = vmatprep.subr.bf16.mxu0 0
      %347 = vmatpush1.bf16.msra.mxu0 %v321
      %348 = vmatprep.subr.bf16.mxu0 0
      %349 = vmatpush1.bf16.msra.mxu0 %v322
      %350 = vmatprep.subr.bf16.mxu0 0
      %351 = vmatpush1.bf16.msra.mxu0 %v323
      %352 = vmatprep.subr.bf16.mxu0 0
      %353 = vmatpush1.bf16.msra.mxu0 %v324
      %354 = vmatprep.subr.bf16.mxu0 0
      %355 = vmatpush1.bf16.msra.mxu0 %v325
      %356 = vmatprep.subr.bf16.mxu0 0
      %357 = vmatpush1.bf16.msra.mxu0 %v326
      %358 = vmatprep.subr.bf16.mxu0 0
      %359 = vmatpush1.bf16.msra.mxu0 0
      %360 = vmatprep.subr.bf16.mxu0 0
      %361 = vmatpush1.bf16.msra.mxu0 0
      %362 = vmatprep.subr.bf16.mxu0 0
      %363 = vmatpush1.bf16.msra.mxu0 0
      %364 = vmatprep.subr.bf16.mxu0 0
      %365 = vmatpush1.bf16.msra.mxu0 0
      %366 = vmatprep.subr.bf16.mxu0 0
      %367 = vmatpush1.bf16.msra.mxu0 0
      %368 = vmatprep.subr.bf16.mxu0 0
      %369 = vmatpush1.bf16.msra.mxu0 0
      %370 = vmatprep.subr.bf16.mxu0 0
      %371 = vmatpush1.bf16.msra.mxu0 0
      %372 = vmatprep.mubr.bf16.mxu0 %v338
      %373 = vmatmul.mubr.bf16.gmra.mrb[0].mxu0 %v255
      %v374 = vpop.f32.mrb[0].mxu0
      %v375 = vadd.f32 %v280, %v374
      %v376 = vpop.f32.mrb[0].mxu0
      %v377 = vpop.f32.mrb[0].mxu0
      %v378 = vpop.f32.mrb[0].mxu0
      %379 = vdwg.mxu0
      %vm380 = vcmask 519168
      %v381 = vsel %vm380, %v375, 0.0
      %v382 = vrot.slane %v381, 4
      %v383 = vadd.f32 %v381, %v382
      %v384 = vrot.slane %v383, 2
      %v385 = vadd.f32 %v383, %v384
      %v386 = vrot.slane %v385, 1
      %v387 = vadd.f32 %v385, %v386
      %v388 = vrcp.pop 4.0
      %v389 = vmul.f32 %v387, %v388
      %v390 = vld [vmem:[%s5] sm:$0xff]
      %v391 = vld [vmem:[%s5 + $0x8] sm:$0xff]
      %v392 = vld [vmem:[%s5 + $0x10] sm:$0xff]
      %v393 = vld [vmem:[%s5 + $0x18] sm:$0xff]
      %v394 = vld [vmem:[%s5 + $0x20] sm:$0xff]
      %v395 = vld [vmem:[%s5 + $0x28] sm:$0xff]
      %v396 = vld [vmem:[%s5 + $0x30] sm:$0xff]
      %v397 = vld [vmem:[%s5 + $0x38] sm:$0xff]
      %vm398 = vcmask 523264
      %v400 = vsel %vm398, %v389, 0
      %402 = vmatprep.subr.mxu0 0.0
      %403 = vmatpush1.msra.mxu0 %v390
      %404 = vmatprep.subr.mxu0 0.0
      %405 = vmatpush1.msra.mxu0 %v391
      %406 = vmatprep.subr.mxu0 0.0
      %407 = vmatpush1.msra.mxu0 %v392
      %408 = vmatprep.subr.mxu0 0.0
      %409 = vmatpush1.msra.mxu0 %v393
      %410 = vmatprep.subr.mxu0 0.0
      %411 = vmatpush1.msra.mxu0 %v394
      %412 = vmatprep.subr.mxu0 0.0
      %413 = vmatpush1.msra.mxu0 %v395
      %414 = vmatprep.subr.mxu0 0.0
      %415 = vmatpush1.msra.mxu0 %v396
      %416 = vmatprep.subr.mxu0 0.0
      %417 = vmatpush1.msra.mxu0 %v397
      %418 = vmatprep.subr.mxu0 0.0
      %419 = vmatpush1.msra.mxu0 0.0
      %420 = vmatprep.subr.mxu0 0.0
      %421 = vmatpush1.msra.mxu0 0.0
      %422 = vmatprep.subr.mxu0 0.0
      %423 = vmatpush1.msra.mxu0 0.0
      %424 = vmatprep.subr.mxu0 0.0
      %425 = vmatpush1.msra.mxu0 0.0
      %426 = vmatprep.subr.mxu0 0.0
      %427 = vmatpush1.msra.mxu0 0.0
      %428 = vmatprep.subr.mxu0 0.0
      %429 = vmatpush1.msra.mxu0 0.0
      %430 = vmatprep.subr.mxu0 0.0
      %431 = vmatpush1.msra.mxu0 0.0
      %432 = vmatprep.subr.mxu0 0.0
      %433 = vmatpush1.msra.mxu0 0.0
      %434 = vmatprep.subr.mxu0 0.0
      %435 = vmatpush1.msra.mxu0 0.0
      %436 = vmatprep.subr.mxu0 0.0
      %437 = vmatpush1.msra.mxu0 0.0
      %438 = vmatprep.subr.mxu0 0.0
      %439 = vmatpush1.msra.mxu0 0.0
      %440 = vmatprep.subr.mxu0 0.0
      %441 = vmatpush1.msra.mxu0 0.0
      %442 = vmatprep.subr.mxu0 0.0
      %443 = vmatpush1.msra.mxu0 0.0
      %444 = vmatprep.subr.mxu0 0.0
      %445 = vmatpush1.msra.mxu0 0.0
      %446 = vmatprep.subr.mxu0 0.0
      %447 = vmatpush1.msra.mxu0 0.0
      %448 = vmatprep.subr.mxu0 0.0
      %449 = vmatpush1.msra.mxu0 0.0
      %450 = vmatprep.subr.mxu0 0.0
      %451 = vmatpush1.msra.mxu0 0.0
      %452 = vmatprep.subr.mxu0 0.0
      %453 = vmatpush1.msra.mxu0 0.0
      %454 = vmatprep.subr.mxu0 0.0
      %455 = vmatpush1.msra.mxu0 0.0
      %456 = vmatprep.subr.mxu0 0.0
      %457 = vmatpush1.msra.mxu0 0.0
      %458 = vmatprep.subr.mxu0 0.0
      %459 = vmatpush1.msra.mxu0 0.0
      %460 = vmatprep.subr.mxu0 0.0
      %461 = vmatpush1.msra.mxu0 0.0
      %462 = vmatprep.subr.mxu0 0.0
      %463 = vmatpush1.msra.mxu0 0.0
      %464 = vmatprep.subr.mxu0 0.0
      %465 = vmatpush1.msra.mxu0 0.0
      %466 = vmatprep.mubr.f32.mxu0 0.0
      %467 = vmatmul.mubr.f32.gmra.mrb[0].mxu0 %v400
      %v468 = vpop.f32.mrb[0].mxu0
      %v469 = vadd.f32 0.0, %v468
      %v470 = vpop.f32.mrb[0].mxu0
      %471 = vdwg.mxu0
      %v472 = vlaneseq
      %v473 = vshrl.u32 %v472, 7
      %v474 = vsub.s32 0, %v473
      %v475 = vrot.slane %v469, %v474
      %v476 = vsub.f32 %v375, %v475
      %v477 = vmul.f32 %v476, %v476
      %v478 = vsel %vm380, %v477, 0.0
      %v479 = vrot.slane %v478, 4
      %v480 = vadd.f32 %v478, %v479
      %v481 = vrot.slane %v480, 2
      %v482 = vadd.f32 %v480, %v481
      %v483 = vrot.slane %v482, 1
      %v484 = vadd.f32 %v482, %v483
      %v485 = vmul.f32 %v484, %v388
      %v487 = vsel %vm398, %v485, 0
      %489 = vmatprep.subr.mxu0 0.0
      %490 = vmatpush1.msra.mxu0 %v390
      %491 = vmatprep.subr.mxu0 0.0
      %492 = vmatpush1.msra.mxu0 %v391
      %493 = vmatprep.subr.mxu0 0.0
      %494 = vmatpush1.msra.mxu0 %v392
      %495 = vmatprep.subr.mxu0 0.0
      %496 = vmatpush1.msra.mxu0 %v393
      %497 = vmatprep.subr.mxu0 0.0
      %498 = vmatpush1.msra.mxu0 %v394
      %499 = vmatprep.subr.mxu0 0.0
      %500 = vmatpush1.msra.mxu0 %v395
      %501 = vmatprep.subr.mxu0 0.0
      %502 = vmatpush1.msra.mxu0 %v396
      %503 = vmatprep.subr.mxu0 0.0
      %504 = vmatpush1.msra.mxu0 %v397
      %505 = vmatprep.subr.mxu0 0.0
      %506 = vmatpush1.msra.mxu0 0.0
      %507 = vmatprep.subr.mxu0 0.0
      %508 = vmatpush1.msra.mxu0 0.0
      %509 = vmatprep.subr.mxu0 0.0
      %510 = vmatpush1.msra.mxu0 0.0
      %511 = vmatprep.subr.mxu0 0.0
      %512 = vmatpush1.msra.mxu0 0.0
      %513 = vmatprep.subr.mxu0 0.0
      %514 = vmatpush1.msra.mxu0 0.0
      %515 = vmatprep.subr.mxu0 0.0
      %516 = vmatpush1.msra.mxu0 0.0
      %517 = vmatprep.subr.mxu0 0.0
      %518 = vmatpush1.msra.mxu0 0.0
      %519 = vmatprep.subr.mxu0 0.0
      %520 = vmatpush1.msra.mxu0 0.0
      %521 = vmatprep.subr.mxu0 0.0
      %522 = vmatpush1.msra.mxu0 0.0
      %523 = vmatprep.subr.mxu0 0.0
      %524 = vmatpush1.msra.mxu0 0.0
      %525 = vmatprep.subr.mxu0 0.0
      %526 = vmatpush1.msra.mxu0 0.0
      %527 = vmatprep.subr.mxu0 0.0
      %528 = vmatpush1.msra.mxu0 0.0
      %529 = vmatprep.subr.mxu0 0.0
      %530 = vmatpush1.msra.mxu0 0.0
      %531 = vmatprep.subr.mxu0 0.0
      %532 = vmatpush1.msra.mxu0 0.0
      %533 = vmatprep.subr.mxu0 0.0
      %534 = vmatpush1.msra.mxu0 0.0
      %535 = vmatprep.subr.mxu0 0.0
      %536 = vmatpush1.msra.mxu0 0.0
      %537 = vmatprep.subr.mxu0 0.0
      %538 = vmatpush1.msra.mxu0 0.0
      %539 = vmatprep.subr.mxu0 0.0
      %540 = vmatpush1.msra.mxu0 0.0
      %541 = vmatprep.subr.mxu0 0.0
      %542 = vmatpush1.msra.mxu0 0.0
      %543 = vmatprep.subr.mxu0 0.0
      %544 = vmatpush1.msra.mxu0 0.0
      %545 = vmatprep.subr.mxu0 0.0
      %546 = vmatpush1.msra.mxu0 0.0
      %547 = vmatprep.subr.mxu0 0.0
      %548 = vmatpush1.msra.mxu0 0.0
      %549 = vmatprep.subr.mxu0 0.0
      %550 = vmatpush1.msra.mxu0 0.0
      %551 = vmatprep.subr.mxu0 0.0
      %552 = vmatpush1.msra.mxu0 0.0
      %553 = vmatprep.mubr.f32.mxu0 0.0
      %554 = vmatmul.mubr.f32.gmra.mrb[0].mxu0 %v487
      %v555 = vpop.f32.mrb[0].mxu0
      %v556 = vadd.f32 1e-05, %v555
      %v557 = vpop.f32.mrb[0].mxu0
      %558 = vdwg.mxu0
      %v559 = vrsqrt.pop %v556
      %v560 = vlaneseq
      %v561 = vshrl.u32 %v560, 7
      %v562 = vsub.s32 0, %v561
      %v563 = vrot.slane %v559, %v562
      %v564 = vmul.f32 %v476, %v563
      %v565 = vld [vmem:[%s3] sm:$0x1]
      %v567 = vlaneseq
      %v568 = vshrl.u32 %v567, 7
      %v569 = vsub.s32 0, %v568
      %v570 = vrot.slane %v565, %v569
      %v572 = vmul.f32 %v564, %v570
      %v573 = vld [vmem:[%s4] sm:$0x1]
      %v575 = vlaneseq
      %v576 = vshrl.u32 %v575, 7
      %v577 = vsub.s32 0, %v576
      %v578 = vrot.slane %v573, %v577
      %v580 = vadd.f32 %v572, %v578
      %581 = vst.msk [vmem:[%s249] sm:$0xf] %vm380, %v580
      %p582 = scmp.lt.s32.totalorder %s17, 1
      %s583 = scalar_select %p582, %s17, 1
      %s584 = smul.addr %s583, 4
      %s585 = scalar_lea.vmem %s6, %s584
      // Predicated region
      $region45: #{spatial_encoder_transformer_forward.9} parent=43 // pred_check
        %p586 = pneg %p166
      $region46: #{spatial_encoder_transformer_forward.9} parent=43 // pred_check_branch
        %588 = sbr.rel (%p586) target = $region48
      $region47: #{spatial_encoder_transformer_forward.9} parent=43 // pred_region
        _
      $region48: #{spatial_encoder_transformer_forward.9} parent=43 // pred_fallthru
        _
    $region44: #{spatial_encoder_transformer_forward.9} parent=5 // pred_fallthru
      _
    %p589 = scmp.le.s32.totalorder 2, %s12
    // Predicated region
    $region49: #{spatial_encoder_transformer_forward.9} parent=5 // pred_check
      %p590 = pneg %p589
    $region50: #{spatial_encoder_transformer_forward.9} parent=5 // pred_check_branch
      %592 = sbr.rel (%p590) target = $region52
    $region51: #{spatial_encoder_transformer_forward.9} parent=5 // pred_region
      %s593 = ssub.s32 %s12, 2
      // Predicated region
      $region53: #{spatial_encoder_transformer_forward.9} parent=51 // pred_check
        %p594 = pneg %p172
      $region54: #{spatial_encoder_transformer_forward.9} parent=51 // pred_check_branch
        %596 = sbr.rel (%p594) target = $region56
      $region55: #{spatial_encoder_transformer_forward.9} parent=51 // pred_region
        %p597 = scmp.lt.s32.totalorder %s18, 1
        %s598 = scalar_select %p597, %s18, 1
        %s599 = smul.addr %s598, 4
        %s600 = scalar_lea.vmem %s6, %s599
      $region56: #{spatial_encoder_transformer_forward.9} parent=51 // pred_fallthru
        _
    $region52: #{spatial_encoder_transformer_forward.9} parent=5 // pred_fallthru
      _
  $region6: #{spatial_encoder_transformer_forward.9} parent=0 // loop_footer
    %s16 = sadd.s32 1, %s12
  $region7: #{spatial_encoder_transformer_forward.9} parent=0 // loop_footer_branch
    %11 = sbr.rel target = $region3
  $region8: #{spatial_encoder_transformer_forward.9} parent=0 // loop_exit
    _

// kernel: spatial_encoder_transformer_forward.7
$region0: #{spatial_encoder_transformer_forward.7}
  #allocation0 [shape = 'u32[]', space=smem, size = 0x4, offset = 0x4, fixed_abs, tag = 'smem constant byte address 0x4 - core index']
  #allocation1 [shape = 'u32[144,128]{1,0:T(1,128)}', space=vmem, size = 0x12000, scoped, tag = 'internal scratch']
  %s0 = inlined_call_operand.vmem [shape: f32[2,64,8], index: 0, kind: input, shape index: {}]
  %s1 = inlined_call_operand.vmem [shape: bf16[8,64], index: 1, kind: input, shape index: {}]
  %s2 = inlined_call_operand.vmem [shape: f32[1,64], index: 2, kind: input, shape index: {}]
  %s3 = inlined_call_operand.vmem [shape: f32[1,64], index: 3, kind: input, shape index: {}]
  %s4 = inlined_call_operand.vmem [shape: f32[1,64], index: 4, kind: input, shape index: {}]
  %s5 = inlined_call_operand.vmem [shape: f32[64,64], index: 5, kind: input, shape index: {}]
  %s6 = inlined_call_operand.vmem [shape: f32[2,64,64], index: 6, kind: output, shape index: {}]
  %s7 = sld [smem:[#allocation0]]
  $region57: #{spatial_encoder_transformer_forward.7} parent=0
    _
  %s9 = ssub.s32 1, %s7
  %s10 = scalar_select 0, %s9, %s7
  loop: start=0, step=1, limit=4
  $region2: #{spatial_encoder_transformer_forward.7} parent=0 // loop_pre_header
    _
  $region3: #{spatial_encoder_transformer_forward.7} parent=0 // loop_header
    %s12 = sphi 0, %s16
    %p13 = scmp.ge.s32.totalorder %s12, 4
    %s22 = sphi 0, %s24
    %s25 = sphi 0, %s22
    %s26 = sphi 0, %s25
    %s42 = sphi 0, %s26
    %s46 = sphi 0, %s46
    %s48 = sphi 0, %s46
    %s49 = sphi 0, %s48
    %s63 = sphi 0, %s49
    %s67 = sphi 0, %s67
    %s69 = sphi 0, %s67
    %s70 = sphi 0, %s69
    %s84 = sphi 0, %s70
    %s88 = sphi 0, %s88
    %s90 = sphi 0, %s88
    %s91 = sphi 0, %s90
    %s105 = sphi 0, %s91
    %s109 = sphi 0, %s109
    %s111 = sphi 0, %s109
    %s112 = sphi 0, %s111
    %s126 = sphi 0, %s112
    %s130 = sphi 0, %s130
    %s132 = sphi 0, %s130
    %s133 = sphi 0, %s132
    %s147 = sphi 0, %s133
    %s153 = sphi 0, %s155
    %s156 = sphi 0, %s153
    %s157 = sphi 0, %s156
    %s173 = sphi 0, %s157
  $region4: #{spatial_encoder_transformer_forward.7} parent=0 // loop_header_branch
    %15 = sbr.rel (%p13) target = $region8
  $region5: #{spatial_encoder_transformer_forward.7} parent=0 // loop_body
    %s17 = ssub.s32 %s12, 1
    %s18 = ssub.s32 %s12, 2
    %s19 = sadd.s32 %s12, 1
    %s20 = ssub.s32 %s12, %s19
    %p21 = scmp.eq.s32.totalorder %s20, 0
    %s23 = sadd.s32 %s22, 1
    %s24 = scalar_select %p21, %s22, %s23
    %p27 = pneg %p21
    %p28 = scmp.eq.s32.totalorder %s12, 1
    %p29 = por %p27, %p28
    %p30 = scmp.ne.s32.totalorder %s22, %s25
    %p31 = scmp.eq.s32.totalorder %s12, 0
    %p32 = por %p30, %p31
    %p33 = scmp.ne.s32.totalorder %s22, %s25
    %p34 = scmp.eq.s32.totalorder %s17, 1
    %p35 = por %p33, %p34
    %p36 = scmp.ne.s32.totalorder %s25, %s26
    %p37 = scmp.eq.s32.totalorder %s17, 0
    %p38 = por %p36, %p37
    %p39 = scmp.ne.s32.totalorder %s25, %s26
    %p40 = scmp.eq.s32.totalorder %s18, 1
    %p41 = por %p39, %p40
    %p43 = scmp.ne.s32.totalorder %s26, %s42
    %p44 = scmp.eq.s32.totalorder %s18, 0
    %p45 = por %p43, %p44
    %s47 = sadd.s32 %s46, 1
    %p50 = scmp.eq.s32.totalorder %s12, 1
    %p51 = scmp.ne.s32.totalorder %s46, %s48
    %p52 = scmp.eq.s32.totalorder %s12, 0
    %p53 = por %p51, %p52
    %p54 = scmp.ne.s32.totalorder %s46, %s48
    %p55 = scmp.eq.s32.totalorder %s17, 1
    %p56 = por %p54, %p55
    %p57 = scmp.ne.s32.totalorder %s48, %s49
    %p58 = scmp.eq.s32.totalorder %s17, 0
    %p59 = por %p57, %p58
    %p60 = scmp.ne.s32.totalorder %s48, %s49
    %p61 = scmp.eq.s32.totalorder %s18, 1
    %p62 = por %p60, %p61
    %p64 = scmp.ne.s32.totalorder %s49, %s63
    %p65 = scmp.eq.s32.totalorder %s18, 0
    %p66 = por %p64, %p65
    %s68 = sadd.s32 %s67, 1
    %p71 = scmp.eq.s32.totalorder %s12, 1
    %p72 = scmp.ne.s32.totalorder %s67, %s69
    %p73 = scmp.eq.s32.totalorder %s12, 0
    %p74 = por %p72, %p73
    %p75 = scmp.ne.s32.totalorder %s67, %s69
    %p76 = scmp.eq.s32.totalorder %s17, 1
    %p77 = por %p75, %p76
    %p78 = scmp.ne.s32.totalorder %s69, %s70
    %p79 = scmp.eq.s32.totalorder %s17, 0
    %p80 = por %p78, %p79
    %p81 = scmp.ne.s32.totalorder %s69, %s70
    %p82 = scmp.eq.s32.totalorder %s18, 1
    %p83 = por %p81, %p82
    %p85 = scmp.ne.s32.totalorder %s70, %s84
    %p86 = scmp.eq.s32.totalorder %s18, 0
    %p87 = por %p85, %p86
    %s89 = sadd.s32 %s88, 1
    %p92 = scmp.eq.s32.totalorder %s12, 1
    %p93 = scmp.ne.s32.totalorder %s88, %s90
    %p94 = scmp.eq.s32.totalorder %s12, 0
    %p95 = por %p93, %p94
    %p96 = scmp.ne.s32.totalorder %s88, %s90
    %p97 = scmp.eq.s32.totalorder %s17, 1
    %p98 = por %p96, %p97
    %p99 = scmp.ne.s32.totalorder %s90, %s91
    %p100 = scmp.eq.s32.totalorder %s17, 0
    %p101 = por %p99, %p100
    %p102 = scmp.ne.s32.totalorder %s90, %s91
    %p103 = scmp.eq.s32.totalorder %s18, 1
    %p104 = por %p102, %p103
    %p106 = scmp.ne.s32.totalorder %s91, %s105
    %p107 = scmp.eq.s32.totalorder %s18, 0
    %p108 = por %p106, %p107
    %s110 = sadd.s32 %s109, 1
    %p113 = scmp.eq.s32.totalorder %s12, 1
    %p114 = scmp.ne.s32.totalorder %s109, %s111
    %p115 = scmp.eq.s32.totalorder %s12, 0
    %p116 = por %p114, %p115
    %p117 = scmp.ne.s32.totalorder %s109, %s111
    %p118 = scmp.eq.s32.totalorder %s17, 1
    %p119 = por %p117, %p118
    %p120 = scmp.ne.s32.totalorder %s111, %s112
    %p121 = scmp.eq.s32.totalorder %s17, 0
    %p122 = por %p120, %p121
    %p123 = scmp.ne.s32.totalorder %s111, %s112
    %p124 = scmp.eq.s32.totalorder %s18, 1
    %p125 = por %p123, %p124
    %p127 = scmp.ne.s32.totalorder %s112, %s126
    %p128 = scmp.eq.s32.totalorder %s18, 0
    %p129 = por %p127, %p128
    %s131 = sadd.s32 %s130, 1
    %p134 = scmp.eq.s32.totalorder %s12, 1
    %p135 = scmp.ne.s32.totalorder %s130, %s132
    %p136 = scmp.eq.s32.totalorder %s12, 0
    %p137 = por %p135, %p136
    %p138 = scmp.ne.s32.totalorder %s130, %s132
    %p139 = scmp.eq.s32.totalorder %s17, 1
    %p140 = por %p138, %p139
    %p141 = scmp.ne.s32.totalorder %s132, %s133
    %p142 = scmp.eq.s32.totalorder %s17, 0
    %p143 = por %p141, %p142
    %p144 = scmp.ne.s32.totalorder %s132, %s133
    %p145 = scmp.eq.s32.totalorder %s18, 1
    %p146 = por %p144, %p145
    %p148 = scmp.ne.s32.totalorder %s133, %s147
    %p149 = scmp.eq.s32.totalorder %s18, 0
    %p150 = por %p148, %p149
    %s151 = ssub.s32 %s12, %s19
    %p152 = scmp.eq.s32.totalorder %s151, 0
    %s154 = sadd.s32 %s153, 1
    %s155 = scalar_select %p152, %s153, %s154
    %p158 = pneg %p152
    %p159 = scmp.eq.s32.totalorder %s12, 1
    %p160 = por %p158, %p159
    %p161 = scmp.ne.s32.totalorder %s153, %s156
    %p162 = scmp.eq.s32.totalorder %s12, 0
    %p163 = por %p161, %p162
    %p164 = scmp.ne.s32.totalorder %s153, %s156
    %p165 = scmp.eq.s32.totalorder %s17, 1
    %p166 = por %p164, %p165
    %p167 = scmp.ne.s32.totalorder %s156, %s157
    %p168 = scmp.eq.s32.totalorder %s17, 0
    %p169 = por %p167, %p168
    %p170 = scmp.ne.s32.totalorder %s156, %s157
    %p171 = scmp.eq.s32.totalorder %s18, 1
    %p172 = por %p170, %p171
    %p174 = scmp.ne.s32.totalorder %s157, %s173
    %p175 = scmp.eq.s32.totalorder %s18, 0
    %p176 = por %p174, %p175
    %p177 = scmp.le.s32.totalorder 1, %s12
    %p178 = scmp.lt.s32.totalorder %s12, 3
    %p179 = pnand %p177, %p178
    %p180 = pneg %p179
    // Predicated region
    $region9: #{spatial_encoder_transformer_forward.7} parent=5 // pred_check
      _
    $region10: #{spatial_encoder_transformer_forward.7} parent=5 // pred_check_branch
      %182 = sbr.rel (%p179) target = $region12
    $region11: #{spatial_encoder_transformer_forward.7} parent=5 // pred_region
      %s183 = ssub.s32 %s12, 1
      // Predicated region
      $region13: #{spatial_encoder_transformer_forward.7} parent=11 // pred_check
        %p184 = pneg %p59
      $region14: #{spatial_encoder_transformer_forward.7} parent=11 // pred_check_branch
        %186 = sbr.rel (%p184) target = $region16
      $region15: #{spatial_encoder_transformer_forward.7} parent=11 // pred_region
        _
      $region16: #{spatial_encoder_transformer_forward.7} parent=11 // pred_fallthru
        _
      // Predicated region
      $region17: #{spatial_encoder_transformer_forward.7} parent=11 // pred_check
        %p187 = pneg %p80
      $region18: #{spatial_encoder_transformer_forward.7} parent=11 // pred_check_branch
        %189 = sbr.rel (%p187) target = $region20
      $region19: #{spatial_encoder_transformer_forward.7} parent=11 // pred_region
        _
      $region20: #{spatial_encoder_transformer_forward.7} parent=11 // pred_fallthru
        _
      // Predicated region
      $region21: #{spatial_encoder_transformer_forward.7} parent=11 // pred_check
        %p190 = pneg %p101
      $region22: #{spatial_encoder_transformer_forward.7} parent=11 // pred_check_branch
        %192 = sbr.rel (%p190) target = $region24
      $region23: #{spatial_encoder_transformer_forward.7} parent=11 // pred_region
        _
      $region24: #{spatial_encoder_transformer_forward.7} parent=11 // pred_fallthru
        _
      // Predicated region
      $region25: #{spatial_encoder_transformer_forward.7} parent=11 // pred_check
        %p193 = pneg %p122
      $region26: #{spatial_encoder_transformer_forward.7} parent=11 // pred_check_branch
        %195 = sbr.rel (%p193) target = $region28
      $region27: #{spatial_encoder_transformer_forward.7} parent=11 // pred_region
        _
      $region28: #{spatial_encoder_transformer_forward.7} parent=11 // pred_fallthru
        _
      // Predicated region
      $region29: #{spatial_encoder_transformer_forward.7} parent=11 // pred_check
        %p196 = pneg %p143
      $region30: #{spatial_encoder_transformer_forward.7} parent=11 // pred_check_branch
        %198 = sbr.rel (%p196) target = $region32
      $region31: #{spatial_encoder_transformer_forward.7} parent=11 // pred_region
        _
      $region32: #{spatial_encoder_transformer_forward.7} parent=11 // pred_fallthru
        _
    $region12: #{spatial_encoder_transformer_forward.7} parent=5 // pred_fallthru
      _
    %p199 = scmp.lt.s32.totalorder %s12, 2
    // Predicated region
    $region33: #{spatial_encoder_transformer_forward.7} parent=5 // pred_check
      %p200 = pneg %p199
    $region34: #{spatial_encoder_transformer_forward.7} parent=5 // pred_check_branch
      %202 = sbr.rel (%p200) target = $region36
    $region35: #{spatial_encoder_transformer_forward.7} parent=5 // pred_region
      // Predicated region
      $region37: #{spatial_encoder_transformer_forward.7} parent=35 // pred_check
        %p203 = pneg %p32
      $region38: #{spatial_encoder_transformer_forward.7} parent=35 // pred_check_branch
        %205 = sbr.rel (%p203) target = $region40
      $region39: #{spatial_encoder_transformer_forward.7} parent=35 // pred_region
        %p206 = scmp.lt.s32.totalorder %s12, 1
        %s207 = scalar_select %p206, %s12, 1
        %s208 = smul.addr %s207, 8
        %s209 = smul.addr %s208, 8
        %s210 = scalar_lea.vmem %s0, %s209
      $region40: #{spatial_encoder_transformer_forward.7} parent=35 // pred_fallthru
        _
    $region36: #{spatial_encoder_transformer_forward.7} parent=5 // pred_fallthru
      _
    %p211 = scmp.le.s32.totalorder 1, %s12
    %p212 = scmp.lt.s32.totalorder %s12, 3
    %p213 = pnand %p211, %p212
    %p214 = pneg %p213
    // Predicated region
    $region41: #{spatial_encoder_transformer_forward.7} parent=5 // pred_check
      _
    $region42: #{spatial_encoder_transformer_forward.7} parent=5 // pred_check_branch
      %216 = sbr.rel (%p213) target = $region44
    $region43: #{spatial_encoder_transformer_forward.7} parent=5 // pred_region
      %s217 = ssub.s32 %s12, 1
      %p218 = scmp.lt.s32.totalorder %s17, 1
      %s219 = scalar_select %p218, %s17, 1
      %s220 = smul.addr %s219, 8
      %s221 = smul.addr %s220, 8
      %s222 = scalar_lea.vmem %s0, %s221
      %p223 = pneg %p38
      %p224 = pneg %p35
      %p225 = pneg %p59
      %p226 = pneg %p56
      %p227 = pneg %p80
      %p228 = pneg %p77
      %p229 = pneg %p101
      %p230 = pneg %p98
      %p231 = pneg %p122
      %p232 = pneg %p119
      %p233 = pneg %p143
      %p234 = pneg %p140
      %p235 = pneg %p169
      %p236 = pneg %p166
      %p237 = scmp.lt.s32.totalorder %s17, 1
      %s238 = scalar_select %p237, %s17, 1
      %s239 = smul.addr %s238, 8
      %s240 = smul.addr %s239, 8
      %s241 = scalar_lea.vmem %s6, %s240
      %p242 = scmp.lt.s32.totalorder %s17, 1
      %s243 = scalar_select %p242, %s17, 1
      %s244 = smul.addr %s243, 8
      %s245 = smul.addr %s244, 8
      %s246 = scalar_lea.vmem %s0, %s245
      %p247 = scmp.lt.s32.totalorder %s17, 1
      %s248 = scalar_select %p247, %s17, 1
      %s249 = smul.addr %s248, 8
      %s250 = smul.addr %s249, 8
      %s251 = scalar_lea.vmem %s6, %s250
      %v253 = vld [vmem:[%s246] sm:$0xff]
      %v254 = vld [vmem:[%s246 + $0x8] sm:$0xff]
      %v255 = vld [vmem:[%s246 + $0x10] sm:$0xff]
      %v256 = vld [vmem:[%s246 + $0x18] sm:$0xff]
      %v257 = vld [vmem:[%s246 + $0x20] sm:$0xff]
      %v258 = vld [vmem:[%s246 + $0x28] sm:$0xff]
      %v259 = vld [vmem:[%s246 + $0x30] sm:$0xff]
      %v260 = vld [vmem:[%s246 + $0x38] sm:$0xff]
      %v261 = vpack.c.bf16 %v254, %v253
      %v262 = vpack.c.bf16 %v256, %v255
      %v263 = vpack.c.bf16 %v258, %v257
      %v264 = vpack.c.bf16 %v260, %v259
      %v265 = vld [vmem:[%s1] sm:$0xf]
      %v266 = vld [vmem:[%s2] sm:$0x1]
      %v268 = vlaneseq
      %v269 = vshrl.u32 %v268, 7
      %v270 = vsub.s32 0, %v269
      %v271 = vrot.slane %v266, %v270
      %vm273 = vcmask 64512
      %v275 = vsel %vm273, %v261, 0
      %v278 = vsel %vm273, %v262, 0
      %v281 = vsel %vm273, %v263, 0
      %v284 = vsel %vm273, %v264, 0
      %vm286 = vcmask 1043456
      %v288 = vsel %vm286, %v265, 0
      %290 = vmatprep.subr.bf16.mxu0 0
      %291 = vmatpush1.bf16.msra.mxu0 %v288
      %292 = vmatprep.subr.bf16.mxu0 0
      %293 = vmatpush1.bf16.msra.mxu0 0
      %294 = vmatprep.subr.bf16.mxu0 0
      %295 = vmatpush1.bf16.msra.mxu0 0
      %296 = vmatprep.subr.bf16.mxu0 0
      %297 = vmatpush1.bf16.msra.mxu0 0
      %298 = vmatprep.subr.bf16.mxu0 0
      %299 = vmatpush1.bf16.msra.mxu0 0
      %300 = vmatprep.subr.bf16.mxu0 0
      %301 = vmatpush1.bf16.msra.mxu0 0
      %302 = vmatprep.subr.bf16.mxu0 0
      %303 = vmatpush1.bf16.msra.mxu0 0
      %304 = vmatprep.subr.bf16.mxu0 0
      %305 = vmatpush1.bf16.msra.mxu0 0
      %306 = vmatprep.subr.bf16.mxu0 0
      %307 = vmatpush1.bf16.msra.mxu0 0
      %308 = vmatprep.subr.bf16.mxu0 0
      %309 = vmatpush1.bf16.msra.mxu0 0
      %310 = vmatprep.subr.bf16.mxu0 0
      %311 = vmatpush1.bf16.msra.mxu0 0
      %312 = vmatprep.subr.bf16.mxu0 0
      %313 = vmatpush1.bf16.msra.mxu0 0
      %314 = vmatprep.subr.bf16.mxu0 0
      %315 = vmatpush1.bf16.msra.mxu0 0
      %316 = vmatprep.subr.bf16.mxu0 0
      %317 = vmatpush1.bf16.msra.mxu0 0
      %318 = vmatprep.subr.bf16.mxu0 0
      %319 = vmatpush1.bf16.msra.mxu0 0
      %320 = vmatprep.subr.bf16.mxu0 0
      %321 = vmatpush1.bf16.msra.mxu0 0
      %322 = vmatprep.mubr.bf16.mxu0 0
      %323 = vmatmul.mubr.bf16.gmra.mrb[0].mxu0 %v275
      %v324 = vpop.f32.mrb[0].mxu0
      %v325 = vadd.f32 %v271, %v324
      %v326 = vpop.f32.mrb[0].mxu0
      %v327 = vpop.f32.mrb[0].mxu0
      %v328 = vadd.f32 %v271, %v327
      %v329 = vpop.f32.mrb[0].mxu0
      %330 = vmatprep.mubr.bf16.mxu0 0
      %331 = vmatmul.mubr.bf16.gmra.mrb[0].mxu0 %v278
      %v332 = vpop.f32.mrb[0].mxu0
      %v333 = vadd.f32 %v271, %v332
      %v334 = vpop.f32.mrb[0].mxu0
      %v335 = vpop.f32.mrb[0].mxu0
      %v336 = vadd.f32 %v271, %v335
      %v337 = vpop.f32.mrb[0].mxu0
      %338 = vmatprep.mubr.bf16.mxu0 0
      %339 = vmatmul.mubr.bf16.gmra.mrb[0].mxu0 %v281
      %v340 = vpop.f32.mrb[0].mxu0
      %v341 = vadd.f32 %v271, %v340
      %v342 = vpop.f32.mrb[0].mxu0
      %v343 = vpop.f32.mrb[0].mxu0
      %v344 = vadd.f32 %v271, %v343
      %v345 = vpop.f32.mrb[0].mxu0
      %346 = vmatprep.mubr.bf16.mxu0 0
      %347 = vmatmul.mubr.bf16.gmra.mrb[0].mxu0 %v284
      %v348 = vpop.f32.mrb[0].mxu0
      %v349 = vadd.f32 %v271, %v348
      %v350 = vpop.f32.mrb[0].mxu0
      %v351 = vpop.f32.mrb[0].mxu0
      %v352 = vadd.f32 %v271, %v351
      %v353 = vpop.f32.mrb[0].mxu0
      %354 = vdwg.mxu0
      %vm355 = vcmask 523264
      %v356 = vsel %vm355, %v325, 0.0
      %v357 = vsel %vm355, %v328, 0.0
      %v358 = vadd.f32 %v356, %v357
      %v359 = vsel %vm355, %v333, 0.0
      %v360 = vadd.f32 %v358, %v359
      %v361 = vsel %vm355, %v336, 0.0
      %v362 = vadd.f32 %v360, %v361
      %v363 = vsel %vm355, %v341, 0.0
      %v364 = vadd.f32 %v362, %v363
      %v365 = vsel %vm355, %v344, 0.0
      %v366 = vadd.f32 %v364, %v365
      %v367 = vsel %vm355, %v349, 0.0
      %v368 = vadd.f32 %v366, %v367
      %v369 = vsel %vm355, %v352, 0.0
      %v370 = vadd.f32 %v368, %v369
      %v371 = vrot.slane %v370, 4
      %v372 = vadd.f32 %v370, %v371
      %v373 = vrot.slane %v372, 2
      %v374 = vadd.f32 %v372, %v373
      %v375 = vrot.slane %v374, 1
      %v376 = vadd.f32 %v374, %v375
      %v377 = vrcp.pop 64.0
      %v378 = vmul.f32 %v376, %v377
      %v379 = vld [vmem:[%s5] sm:$0xff]
      %v380 = vld [vmem:[%s5 + $0x8] sm:$0xff]
      %v381 = vld [vmem:[%s5 + $0x10] sm:$0xff]
      %v382 = vld [vmem:[%s5 + $0x18] sm:$0xff]
      %v383 = vld [vmem:[%s5 + $0x20] sm:$0xff]
      %v384 = vld [vmem:[%s5 + $0x28] sm:$0xff]
      %v385 = vld [vmem:[%s5 + $0x30] sm:$0xff]
      %v386 = vld [vmem:[%s5 + $0x38] sm:$0xff]
      %v388 = vsel %vm355, %v378, 0
      %390 = vmatprep.subr.mxu0 0.0
      %391 = vmatpush1.msra.mxu0 %v379
      %392 = vmatprep.subr.mxu0 0.0
      %393 = vmatpush1.msra.mxu0 %v380
      %394 = vmatprep.subr.mxu0 0.0
      %395 = vmatpush1.msra.mxu0 %v381
      %396 = vmatprep.subr.mxu0 0.0
      %397 = vmatpush1.msra.mxu0 %v382
      %398 = vmatprep.subr.mxu0 0.0
      %399 = vmatpush1.msra.mxu0 %v383
      %400 = vmatprep.subr.mxu0 0.0
      %401 = vmatpush1.msra.mxu0 %v384
      %402 = vmatprep.subr.mxu0 0.0
      %403 = vmatpush1.msra.mxu0 %v385
      %404 = vmatprep.subr.mxu0 0.0
      %405 = vmatpush1.msra.mxu0 %v386
      %406 = vmatprep.subr.mxu0 0.0
      %407 = vmatpush1.msra.mxu0 0.0
      %408 = vmatprep.subr.mxu0 0.0
      %409 = vmatpush1.msra.mxu0 0.0
      %410 = vmatprep.subr.mxu0 0.0
      %411 = vmatpush1.msra.mxu0 0.0
      %412 = vmatprep.subr.mxu0 0.0
      %413 = vmatpush1.msra.mxu0 0.0
      %414 = vmatprep.subr.mxu0 0.0
      %415 = vmatpush1.msra.mxu0 0.0
      %416 = vmatprep.subr.mxu0 0.0
      %417 = vmatpush1.msra.mxu0 0.0
      %418 = vmatprep.subr.mxu0 0.0
      %419 = vmatpush1.msra.mxu0 0.0
      %420 = vmatprep.subr.mxu0 0.0
      %421 = vmatpush1.msra.mxu0 0.0
      %422 = vmatprep.subr.mxu0 0.0
      %423 = vmatpush1.msra.mxu0 0.0
      %424 = vmatprep.subr.mxu0 0.0
      %425 = vmatpush1.msra.mxu0 0.0
      %426 = vmatprep.subr.mxu0 0.0
      %427 = vmatpush1.msra.mxu0 0.0
      %428 = vmatprep.subr.mxu0 0.0
      %429 = vmatpush1.msra.mxu0 0.0
      %430 = vmatprep.subr.mxu0 0.0
      %431 = vmatpush1.msra.mxu0 0.0
      %432 = vmatprep.subr.mxu0 0.0
      %433 = vmatpush1.msra.mxu0 0.0
      %434 = vmatprep.subr.mxu0 0.0
      %435 = vmatpush1.msra.mxu0 0.0
      %436 = vmatprep.subr.mxu0 0.0
      %437 = vmatpush1.msra.mxu0 0.0
      %438 = vmatprep.subr.mxu0 0.0
      %439 = vmatpush1.msra.mxu0 0.0
      %440 = vmatprep.subr.mxu0 0.0
      %441 = vmatpush1.msra.mxu0 0.0
      %442 = vmatprep.subr.mxu0 0.0
      %443 = vmatpush1.msra.mxu0 0.0
      %444 = vmatprep.subr.mxu0 0.0
      %445 = vmatpush1.msra.mxu0 0.0
      %446 = vmatprep.subr.mxu0 0.0
      %447 = vmatpush1.msra.mxu0 0.0
      %448 = vmatprep.subr.mxu0 0.0
      %449 = vmatpush1.msra.mxu0 0.0
      %450 = vmatprep.subr.mxu0 0.0
      %451 = vmatpush1.msra.mxu0 0.0
      %452 = vmatprep.subr.mxu0 0.0
      %453 = vmatpush1.msra.mxu0 0.0
      %454 = vmatprep.mubr.f32.mxu0 0.0
      %455 = vmatmul.mubr.f32.gmra.mrb[0].mxu0 %v388
      %v456 = vpop.f32.mrb[0].mxu0
      %v457 = vadd.f32 0.0, %v456
      %v458 = vpop.f32.mrb[0].mxu0
      %459 = vdwg.mxu0
      %v460 = vlaneseq
      %v461 = vshrl.u32 %v460, 7
      %v462 = vsub.s32 0, %v461
      %v463 = vrot.slane %v457, %v462
      %v464 = vsub.f32 %v325, %v463
      %v465 = vsub.f32 %v328, %v463
      %v466 = vsub.f32 %v333, %v463
      %v467 = vsub.f32 %v336, %v463
      %v468 = vsub.f32 %v341, %v463
      %v469 = vsub.f32 %v344, %v463
      %v470 = vsub.f32 %v349, %v463
      %v471 = vsub.f32 %v352, %v463
      %v472 = vmul.f32 %v464, %v464
      %v473 = vmul.f32 %v465, %v465
      %v474 = vmul.f32 %v466, %v466
      %v475 = vmul.f32 %v467, %v467
      %v476 = vmul.f32 %v468, %v468
      %v477 = vmul.f32 %v469, %v469
      %v478 = vmul.f32 %v470, %v470
      %v479 = vmul.f32 %v471, %v471
      %v480 = vsel %vm355, %v472, 0.0
      %v481 = vsel %vm355, %v473, 0.0
      %v482 = vadd.f32 %v480, %v481
      %v483 = vsel %vm355, %v474, 0.0
      %v484 = vadd.f32 %v482, %v483
      %v485 = vsel %vm355, %v475, 0.0
      %v486 = vadd.f32 %v484, %v485
      %v487 = vsel %vm355, %v476, 0.0
      %v488 = vadd.f32 %v486, %v487
      %v489 = vsel %vm355, %v477, 0.0
      %v490 = vadd.f32 %v488, %v489
      %v491 = vsel %vm355, %v478, 0.0
      %v492 = vadd.f32 %v490, %v491
      %v493 = vsel %vm355, %v479, 0.0
      %v494 = vadd.f32 %v492, %v493
      %v495 = vrot.slane %v494, 4
      %v496 = vadd.f32 %v494, %v495
      %v497 = vrot.slane %v496, 2
      %v498 = vadd.f32 %v496, %v497
      %v499 = vrot.slane %v498, 1
      %v500 = vadd.f32 %v498, %v499
      %v501 = vmul.f32 %v500, %v377
      %v503 = vsel %vm355, %v501, 0
      %505 = vmatprep.subr.mxu0 0.0
      %506 = vmatpush1.msra.mxu0 %v379
      %507 = vmatprep.subr.mxu0 0.0
      %508 = vmatpush1.msra.mxu0 %v380
      %509 = vmatprep.subr.mxu0 0.0
      %510 = vmatpush1.msra.mxu0 %v381
      %511 = vmatprep.subr.mxu0 0.0
      %512 = vmatpush1.msra.mxu0 %v382
      %513 = vmatprep.subr.mxu0 0.0
      %514 = vmatpush1.msra.mxu0 %v383
      %515 = vmatprep.subr.mxu0 0.0
      %516 = vmatpush1.msra.mxu0 %v384
      %517 = vmatprep.subr.mxu0 0.0
      %518 = vmatpush1.msra.mxu0 %v385
      %519 = vmatprep.subr.mxu0 0.0
      %520 = vmatpush1.msra.mxu0 %v386
      %521 = vmatprep.subr.mxu0 0.0
      %522 = vmatpush1.msra.mxu0 0.0
      %523 = vmatprep.subr.mxu0 0.0
      %524 = vmatpush1.msra.mxu0 0.0
      %525 = vmatprep.subr.mxu0 0.0
      %526 = vmatpush1.msra.mxu0 0.0
      %527 = vmatprep.subr.mxu0 0.0
      %528 = vmatpush1.msra.mxu0 0.0
      %529 = vmatprep.subr.mxu0 0.0
      %530 = vmatpush1.msra.mxu0 0.0
      %531 = vmatprep.subr.mxu0 0.0
      %532 = vmatpush1.msra.mxu0 0.0
      %533 = vmatprep.subr.mxu0 0.0
      %534 = vmatpush1.msra.mxu0 0.0
      %535 = vmatprep.subr.mxu0 0.0
      %536 = vmatpush1.msra.mxu0 0.0
      %537 = vmatprep.subr.mxu0 0.0
      %538 = vmatpush1.msra.mxu0 0.0
      %539 = vmatprep.subr.mxu0 0.0
      %540 = vmatpush1.msra.mxu0 0.0
      %541 = vmatprep.subr.mxu0 0.0
      %542 = vmatpush1.msra.mxu0 0.0
      %543 = vmatprep.subr.mxu0 0.0
      %544 = vmatpush1.msra.mxu0 0.0
      %545 = vmatprep.subr.mxu0 0.0
      %546 = vmatpush1.msra.mxu0 0.0
      %547 = vmatprep.subr.mxu0 0.0
      %548 = vmatpush1.msra.mxu0 0.0
      %549 = vmatprep.subr.mxu0 0.0
      %550 = vmatpush1.msra.mxu0 0.0
      %551 = vmatprep.subr.mxu0 0.0
      %552 = vmatpush1.msra.mxu0 0.0
      %553 = vmatprep.subr.mxu0 0.0
      %554 = vmatpush1.msra.mxu0 0.0
      %555 = vmatprep.subr.mxu0 0.0
      %556 = vmatpush1.msra.mxu0 0.0
      %557 = vmatprep.subr.mxu0 0.0
      %558 = vmatpush1.msra.mxu0 0.0
      %559 = vmatprep.subr.mxu0 0.0
      %560 = vmatpush1.msra.mxu0 0.0
      %561 = vmatprep.subr.mxu0 0.0
      %562 = vmatpush1.msra.mxu0 0.0
      %563 = vmatprep.subr.mxu0 0.0
      %564 = vmatpush1.msra.mxu0 0.0
      %565 = vmatprep.subr.mxu0 0.0
      %566 = vmatpush1.msra.mxu0 0.0
      %567 = vmatprep.subr.mxu0 0.0
      %568 = vmatpush1.msra.mxu0 0.0
      %569 = vmatprep.mubr.f32.mxu0 0.0
      %570 = vmatmul.mubr.f32.gmra.mrb[0].mxu0 %v503
      %v571 = vpop.f32.mrb[0].mxu0
      %v572 = vadd.f32 1e-05, %v571
      %v573 = vpop.f32.mrb[0].mxu0
      %574 = vdwg.mxu0
      %v575 = vrsqrt.pop %v572
      %v576 = vlaneseq
      %v577 = vshrl.u32 %v576, 7
      %v578 = vsub.s32 0, %v577
      %v579 = vrot.slane %v575, %v578
      %v580 = vmul.f32 %v464, %v579
      %v581 = vmul.f32 %v465, %v579
      %v582 = vmul.f32 %v466, %v579
      %v583 = vmul.f32 %v467, %v579
      %v584 = vmul.f32 %v468, %v579
      %v585 = vmul.f32 %v469, %v579
      %v586 = vmul.f32 %v470, %v579
      %v587 = vmul.f32 %v471, %v579
      %v588 = vld [vmem:[%s3] sm:$0x1]
      %v590 = vlaneseq
      %v591 = vshrl.u32 %v590, 7
      %v592 = vsub.s32 0, %v591
      %v593 = vrot.slane %v588, %v592
      %v595 = vmul.f32 %v580, %v593
      %v596 = vmul.f32 %v581, %v593
      %v597 = vmul.f32 %v582, %v593
      %v598 = vmul.f32 %v583, %v593
      %v599 = vmul.f32 %v584, %v593
      %v600 = vmul.f32 %v585, %v593
      %v601 = vmul.f32 %v586, %v593
      %v602 = vmul.f32 %v587, %v593
      %v603 = vld [vmem:[%s4] sm:$0x1]
      %v605 = vlaneseq
      %v606 = vshrl.u32 %v605, 7
      %v607 = vsub.s32 0, %v606
      %v608 = vrot.slane %v603, %v607
      %v610 = vadd.f32 %v595, %v608
      %v611 = vadd.f32 %v596, %v608
      %v612 = vadd.f32 %v597, %v608
      %v613 = vadd.f32 %v598, %v608
      %v614 = vadd.f32 %v599, %v608
      %v615 = vadd.f32 %v600, %v608
      %v616 = vadd.f32 %v601, %v608
      %v617 = vadd.f32 %v602, %v608
      %618 = vst.msk [vmem:[%s251] sm:$0xff] %vm355, %v610
      %619 = vst.msk [vmem:[%s251 + $0x8] sm:$0xff] %vm355, %v611
      %620 = vst.msk [vmem:[%s251 + $0x10] sm:$0xff] %vm355, %v612
      %621 = vst.msk [vmem:[%s251 + $0x18] sm:$0xff] %vm355, %v613
      %622 = vst.msk [vmem:[%s251 + $0x20] sm:$0xff] %vm355, %v614
      %623 = vst.msk [vmem:[%s251 + $0x28] sm:$0xff] %vm355, %v615
      %624 = vst.msk [vmem:[%s251 + $0x30] sm:$0xff] %vm355, %v616
      %625 = vst.msk [vmem:[%s251 + $0x38] sm:$0xff] %vm355, %v617
      %p626 = scmp.lt.s32.totalorder %s17, 1
      %s627 = scalar_select %p626, %s17, 1
      %s628 = smul.addr %s627, 8
      %s629 = smul.addr %s628, 8
      %s630 = scalar_lea.vmem %s6, %s629
      // Predicated region
      $region45: #{spatial_encoder_transformer_forward.7} parent=43 // pred_check
        %p631 = pneg %p166
      $region46: #{spatial_encoder_transformer_forward.7} parent=43 // pred_check_branch
        %633 = sbr.rel (%p631) target = $region48
      $region47: #{spatial_encoder_transformer_forward.7} parent=43 // pred_region
        _
      $region48: #{spatial_encoder_transformer_forward.7} parent=43 // pred_fallthru
        _
    $region44: #{spatial_encoder_transformer_forward.7} parent=5 // pred_fallthru
      _
    %p634 = scmp.le.s32.totalorder 2, %s12
    // Predicated region
    $region49: #{spatial_encoder_transformer_forward.7} parent=5 // pred_check
      %p635 = pneg %p634
    $region50: #{spatial_encoder_transformer_forward.7} parent=5 // pred_check_branch
      %637 = sbr.rel (%p635) target = $region52
    $region51: #{spatial_encoder_transformer_forward.7} parent=5 // pred_region
      %s638 = ssub.s32 %s12, 2
      // Predicated region
      $region53: #{spatial_encoder_transformer_forward.7} parent=51 // pred_check
        %p639 = pneg %p172
      $region54: #{spatial_encoder_transformer_forward.7} parent=51 // pred_check_branch
        %641 = sbr.rel (%p639) target = $region56
      $region55: #{spatial_encoder_transformer_forward.7} parent=51 // pred_region
        %p642 = scmp.lt.s32.totalorder %s18, 1
        %s643 = scalar_select %p642, %s18, 1
        %s644 = smul.addr %s643, 8
        %s645 = smul.addr %s644, 8
        %s646 = scalar_lea.vmem %s6, %s645
      $region56: #{spatial_encoder_transformer_forward.7} parent=51 // pred_fallthru
        _
    $region52: #{spatial_encoder_transformer_forward.7} parent=5 // pred_fallthru
      _
  $region6: #{spatial_encoder_transformer_forward.7} parent=0 // loop_footer
    %s16 = sadd.s32 1, %s12
  $region7: #{spatial_encoder_transformer_forward.7} parent=0 // loop_footer_branch
    %11 = sbr.rel target = $region3
  $region8: #{spatial_encoder_transformer_forward.7} parent=0 // loop_exit
    _

// kernel: spatial_encoder_transformer_forward.10
$region0: #{spatial_encoder_transformer_forward.10}
  #allocation0 [shape = 'u32[]', space=smem, size = 0x4, offset = 0x4, fixed_abs, tag = 'smem constant byte address 0x4 - core index']
  #allocation1 [shape = 'u32[144,128]{1,0:T(1,128)}', space=vmem, size = 0x12000, scoped, tag = 'internal scratch']
  %s0 = inlined_call_operand.vmem [shape: f32[168,64], index: 0, kind: input, shape index: {}]
  %s1 = inlined_call_operand.vmem [shape: f32[168,64], index: 1, kind: input, shape index: {}]
  %s2 = inlined_call_operand.vmem [shape: f32[168,1], index: 2, kind: input, shape index: {}]
  %s3 = inlined_call_operand.vmem [shape: f32[168,128], index: 3, kind: input, shape index: {}]
  %s4 = inlined_call_operand.vmem [shape: f32[1,128], index: 4, kind: input, shape index: {}]
  %s5 = inlined_call_operand.vmem [shape: f32[1,128], index: 5, kind: input, shape index: {}]
  %s6 = inlined_call_operand.vmem [shape: f32[128,4], index: 6, kind: input, shape index: {}]
  %s7 = inlined_call_operand.vmem [shape: f32[4,128], index: 7, kind: input, shape index: {}]
  %s8 = inlined_call_operand.vmem [shape: bf16[64,128], index: 8, kind: input, shape index: {}]
  %s9 = inlined_call_operand.vmem [shape: f32[1,128], index: 9, kind: input, shape index: {}]
  %s10 = inlined_call_operand.vmem [shape: bf16[64,128], index: 10, kind: input, shape index: {}]
  %s11 = inlined_call_operand.vmem [shape: f32[1,128], index: 11, kind: input, shape index: {}]
  %s12 = inlined_call_operand.vmem [shape: f32[168,256], index: 12, kind: output, shape index: {}]
  %s13 = sld [smem:[#allocation0]]
  $region58: #{spatial_encoder_transformer_forward.10} parent=0
    _
  %s15 = ssub.s32 1, %s13
  %s16 = scalar_select 0, %s15, %s13
  // Predicated region
  $region2: #{spatial_encoder_transformer_forward.10} parent=0 // pred_check
    _
  $region3: #{spatial_encoder_transformer_forward.10} parent=0 // pred_check_branch
    %18 = sbr.rel (0) target = $region5
  $region4: #{spatial_encoder_transformer_forward.10} parent=0 // pred_region
    _
  $region5: #{spatial_encoder_transformer_forward.10} parent=0 // pred_fallthru
    _
  // Predicated region
  $region6: #{spatial_encoder_transformer_forward.10} parent=0 // pred_check
    _
  $region7: #{spatial_encoder_transformer_forward.10} parent=0 // pred_check_branch
    %20 = sbr.rel (0) target = $region9
  $region8: #{spatial_encoder_transformer_forward.10} parent=0 // pred_region
    _
  $region9: #{spatial_encoder_transformer_forward.10} parent=0 // pred_fallthru
    _
  // Predicated region
  $region10: #{spatial_encoder_transformer_forward.10} parent=0 // pred_check
    _
  $region11: #{spatial_encoder_transformer_forward.10} parent=0 // pred_check_branch
    %22 = sbr.rel (0) target = $region13
  $region12: #{spatial_encoder_transformer_forward.10} parent=0 // pred_region
    _
  $region13: #{spatial_encoder_transformer_forward.10} parent=0 // pred_fallthru
    _
  // Predicated region
  $region14: #{spatial_encoder_transformer_forward.10} parent=0 // pred_check
    _
  $region15: #{spatial_encoder_transformer_forward.10} parent=0 // pred_check_branch
    %24 = sbr.rel (0) target = $region17
  $region16: #{spatial_encoder_transformer_forward.10} parent=0 // pred_region
    _
  $region17: #{spatial_encoder_transformer_forward.10} parent=0 // pred_fallthru
    _
  // Predicated region
  $region18: #{spatial_encoder_transformer_forward.10} parent=0 // pred_check
    _
  $region19: #{spatial_encoder_transformer_forward.10} parent=0 // pred_check_branch
    %26 = sbr.rel (0) target = $region21
  $region20: #{spatial_encoder_transformer_forward.10} parent=0 // pred_region
    _
  $region21: #{spatial_encoder_transformer_forward.10} parent=0 // pred_fallthru
    _
  // Predicated region
  $region22: #{spatial_encoder_transformer_forward.10} parent=0 // pred_check
    _
  $region23: #{spatial_encoder_transformer_forward.10} parent=0 // pred_check_branch
    %28 = sbr.rel (0) target = $region25
  $region24: #{spatial_encoder_transformer_forward.10} parent=0 // pred_region
    _
  $region25: #{spatial_encoder_transformer_forward.10} parent=0 // pred_fallthru
    _
  // Predicated region
  $region26: #{spatial_encoder_transformer_forward.10} parent=0 // pred_check
    _
  $region27: #{spatial_encoder_transformer_forward.10} parent=0 // pred_check_branch
    %30 = sbr.rel (0) target = $region29
  $region28: #{spatial_encoder_transformer_forward.10} parent=0 // pred_region
    _
  $region29: #{spatial_encoder_transformer_forward.10} parent=0 // pred_fallthru
    _
  // Predicated region
  $region30: #{spatial_encoder_transformer_forward.10} parent=0 // pred_check
    _
  $region31: #{spatial_encoder_transformer_forward.10} parent=0 // pred_check_branch
    %32 = sbr.rel (0) target = $region33
  $region32: #{spatial_encoder_transformer_forward.10} parent=0 // pred_region
    _
  $region33: #{spatial_encoder_transformer_forward.10} parent=0 // pred_fallthru
    _
  // Predicated region
  $region34: #{spatial_encoder_transformer_forward.10} parent=0 // pred_check
    _
  $region35: #{spatial_encoder_transformer_forward.10} parent=0 // pred_check_branch
    %34 = sbr.rel (0) target = $region37
  $region36: #{spatial_encoder_transformer_forward.10} parent=0 // pred_region
    _
  $region37: #{spatial_encoder_transformer_forward.10} parent=0 // pred_fallthru
    _
  // Predicated region
  $region38: #{spatial_encoder_transformer_forward.10} parent=0 // pred_check
    _
  $region39: #{spatial_encoder_transformer_forward.10} parent=0 // pred_check_branch
    %36 = sbr.rel (0) target = $region41
  $region40: #{spatial_encoder_transformer_forward.10} parent=0 // pred_region
    _
  $region41: #{spatial_encoder_transformer_forward.10} parent=0 // pred_fallthru
    _
  // Predicated region
  $region42: #{spatial_encoder_transformer_forward.10} parent=0 // pred_check
    _
  $region43: #{spatial_encoder_transformer_forward.10} parent=0 // pred_check_branch
    %38 = sbr.rel (0) target = $region45
  $region44: #{spatial_encoder_transformer_forward.10} parent=0 // pred_region
    _
  $region45: #{spatial_encoder_transformer_forward.10} parent=0 // pred_fallthru
    _
  // Predicated region
  $region46: #{spatial_encoder_transformer_forward.10} parent=0 // pred_check
    _
  $region47: #{spatial_encoder_transformer_forward.10} parent=0 // pred_check_branch
    %40 = sbr.rel (0) target = $region49
  $region48: #{spatial_encoder_transformer_forward.10} parent=0 // pred_region
    _
  $region49: #{spatial_encoder_transformer_forward.10} parent=0 // pred_fallthru
    _
  %v42 = vld [vmem:[%s0] sm:$0xff]
  %v43 = vld [vmem:[%s0 + $0x8] sm:$0xff]
  %v44 = vld [vmem:[%s0 + $0x10] sm:$0xff]
  %v45 = vld [vmem:[%s0 + $0x18] sm:$0xff]
  %v46 = vld [vmem:[%s0 + $0x20] sm:$0xff]
  %v47 = vld [vmem:[%s0 + $0x28] sm:$0xff]
  %v48 = vld [vmem:[%s0 + $0x30] sm:$0xff]
  %v49 = vld [vmem:[%s0 + $0x38] sm:$0xff]
  %v50 = vld [vmem:[%s0 + $0x40] sm:$0xff]
  %v51 = vld [vmem:[%s0 + $0x48] sm:$0xff]
  %v52 = vld [vmem:[%s0 + $0x50] sm:$0xff]
  %v53 = vld [vmem:[%s0 + $0x58] sm:$0xff]
  %v54 = vld [vmem:[%s0 + $0x60] sm:$0xff]
  %v55 = vld [vmem:[%s0 + $0x68] sm:$0xff]
  %v56 = vld [vmem:[%s0 + $0x70] sm:$0xff]
  %v57 = vld [vmem:[%s0 + $0x78] sm:$0xff]
  %v58 = vld [vmem:[%s0 + $0x80] sm:$0xff]
  %v59 = vld [vmem:[%s0 + $0x88] sm:$0xff]
  %v60 = vld [vmem:[%s0 + $0x90] sm:$0xff]
  %v61 = vld [vmem:[%s0 + $0x98] sm:$0xff]
  %v62 = vld [vmem:[%s0 + $0xa0] sm:$0xff]
  %v63 = vld [vmem:[%s1] sm:$0xff]
  %v64 = vld [vmem:[%s1 + $0x8] sm:$0xff]
  %v65 = vld [vmem:[%s1 + $0x10] sm:$0xff]
  %v66 = vld [vmem:[%s1 + $0x18] sm:$0xff]
  %v67 = vld [vmem:[%s1 + $0x20] sm:$0xff]
  %v68 = vld [vmem:[%s1 + $0x28] sm:$0xff]
  %v69 = vld [vmem:[%s1 + $0x30] sm:$0xff]
  %v70 = vld [vmem:[%s1 + $0x38] sm:$0xff]
  %v71 = vld [vmem:[%s1 + $0x40] sm:$0xff]
  %v72 = vld [vmem:[%s1 + $0x48] sm:$0xff]
  %v73 = vld [vmem:[%s1 + $0x50] sm:$0xff]
  %v74 = vld [vmem:[%s1 + $0x58] sm:$0xff]
  %v75 = vld [vmem:[%s1 + $0x60] sm:$0xff]
  %v76 = vld [vmem:[%s1 + $0x68] sm:$0xff]
  %v77 = vld [vmem:[%s1 + $0x70] sm:$0xff]
  %v78 = vld [vmem:[%s1 + $0x78] sm:$0xff]
  %v79 = vld [vmem:[%s1 + $0x80] sm:$0xff]
  %v80 = vld [vmem:[%s1 + $0x88] sm:$0xff]
  %v81 = vld [vmem:[%s1 + $0x90] sm:$0xff]
  %v82 = vld [vmem:[%s1 + $0x98] sm:$0xff]
  %v83 = vld [vmem:[%s1 + $0xa0] sm:$0xff]
  %v84 = vadd.f32 %v42, %v63
  %v85 = vadd.f32 %v43, %v64
  %v86 = vadd.f32 %v44, %v65
  %v87 = vadd.f32 %v45, %v66
  %v88 = vadd.f32 %v46, %v67
  %v89 = vadd.f32 %v47, %v68
  %v90 = vadd.f32 %v48, %v69
  %v91 = vadd.f32 %v49, %v70
  %v92 = vadd.f32 %v50, %v71
  %v93 = vadd.f32 %v51, %v72
  %v94 = vadd.f32 %v52, %v73
  %v95 = vadd.f32 %v53, %v74
  %v96 = vadd.f32 %v54, %v75
  %v97 = vadd.f32 %v55, %v76
  %v98 = vadd.f32 %v56, %v77
  %v99 = vadd.f32 %v57, %v78
  %v100 = vadd.f32 %v58, %v79
  %v101 = vadd.f32 %v59, %v80
  %v102 = vadd.f32 %v60, %v81
  %v103 = vadd.f32 %v61, %v82
  %v104 = vadd.f32 %v62, %v83
  %v105 = vpack.c.bf16 %v43, %v42
  %v106 = vpack.c.bf16 %v45, %v44
  %v107 = vpack.c.bf16 %v47, %v46
  %v108 = vpack.c.bf16 %v49, %v48
  %v109 = vpack.c.bf16 %v51, %v50
  %v110 = vpack.c.bf16 %v53, %v52
  %v111 = vpack.c.bf16 %v55, %v54
  %v112 = vpack.c.bf16 %v57, %v56
  %v113 = vpack.c.bf16 %v59, %v58
  %v114 = vpack.c.bf16 %v61, %v60
  %v115 = vpack.c.bf16 %v62, %v62
  %v116 = vld [vmem:[%s8] sm:$0xf]
  %v117 = vld [vmem:[%s8 + $0x4] sm:$0xf]
  %v118 = vld [vmem:[%s8 + $0x8] sm:$0xf]
  %v119 = vld [vmem:[%s8 + $0xc] sm:$0xf]
  %v120 = vld [vmem:[%s8 + $0x10] sm:$0xf]
  %v121 = vld [vmem:[%s8 + $0x14] sm:$0xf]
  %v122 = vld [vmem:[%s8 + $0x18] sm:$0xf]
  %v123 = vld [vmem:[%s8 + $0x1c] sm:$0xf]
  %v124 = vld [vmem:[%s9] sm:$0x1]
  %v126 = vlaneseq
  %v127 = vshrl.u32 %v126, 7
  %v128 = vsub.s32 0, %v127
  %v129 = vrot.slane %v124, %v128
  %v139 = vunpack.c.l.b16 %v116
  %v140 = vunpack.c.l.b16 %v117
  %v141 = vunpack.c.l.b16 %v118
  %v142 = vunpack.c.l.b16 %v119
  %v143 = vunpack.c.l.b16 %v120
  %v144 = vunpack.c.l.b16 %v121
  %v145 = vunpack.c.l.b16 %v122
  %v146 = vunpack.c.l.b16 %v123
  %v147 = vpack.c.b16 %v140, %v139
  %v148 = vpack.c.b16 %v142, %v141
  %v149 = vpack.c.b16 %v144, %v143
  %v150 = vpack.c.b16 %v146, %v145
  %vm155 = vcmask 523264
  %v157 = vsel %vm155, %v105, 0
  %v160 = vsel %vm155, %v106, 0
  %v163 = vsel %vm155, %v107, 0
  %v166 = vsel %vm155, %v108, 0
  %v169 = vsel %vm155, %v109, 0
  %v172 = vsel %vm155, %v110, 0
  %v175 = vsel %vm155, %v111, 0
  %v178 = vsel %vm155, %v112, 0
  %v181 = vsel %vm155, %v113, 0
  %v184 = vsel %vm155, %v114, 0
  %v187 = vsel %vm155, %v115, 0
  %189 = vmatprep.subr.bf16.mxu0 0
  %190 = vmatpush1.bf16.msra.mxu0 %v147
  %191 = vmatprep.subr.bf16.mxu0 0
  %192 = vmatpush1.bf16.msra.mxu0 %v148
  %193 = vmatprep.subr.bf16.mxu0 0
  %194 = vmatpush1.bf16.msra.mxu0 %v149
  %195 = vmatprep.subr.bf16.mxu0 0
  %196 = vmatpush1.bf16.msra.mxu0 %v150
  %197 = vmatprep.subr.bf16.mxu0 0
  %198 = vmatpush1.bf16.msra.mxu0 0
  %199 = vmatprep.subr.bf16.mxu0 0
  %200 = vmatpush1.bf16.msra.mxu0 0
  %201 = vmatprep.subr.bf16.mxu0 0
  %202 = vmatpush1.bf16.msra.mxu0 0
  %203 = vmatprep.subr.bf16.mxu0 0
  %204 = vmatpush1.bf16.msra.mxu0 0
  %205 = vmatprep.subr.bf16.mxu0 0
  %206 = vmatpush1.bf16.msra.mxu0 0
  %207 = vmatprep.subr.bf16.mxu0 0
  %208 = vmatpush1.bf16.msra.mxu0 0
  %209 = vmatprep.subr.bf16.mxu0 0
  %210 = vmatpush1.bf16.msra.mxu0 0
  %211 = vmatprep.subr.bf16.mxu0 0
  %212 = vmatpush1.bf16.msra.mxu0 0
  %213 = vmatprep.subr.bf16.mxu0 0
  %214 = vmatpush1.bf16.msra.mxu0 0
  %215 = vmatprep.subr.bf16.mxu0 0
  %216 = vmatpush1.bf16.msra.mxu0 0
  %217 = vmatprep.subr.bf16.mxu0 0
  %218 = vmatpush1.bf16.msra.mxu0 0
  %219 = vmatprep.subr.bf16.mxu0 0
  %220 = vmatpush1.bf16.msra.mxu0 0
  %221 = vmatprep.mubr.bf16.mxu0 0
  %222 = vmatmul.mubr.bf16.gmra.mrb[0].mxu0 %v157
  %v223 = vpop.f32.mrb[0].mxu0
  %v224 = vadd.f32 %v129, %v223
  %v225 = vpop.f32.mrb[0].mxu0
  %v226 = vpop.f32.mrb[0].mxu0
  %v227 = vadd.f32 %v129, %v226
  %v228 = vpop.f32.mrb[0].mxu0
  %229 = vmatprep.mubr.bf16.mxu0 0
  %230 = vmatmul.mubr.bf16.gmra.mrb[0].mxu0 %v160
  %v231 = vpop.f32.mrb[0].mxu0
  %v232 = vadd.f32 %v129, %v231
  %v233 = vpop.f32.mrb[0].mxu0
  %v234 = vpop.f32.mrb[0].mxu0
  %v235 = vadd.f32 %v129, %v234
  %v236 = vpop.f32.mrb[0].mxu0
  %237 = vmatprep.mubr.bf16.mxu0 0
  %238 = vmatmul.mubr.bf16.gmra.mrb[0].mxu0 %v163
  %v239 = vpop.f32.mrb[0].mxu0
  %v240 = vadd.f32 %v129, %v239
  %v241 = vpop.f32.mrb[0].mxu0
  %v242 = vpop.f32.mrb[0].mxu0
  %v243 = vadd.f32 %v129, %v242
  %v244 = vpop.f32.mrb[0].mxu0
  %245 = vmatprep.mubr.bf16.mxu0 0
  %246 = vmatmul.mubr.bf16.gmra.mrb[0].mxu0 %v166
  %v247 = vpop.f32.mrb[0].mxu0
  %v248 = vadd.f32 %v129, %v247
  %v249 = vpop.f32.mrb[0].mxu0
  %v250 = vpop.f32.mrb[0].mxu0
  %v251 = vadd.f32 %v129, %v250
  %v252 = vpop.f32.mrb[0].mxu0
  %253 = vmatprep.mubr.bf16.mxu0 0
  %254 = vmatmul.mubr.bf16.gmra.mrb[0].mxu0 %v169
  %v255 = vpop.f32.mrb[0].mxu0
  %v256 = vadd.f32 %v129, %v255
  %v257 = vpop.f32.mrb[0].mxu0
  %v258 = vpop.f32.mrb[0].mxu0
  %v259 = vadd.f32 %v129, %v258
  %v260 = vpop.f32.mrb[0].mxu0
  %261 = vmatprep.mubr.bf16.mxu0 0
  %262 = vmatmul.mubr.bf16.gmra.mrb[0].mxu0 %v172
  %v263 = vpop.f32.mrb[0].mxu0
  %v264 = vadd.f32 %v129, %v263
  %v265 = vpop.f32.mrb[0].mxu0
  %v266 = vpop.f32.mrb[0].mxu0
  %v267 = vadd.f32 %v129, %v266
  %v268 = vpop.f32.mrb[0].mxu0
  %269 = vmatprep.mubr.bf16.mxu0 0
  %270 = vmatmul.mubr.bf16.gmra.mrb[0].mxu0 %v175
  %v271 = vpop.f32.mrb[0].mxu0
  %v272 = vadd.f32 %v129, %v271
  %v273 = vpop.f32.mrb[0].mxu0
  %v274 = vpop.f32.mrb[0].mxu0
  %v275 = vadd.f32 %v129, %v274
  %v276 = vpop.f32.mrb[0].mxu0
  %277 = vmatprep.mubr.bf16.mxu0 0
  %278 = vmatmul.mubr.bf16.gmra.mrb[0].mxu0 %v178
  %v279 = vpop.f32.mrb[0].mxu0
  %v280 = vadd.f32 %v129, %v279
  %v281 = vpop.f32.mrb[0].mxu0
  %v282 = vpop.f32.mrb[0].mxu0
  %v283 = vadd.f32 %v129, %v282
  %v284 = vpop.f32.mrb[0].mxu0
  %285 = vmatprep.mubr.bf16.mxu0 0
  %286 = vmatmul.mubr.bf16.gmra.mrb[0].mxu0 %v181
  %v287 = vpop.f32.mrb[0].mxu0
  %v288 = vadd.f32 %v129, %v287
  %v289 = vpop.f32.mrb[0].mxu0
  %v290 = vpop.f32.mrb[0].mxu0
  %v291 = vadd.f32 %v129, %v290
  %v292 = vpop.f32.mrb[0].mxu0
  %293 = vmatprep.mubr.bf16.mxu0 0
  %294 = vmatmul.mubr.bf16.gmra.mrb[0].mxu0 %v184
  %v295 = vpop.f32.mrb[0].mxu0
  %v296 = vadd.f32 %v129, %v295
  %v297 = vpop.f32.mrb[0].mxu0
  %v298 = vpop.f32.mrb[0].mxu0
  %v299 = vadd.f32 %v129, %v298
  %v300 = vpop.f32.mrb[0].mxu0
  %301 = vmatprep.mubr.bf16.mxu0 0
  %302 = vmatmul.mubr.bf16.gmra.mrb[0].mxu0 %v187
  %v303 = vpop.f32.mrb[0].mxu0
  %v304 = vadd.f32 %v129, %v303
  %v305 = vpop.f32.mrb[0].mxu0
  %v306 = vpop.f32.mrb[0].mxu0
  %v307 = vpop.f32.mrb[0].mxu0
  %308 = vdwg.mxu0
  %v309 = vld [vmem:[%s2] sm:$0xff]
  %v310 = vld [vmem:[%s2 + $0x8] sm:$0xff]
  %v311 = vld [vmem:[%s2 + $0x10] sm:$0xff]
  %v312 = vld [vmem:[%s2 + $0x18] sm:$0xff]
  %v313 = vld [vmem:[%s2 + $0x20] sm:$0xff]
  %v314 = vld [vmem:[%s2 + $0x28] sm:$0xff]
  %v315 = vld [vmem:[%s2 + $0x30] sm:$0xff]
  %v316 = vld [vmem:[%s2 + $0x38] sm:$0xff]
  %v317 = vld [vmem:[%s2 + $0x40] sm:$0xff]
  %v318 = vld [vmem:[%s2 + $0x48] sm:$0xff]
  %v319 = vld [vmem:[%s2 + $0x50] sm:$0xff]
  %v320 = vld [vmem:[%s2 + $0x58] sm:$0xff]
  %v321 = vld [vmem:[%s2 + $0x60] sm:$0xff]
  %v322 = vld [vmem:[%s2 + $0x68] sm:$0xff]
  %v323 = vld [vmem:[%s2 + $0x70] sm:$0xff]
  %v324 = vld [vmem:[%s2 + $0x78] sm:$0xff]
  %v325 = vld [vmem:[%s2 + $0x80] sm:$0xff]
  %v326 = vld [vmem:[%s2 + $0x88] sm:$0xff]
  %v327 = vld [vmem:[%s2 + $0x90] sm:$0xff]
  %v328 = vld [vmem:[%s2 + $0x98] sm:$0xff]
  %v329 = vld [vmem:[%s2 + $0xa0] sm:$0xff]
  %331 = vset.pattern.permute.xlu0 0
  %332 = vperm.xlu0 %331, %v309
  %v333 = vpop.permute.xlu0 %332
  %336 = vset.pattern.permute.xlu0 0
  %337 = vperm.xlu0 %336, %v310
  %v338 = vpop.permute.xlu0 %337
  %341 = vset.pattern.permute.xlu0 0
  %342 = vperm.xlu0 %341, %v311
  %v343 = vpop.permute.xlu0 %342
  %346 = vset.pattern.permute.xlu0 0
  %347 = vperm.xlu0 %346, %v312
  %v348 = vpop.permute.xlu0 %347
  %351 = vset.pattern.permute.xlu0 0
  %352 = vperm.xlu0 %351, %v313
  %v353 = vpop.permute.xlu0 %352
  %356 = vset.pattern.permute.xlu0 0
  %357 = vperm.xlu0 %356, %v314
  %v358 = vpop.permute.xlu0 %357
  %361 = vset.pattern.permute.xlu0 0
  %362 = vperm.xlu0 %361, %v315
  %v363 = vpop.permute.xlu0 %362
  %366 = vset.pattern.permute.xlu0 0
  %367 = vperm.xlu0 %366, %v316
  %v368 = vpop.permute.xlu0 %367
  %371 = vset.pattern.permute.xlu0 0
  %372 = vperm.xlu0 %371, %v317
  %v373 = vpop.permute.xlu0 %372
  %376 = vset.pattern.permute.xlu0 0
  %377 = vperm.xlu0 %376, %v318
  %v378 = vpop.permute.xlu0 %377
  %381 = vset.pattern.permute.xlu0 0
  %382 = vperm.xlu0 %381, %v319
  %v383 = vpop.permute.xlu0 %382
  %386 = vset.pattern.permute.xlu0 0
  %387 = vperm.xlu0 %386, %v320
  %v388 = vpop.permute.xlu0 %387
  %391 = vset.pattern.permute.xlu0 0
  %392 = vperm.xlu0 %391, %v321
  %v393 = vpop.permute.xlu0 %392
  %396 = vset.pattern.permute.xlu0 0
  %397 = vperm.xlu0 %396, %v322
  %v398 = vpop.permute.xlu0 %397
  %401 = vset.pattern.permute.xlu0 0
  %402 = vperm.xlu0 %401, %v323
  %v403 = vpop.permute.xlu0 %402
  %406 = vset.pattern.permute.xlu0 0
  %407 = vperm.xlu0 %406, %v324
  %v408 = vpop.permute.xlu0 %407
  %411 = vset.pattern.permute.xlu0 0
  %412 = vperm.xlu0 %411, %v325
  %v413 = vpop.permute.xlu0 %412
  %416 = vset.pattern.permute.xlu0 0
  %417 = vperm.xlu0 %416, %v326
  %v418 = vpop.permute.xlu0 %417
  %421 = vset.pattern.permute.xlu0 0
  %422 = vperm.xlu0 %421, %v327
  %v423 = vpop.permute.xlu0 %422
  %426 = vset.pattern.permute.xlu0 0
  %427 = vperm.xlu0 %426, %v328
  %v428 = vpop.permute.xlu0 %427
  %431 = vset.pattern.permute.xlu0 0
  %432 = vperm.xlu0 %431, %v329
  %v433 = vpop.permute.xlu0 %432
  %v435 = vmul.f32 %v224, %v333
  %v436 = vmul.f32 %v227, %v338
  %v437 = vmul.f32 %v232, %v343
  %v438 = vmul.f32 %v235, %v348
  %v439 = vmul.f32 %v240, %v353
  %v440 = vmul.f32 %v243, %v358
  %v441 = vmul.f32 %v248, %v363
  %v442 = vmul.f32 %v251, %v368
  %v443 = vmul.f32 %v256, %v373
  %v444 = vmul.f32 %v259, %v378
  %v445 = vmul.f32 %v264, %v383
  %v446 = vmul.f32 %v267, %v388
  %v447 = vmul.f32 %v272, %v393
  %v448 = vmul.f32 %v275, %v398
  %v449 = vmul.f32 %v280, %v403
  %v450 = vmul.f32 %v283, %v408
  %v451 = vmul.f32 %v288, %v413
  %v452 = vmul.f32 %v291, %v418
  %v453 = vmul.f32 %v296, %v423
  %v454 = vmul.f32 %v299, %v428
  %v455 = vmul.f32 %v304, %v433
  %v456 = vpack.c.bf16 %v85, %v84
  %v457 = vpack.c.bf16 %v87, %v86
  %v458 = vpack.c.bf16 %v89, %v88
  %v459 = vpack.c.bf16 %v91, %v90
  %v460 = vpack.c.bf16 %v93, %v92
  %v461 = vpack.c.bf16 %v95, %v94
  %v462 = vpack.c.bf16 %v97, %v96
  %v463 = vpack.c.bf16 %v99, %v98
  %v464 = vpack.c.bf16 %v101, %v100
  %v465 = vpack.c.bf16 %v103, %v102
  %v466 = vpack.c.bf16 %v104, %v104
  %v467 = vld [vmem:[%s10] sm:$0xf]
  %v468 = vld [vmem:[%s10 + $0x4] sm:$0xf]
  %v469 = vld [vmem:[%s10 + $0x8] sm:$0xf]
  %v470 = vld [vmem:[%s10 + $0xc] sm:$0xf]
  %v471 = vld [vmem:[%s10 + $0x10] sm:$0xf]
  %v472 = vld [vmem:[%s10 + $0x14] sm:$0xf]
  %v473 = vld [vmem:[%s10 + $0x18] sm:$0xf]
  %v474 = vld [vmem:[%s10 + $0x1c] sm:$0xf]
  %v475 = vld [vmem:[%s11] sm:$0x1]
  %v477 = vlaneseq
  %v478 = vshrl.u32 %v477, 7
  %v479 = vsub.s32 0, %v478
  %v480 = vrot.slane %v475, %v479
  %v490 = vunpack.c.l.b16 %v467
  %v491 = vunpack.c.l.b16 %v468
  %v492 = vunpack.c.l.b16 %v469
  %v493 = vunpack.c.l.b16 %v470
  %v494 = vunpack.c.l.b16 %v471
  %v495 = vunpack.c.l.b16 %v472
  %v496 = vunpack.c.l.b16 %v473
  %v497 = vunpack.c.l.b16 %v474
  %v498 = vpack.c.b16 %v491, %v490
  %v499 = vpack.c.b16 %v493, %v492
  %v500 = vpack.c.b16 %v495, %v494
  %v501 = vpack.c.b16 %v497, %v496
  %v507 = vsel %vm155, %v456, 0
  %v510 = vsel %vm155, %v457, 0
  %v513 = vsel %vm155, %v458, 0
  %v516 = vsel %vm155, %v459, 0
  %v519 = vsel %vm155, %v460, 0
  %v522 = vsel %vm155, %v461, 0
  %v525 = vsel %vm155, %v462, 0
  %v528 = vsel %vm155, %v463, 0
  %v531 = vsel %vm155, %v464, 0
  %v534 = vsel %vm155, %v465, 0
  %v537 = vsel %vm155, %v466, 0
  %539 = vmatprep.subr.bf16.mxu0 0
  %540 = vmatpush1.bf16.msra.mxu0 %v498
  %541 = vmatprep.subr.bf16.mxu0 0
  %542 = vmatpush1.bf16.msra.mxu0 %v499
  %543 = vmatprep.subr.bf16.mxu0 0
  %544 = vmatpush1.bf16.msra.mxu0 %v500
  %545 = vmatprep.subr.bf16.mxu0 0
  %546 = vmatpush1.bf16.msra.mxu0 %v501
  %547 = vmatprep.subr.bf16.mxu0 0
  %548 = vmatpush1.bf16.msra.mxu0 0
  %549 = vmatprep.subr.bf16.mxu0 0
  %550 = vmatpush1.bf16.msra.mxu0 0
  %551 = vmatprep.subr.bf16.mxu0 0
  %552 = vmatpush1.bf16.msra.mxu0 0
  %553 = vmatprep.subr.bf16.mxu0 0
  %554 = vmatpush1.bf16.msra.mxu0 0
  %555 = vmatprep.subr.bf16.mxu0 0
  %556 = vmatpush1.bf16.msra.mxu0 0
  %557 = vmatprep.subr.bf16.mxu0 0
  %558 = vmatpush1.bf16.msra.mxu0 0
  %559 = vmatprep.subr.bf16.mxu0 0
  %560 = vmatpush1.bf16.msra.mxu0 0
  %561 = vmatprep.subr.bf16.mxu0 0
  %562 = vmatpush1.bf16.msra.mxu0 0
  %563 = vmatprep.subr.bf16.mxu0 0
  %564 = vmatpush1.bf16.msra.mxu0 0
  %565 = vmatprep.subr.bf16.mxu0 0
  %566 = vmatpush1.bf16.msra.mxu0 0
  %567 = vmatprep.subr.bf16.mxu0 0
  %568 = vmatpush1.bf16.msra.mxu0 0
  %569 = vmatprep.subr.bf16.mxu0 0
  %570 = vmatpush1.bf16.msra.mxu0 0
  %571 = vmatprep.mubr.bf16.mxu0 0
  %572 = vmatmul.mubr.bf16.gmra.mrb[0].mxu0 %v507
  %v573 = vpop.f32.mrb[0].mxu0
  %v574 = vadd.f32 %v480, %v573
  %v575 = vpop.f32.mrb[0].mxu0
  %v576 = vpop.f32.mrb[0].mxu0
  %v577 = vadd.f32 %v480, %v576
  %v578 = vpop.f32.mrb[0].mxu0
  %579 = vmatprep.mubr.bf16.mxu0 0
  %580 = vmatmul.mubr.bf16.gmra.mrb[0].mxu0 %v510
  %v581 = vpop.f32.mrb[0].mxu0
  %v582 = vadd.f32 %v480, %v581
  %v583 = vpop.f32.mrb[0].mxu0
  %v584 = vpop.f32.mrb[0].mxu0
  %v585 = vadd.f32 %v480, %v584
  %v586 = vpop.f32.mrb[0].mxu0
  %587 = vmatprep.mubr.bf16.mxu0 0
  %588 = vmatmul.mubr.bf16.gmra.mrb[0].mxu0 %v513
  %v589 = vpop.f32.mrb[0].mxu0
  %v590 = vadd.f32 %v480, %v589
  %v591 = vpop.f32.mrb[0].mxu0
  %v592 = vpop.f32.mrb[0].mxu0
  %v593 = vadd.f32 %v480, %v592
  %v594 = vpop.f32.mrb[0].mxu0
  %595 = vmatprep.mubr.bf16.mxu0 0
  %596 = vmatmul.mubr.bf16.gmra.mrb[0].mxu0 %v516
  %v597 = vpop.f32.mrb[0].mxu0
  %v598 = vadd.f32 %v480, %v597
  %v599 = vpop.f32.mrb[0].mxu0
  %v600 = vpop.f32.mrb[0].mxu0
  %v601 = vadd.f32 %v480, %v600
  %v602 = vpop.f32.mrb[0].mxu0
  %603 = vmatprep.mubr.bf16.mxu0 0
  %604 = vmatmul.mubr.bf16.gmra.mrb[0].mxu0 %v519
  %v605 = vpop.f32.mrb[0].mxu0
  %v606 = vadd.f32 %v480, %v605
  %v607 = vpop.f32.mrb[0].mxu0
  %v608 = vpop.f32.mrb[0].mxu0
  %v609 = vadd.f32 %v480, %v608
  %v610 = vpop.f32.mrb[0].mxu0
  %611 = vmatprep.mubr.bf16.mxu0 0
  %612 = vmatmul.mubr.bf16.gmra.mrb[0].mxu0 %v522
  %v613 = vpop.f32.mrb[0].mxu0
  %v614 = vadd.f32 %v480, %v613
  %v615 = vpop.f32.mrb[0].mxu0
  %v616 = vpop.f32.mrb[0].mxu0
  %v617 = vadd.f32 %v480, %v616
  %v618 = vpop.f32.mrb[0].mxu0
  %619 = vmatprep.mubr.bf16.mxu0 0
  %620 = vmatmul.mubr.bf16.gmra.mrb[0].mxu0 %v525
  %v621 = vpop.f32.mrb[0].mxu0
  %v622 = vadd.f32 %v480, %v621
  %v623 = vpop.f32.mrb[0].mxu0
  %v624 = vpop.f32.mrb[0].mxu0
  %v625 = vadd.f32 %v480, %v624
  %v626 = vpop.f32.mrb[0].mxu0
  %627 = vmatprep.mubr.bf16.mxu0 0
  %628 = vmatmul.mubr.bf16.gmra.mrb[0].mxu0 %v528
  %v629 = vpop.f32.mrb[0].mxu0
  %v630 = vadd.f32 %v480, %v629
  %v631 = vpop.f32.mrb[0].mxu0
  %v632 = vpop.f32.mrb[0].mxu0
  %v633 = vadd.f32 %v480, %v632
  %v634 = vpop.f32.mrb[0].mxu0
  %635 = vmatprep.mubr.bf16.mxu0 0
  %636 = vmatmul.mubr.bf16.gmra.mrb[0].mxu0 %v531
  %v637 = vpop.f32.mrb[0].mxu0
  %v638 = vadd.f32 %v480, %v637
  %v639 = vpop.f32.mrb[0].mxu0
  %v640 = vpop.f32.mrb[0].mxu0
  %v641 = vadd.f32 %v480, %v640
  %v642 = vpop.f32.mrb[0].mxu0
  %643 = vmatprep.mubr.bf16.mxu0 0
  %644 = vmatmul.mubr.bf16.gmra.mrb[0].mxu0 %v534
  %v645 = vpop.f32.mrb[0].mxu0
  %v646 = vadd.f32 %v480, %v645
  %v647 = vpop.f32.mrb[0].mxu0
  %v648 = vpop.f32.mrb[0].mxu0
  %v649 = vadd.f32 %v480, %v648
  %v650 = vpop.f32.mrb[0].mxu0
  %651 = vmatprep.mubr.bf16.mxu0 0
  %652 = vmatmul.mubr.bf16.gmra.mrb[0].mxu0 %v537
  %v653 = vpop.f32.mrb[0].mxu0
  %v654 = vadd.f32 %v480, %v653
  %v655 = vpop.f32.mrb[0].mxu0
  %v656 = vpop.f32.mrb[0].mxu0
  %v657 = vpop.f32.mrb[0].mxu0
  %658 = vdwg.mxu0
  %v659 = vld [vmem:[%s5] sm:$0x1]
  %v660 = vld [vmem:[%s3] sm:$0xff]
  %v661 = vld [vmem:[%s3 + $0x8] sm:$0xff]
  %v662 = vld [vmem:[%s3 + $0x10] sm:$0xff]
  %v663 = vld [vmem:[%s3 + $0x18] sm:$0xff]
  %v664 = vld [vmem:[%s3 + $0x20] sm:$0xff]
  %v665 = vld [vmem:[%s3 + $0x28] sm:$0xff]
  %v666 = vld [vmem:[%s3 + $0x30] sm:$0xff]
  %v667 = vld [vmem:[%s3 + $0x38] sm:$0xff]
  %v668 = vld [vmem:[%s3 + $0x40] sm:$0xff]
  %v669 = vld [vmem:[%s3 + $0x48] sm:$0xff]
  %v670 = vld [vmem:[%s3 + $0x50] sm:$0xff]
  %v671 = vld [vmem:[%s3 + $0x58] sm:$0xff]
  %v672 = vld [vmem:[%s3 + $0x60] sm:$0xff]
  %v673 = vld [vmem:[%s3 + $0x68] sm:$0xff]
  %v674 = vld [vmem:[%s3 + $0x70] sm:$0xff]
  %v675 = vld [vmem:[%s3 + $0x78] sm:$0xff]
  %v676 = vld [vmem:[%s3 + $0x80] sm:$0xff]
  %v677 = vld [vmem:[%s3 + $0x88] sm:$0xff]
  %v678 = vld [vmem:[%s3 + $0x90] sm:$0xff]
  %v679 = vld [vmem:[%s3 + $0x98] sm:$0xff]
  %v680 = vld [vmem:[%s3 + $0xa0] sm:$0xff]
  %v681 = vld [vmem:[%s4] sm:$0x1]
  %v683 = vlaneseq
  %v684 = vshrl.u32 %v683, 7
  %v685 = vsub.s32 0, %v684
  %v686 = vrot.slane %v681, %v685
  %v688 = vmul.f32 %v574, %v686
  %v689 = vmul.f32 %v577, %v686
  %v690 = vmul.f32 %v582, %v686
  %v691 = vmul.f32 %v585, %v686
  %v692 = vmul.f32 %v590, %v686
  %v693 = vmul.f32 %v593, %v686
  %v694 = vmul.f32 %v598, %v686
  %v695 = vmul.f32 %v601, %v686
  %v696 = vmul.f32 %v606, %v686
  %v697 = vmul.f32 %v609, %v686
  %v698 = vmul.f32 %v614, %v686
  %v699 = vmul.f32 %v617, %v686
  %v700 = vmul.f32 %v622, %v686
  %v701 = vmul.f32 %v625, %v686
  %v702 = vmul.f32 %v630, %v686
  %v703 = vmul.f32 %v633, %v686
  %v704 = vmul.f32 %v638, %v686
  %v705 = vmul.f32 %v641, %v686
  %v706 = vmul.f32 %v646, %v686
  %v707 = vmul.f32 %v649, %v686
  %v708 = vmul.f32 %v654, %v686
  %v709 = vadd.f32 %v660, %v688
  %v710 = vadd.f32 %v661, %v689
  %v711 = vadd.f32 %v662, %v690
  %v712 = vadd.f32 %v663, %v691
  %v713 = vadd.f32 %v664, %v692
  %v714 = vadd.f32 %v665, %v693
  %v715 = vadd.f32 %v666, %v694
  %v716 = vadd.f32 %v667, %v695
  %v717 = vadd.f32 %v668, %v696
  %v718 = vadd.f32 %v669, %v697
  %v719 = vadd.f32 %v670, %v698
  %v720 = vadd.f32 %v671, %v699
  %v721 = vadd.f32 %v672, %v700
  %v722 = vadd.f32 %v673, %v701
  %v723 = vadd.f32 %v674, %v702
  %v724 = vadd.f32 %v675, %v703
  %v725 = vadd.f32 %v676, %v704
  %v726 = vadd.f32 %v677, %v705
  %v727 = vadd.f32 %v678, %v706
  %v728 = vadd.f32 %v679, %v707
  %v729 = vadd.f32 %v680, %v708
  %vm730 = vcmp.gt.f32.partialorder %v659, 0.0
  %v731 = vsel %vm730, 1, 0
  %v732 = vlaneseq
  %v733 = vshrl.u32 %v732, 7
  %v734 = vsub.s32 0, %v733
  %v735 = vrot.slane %v731, %v734
  %vm736 = vcmp.eq.s32.totalorder %v735, 1
  %v737 = vsel %vm736, %v574, -1e+30
  %v738 = vsel %vm736, %v577, -1e+30
  %v739 = vsel %vm736, %v582, -1e+30
  %v740 = vsel %vm736, %v585, -1e+30
  %v741 = vsel %vm736, %v590, -1e+30
  %v742 = vsel %vm736, %v593, -1e+30
  %v743 = vsel %vm736, %v598, -1e+30
  %v744 = vsel %vm736, %v601, -1e+30
  %v745 = vsel %vm736, %v606, -1e+30
  %v746 = vsel %vm736, %v609, -1e+30
  %v747 = vsel %vm736, %v614, -1e+30
  %v748 = vsel %vm736, %v617, -1e+30
  %v749 = vsel %vm736, %v622, -1e+30
  %v750 = vsel %vm736, %v625, -1e+30
  %v751 = vsel %vm736, %v630, -1e+30
  %v752 = vsel %vm736, %v633, -1e+30
  %v753 = vsel %vm736, %v638, -1e+30
  %v754 = vsel %vm736, %v641, -1e+30
  %v755 = vsel %vm736, %v646, -1e+30
  %v756 = vsel %vm736, %v649, -1e+30
  %v757 = vsel %vm736, %v654, -1e+30
  %758 = vmax.xlane.f32.xlu0 %v737
  %v759 = vpop.xlane.xlu0 %758
  %760 = vmax.xlane.f32.xlu0 %v738
  %v761 = vpop.xlane.xlu0 %760
  %762 = vmax.xlane.f32.xlu0 %v739
  %v763 = vpop.xlane.xlu0 %762
  %764 = vmax.xlane.f32.xlu0 %v740
  %v765 = vpop.xlane.xlu0 %764
  %766 = vmax.xlane.f32.xlu0 %v741
  %v767 = vpop.xlane.xlu0 %766
  %768 = vmax.xlane.f32.xlu0 %v742
  %v769 = vpop.xlane.xlu0 %768
  %770 = vmax.xlane.f32.xlu0 %v743
  %v771 = vpop.xlane.xlu0 %770
  %772 = vmax.xlane.f32.xlu0 %v744
  %v773 = vpop.xlane.xlu0 %772
  %774 = vmax.xlane.f32.xlu0 %v745
  %v775 = vpop.xlane.xlu0 %774
  %776 = vmax.xlane.f32.xlu0 %v746
  %v777 = vpop.xlane.xlu0 %776
  %778 = vmax.xlane.f32.xlu0 %v747
  %v779 = vpop.xlane.xlu0 %778
  %780 = vmax.xlane.f32.xlu0 %v748
  %v781 = vpop.xlane.xlu0 %780
  %782 = vmax.xlane.f32.xlu0 %v749
  %v783 = vpop.xlane.xlu0 %782
  %784 = vmax.xlane.f32.xlu0 %v750
  %v785 = vpop.xlane.xlu0 %784
  %786 = vmax.xlane.f32.xlu0 %v751
  %v787 = vpop.xlane.xlu0 %786
  %788 = vmax.xlane.f32.xlu0 %v752
  %v789 = vpop.xlane.xlu0 %788
  %790 = vmax.xlane.f32.xlu0 %v753
  %v791 = vpop.xlane.xlu0 %790
  %792 = vmax.xlane.f32.xlu0 %v754
  %v793 = vpop.xlane.xlu0 %792
  %794 = vmax.xlane.f32.xlu0 %v755
  %v795 = vpop.xlane.xlu0 %794
  %796 = vmax.xlane.f32.xlu0 %v756
  %v797 = vpop.xlane.xlu0 %796
  %798 = vmax.xlane.f32.xlu0 %v757
  %v799 = vpop.xlane.xlu0 %798
  %v800 = vsub.f32 %v737, %v759
  %v801 = vsub.f32 %v738, %v761
  %v802 = vsub.f32 %v739, %v763
  %v803 = vsub.f32 %v740, %v765
  %v804 = vsub.f32 %v741, %v767
  %v805 = vsub.f32 %v742, %v769
  %v806 = vsub.f32 %v743, %v771
  %v807 = vsub.f32 %v744, %v773
  %v808 = vsub.f32 %v745, %v775
  %v809 = vsub.f32 %v746, %v777
  %v810 = vsub.f32 %v747, %v779
  %v811 = vsub.f32 %v748, %v781
  %v812 = vsub.f32 %v749, %v783
  %v813 = vsub.f32 %v750, %v785
  %v814 = vsub.f32 %v751, %v787
  %v815 = vsub.f32 %v752, %v789
  %v816 = vsub.f32 %v753, %v791
  %v817 = vsub.f32 %v754, %v793
  %v818 = vsub.f32 %v755, %v795
  %v819 = vsub.f32 %v756, %v797
  %v820 = vsub.f32 %v757, %v799
  %v821 = vmul.f32 %v800, 1.442695
  %v822 = vpow.pop %v821
  %v823 = vmul.f32 %v801, 1.442695
  %v824 = vpow.pop %v823
  %v825 = vmul.f32 %v802, 1.442695
  %v826 = vpow.pop %v825
  %v827 = vmul.f32 %v803, 1.442695
  %v828 = vpow.pop %v827
  %v829 = vmul.f32 %v804, 1.442695
  %v830 = vpow.pop %v829
  %v831 = vmul.f32 %v805, 1.442695
  %v832 = vpow.pop %v831
  %v833 = vmul.f32 %v806, 1.442695
  %v834 = vpow.pop %v833
  %v835 = vmul.f32 %v807, 1.442695
  %v836 = vpow.pop %v835
  %v837 = vmul.f32 %v808, 1.442695
  %v838 = vpow.pop %v837
  %v839 = vmul.f32 %v809, 1.442695
  %v840 = vpow.pop %v839
  %v841 = vmul.f32 %v810, 1.442695
  %v842 = vpow.pop %v841
  %v843 = vmul.f32 %v811, 1.442695
  %v844 = vpow.pop %v843
  %v845 = vmul.f32 %v812, 1.442695
  %v846 = vpow.pop %v845
  %v847 = vmul.f32 %v813, 1.442695
  %v848 = vpow.pop %v847
  %v849 = vmul.f32 %v814, 1.442695
  %v850 = vpow.pop %v849
  %v851 = vmul.f32 %v815, 1.442695
  %v852 = vpow.pop %v851
  %v853 = vmul.f32 %v816, 1.442695
  %v854 = vpow.pop %v853
  %v855 = vmul.f32 %v817, 1.442695
  %v856 = vpow.pop %v855
  %v857 = vmul.f32 %v818, 1.442695
  %v858 = vpow.pop %v857
  %v859 = vmul.f32 %v819, 1.442695
  %v860 = vpow.pop %v859
  %v861 = vmul.f32 %v820, 1.442695
  %v862 = vpow.pop %v861
  %v863 = vld [vmem:[%s6] sm:$0xff]
  %v864 = vld [vmem:[%s6 + $0x8] sm:$0xff]
  %v865 = vld [vmem:[%s6 + $0x10] sm:$0xff]
  %v866 = vld [vmem:[%s6 + $0x18] sm:$0xff]
  %v867 = vld [vmem:[%s6 + $0x20] sm:$0xff]
  %v868 = vld [vmem:[%s6 + $0x28] sm:$0xff]
  %v869 = vld [vmem:[%s6 + $0x30] sm:$0xff]
  %v870 = vld [vmem:[%s6 + $0x38] sm:$0xff]
  %v871 = vld [vmem:[%s6 + $0x40] sm:$0xff]
  %v872 = vld [vmem:[%s6 + $0x48] sm:$0xff]
  %v873 = vld [vmem:[%s6 + $0x50] sm:$0xff]
  %v874 = vld [vmem:[%s6 + $0x58] sm:$0xff]
  %v875 = vld [vmem:[%s6 + $0x60] sm:$0xff]
  %v876 = vld [vmem:[%s6 + $0x68] sm:$0xff]
  %v877 = vld [vmem:[%s6 + $0x70] sm:$0xff]
  %v878 = vld [vmem:[%s6 + $0x78] sm:$0xff]
  %879 = vmatprep.subr.mxu0 0.0
  %880 = vmatpush1.msra.mxu0 %v863
  %881 = vmatprep.subr.mxu0 0.0
  %882 = vmatpush1.msra.mxu0 %v864
  %883 = vmatprep.subr.mxu0 0.0
  %884 = vmatpush1.msra.mxu0 %v865
  %885 = vmatprep.subr.mxu0 0.0
  %886 = vmatpush1.msra.mxu0 %v866
  %887 = vmatprep.subr.mxu0 0.0
  %888 = vmatpush1.msra.mxu0 %v867
  %889 = vmatprep.subr.mxu0 0.0
  %890 = vmatpush1.msra.mxu0 %v868
  %891 = vmatprep.subr.mxu0 0.0
  %892 = vmatpush1.msra.mxu0 %v869
  %893 = vmatprep.subr.mxu0 0.0
  %894 = vmatpush1.msra.mxu0 %v870
  %895 = vmatprep.subr.mxu0 0.0
  %896 = vmatpush1.msra.mxu0 %v871
  %897 = vmatprep.subr.mxu0 0.0
  %898 = vmatpush1.msra.mxu0 %v872
  %899 = vmatprep.subr.mxu0 0.0
  %900 = vmatpush1.msra.mxu0 %v873
  %901 = vmatprep.subr.mxu0 0.0
  %902 = vmatpush1.msra.mxu0 %v874
  %903 = vmatprep.subr.mxu0 0.0
  %904 = vmatpush1.msra.mxu0 %v875
  %905 = vmatprep.subr.mxu0 0.0
  %906 = vmatpush1.msra.mxu0 %v876
  %907 = vmatprep.subr.mxu0 0.0
  %908 = vmatpush1.msra.mxu0 %v877
  %909 = vmatprep.subr.mxu0 0.0
  %910 = vmatpush1.msra.mxu0 %v878
  %911 = vmatprep.subr.mxu0 0.0
  %912 = vmatpush1.msra.mxu0 0.0
  %913 = vmatprep.subr.mxu0 0.0
  %914 = vmatpush1.msra.mxu0 0.0
  %915 = vmatprep.subr.mxu0 0.0
  %916 = vmatpush1.msra.mxu0 0.0
  %917 = vmatprep.subr.mxu0 0.0
  %918 = vmatpush1.msra.mxu0 0.0
  %919 = vmatprep.subr.mxu0 0.0
  %920 = vmatpush1.msra.mxu0 0.0
  %921 = vmatprep.subr.mxu0 0.0
  %922 = vmatpush1.msra.mxu0 0.0
  %923 = vmatprep.subr.mxu0 0.0
  %924 = vmatpush1.msra.mxu0 0.0
  %925 = vmatprep.subr.mxu0 0.0
  %926 = vmatpush1.msra.mxu0 0.0
  %927 = vmatprep.subr.mxu0 0.0
  %928 = vmatpush1.msra.mxu0 0.0
  %929 = vmatprep.subr.mxu0 0.0
  %930 = vmatpush1.msra.mxu0 0.0
  %931 = vmatprep.subr.mxu0 0.0
  %932 = vmatpush1.msra.mxu0 0.0
  %933 = vmatprep.subr.mxu0 0.0
  %934 = vmatpush1.msra.mxu0 0.0
  %935 = vmatprep.subr.mxu0 0.0
  %936 = vmatpush1.msra.mxu0 0.0
  %937 = vmatprep.subr.mxu0 0.0
  %938 = vmatpush1.msra.mxu0 0.0
  %939 = vmatprep.subr.mxu0 0.0
  %940 = vmatpush1.msra.mxu0 0.0
  %941 = vmatprep.subr.mxu0 0.0
  %942 = vmatpush1.msra.mxu0 0.0
  %943 = vmatprep.mubr.f32.mxu0 0.0
  %944 = vmatmul.mubr.f32.gmra.mrb[0].mxu0 %v822
  %v945 = vpop.f32.mrb[0].mxu0
  %v946 = vadd.f32 0.0, %v945
  %v947 = vpop.f32.mrb[0].mxu0
  %948 = vmatprep.mubr.f32.mxu0 0.0
  %949 = vmatmul.mubr.f32.gmra.mrb[0].mxu0 %v824
  %v950 = vpop.f32.mrb[0].mxu0
  %v951 = vadd.f32 0.0, %v950
  %v952 = vpop.f32.mrb[0].mxu0
  %953 = vmatprep.mubr.f32.mxu0 0.0
  %954 = vmatmul.mubr.f32.gmra.mrb[0].mxu0 %v826
  %v955 = vpop.f32.mrb[0].mxu0
  %v956 = vadd.f32 0.0, %v955
  %v957 = vpop.f32.mrb[0].mxu0
  %958 = vmatprep.mubr.f32.mxu0 0.0
  %959 = vmatmul.mubr.f32.gmra.mrb[0].mxu0 %v828
  %v960 = vpop.f32.mrb[0].mxu0
  %v961 = vadd.f32 0.0, %v960
  %v962 = vpop.f32.mrb[0].mxu0
  %963 = vmatprep.mubr.f32.mxu0 0.0
  %964 = vmatmul.mubr.f32.gmra.mrb[0].mxu0 %v830
  %v965 = vpop.f32.mrb[0].mxu0
  %v966 = vadd.f32 0.0, %v965
  %v967 = vpop.f32.mrb[0].mxu0
  %968 = vmatprep.mubr.f32.mxu0 0.0
  %969 = vmatmul.mubr.f32.gmra.mrb[0].mxu0 %v832
  %v970 = vpop.f32.mrb[0].mxu0
  %v971 = vadd.f32 0.0, %v970
  %v972 = vpop.f32.mrb[0].mxu0
  %973 = vmatprep.mubr.f32.mxu0 0.0
  %974 = vmatmul.mubr.f32.gmra.mrb[0].mxu0 %v834
  %v975 = vpop.f32.mrb[0].mxu0
  %v976 = vadd.f32 0.0, %v975
  %v977 = vpop.f32.mrb[0].mxu0
  %978 = vmatprep.mubr.f32.mxu0 0.0
  %979 = vmatmul.mubr.f32.gmra.mrb[0].mxu0 %v836
  %v980 = vpop.f32.mrb[0].mxu0
  %v981 = vadd.f32 0.0, %v980
  %v982 = vpop.f32.mrb[0].mxu0
  %983 = vmatprep.mubr.f32.mxu0 0.0
  %984 = vmatmul.mubr.f32.gmra.mrb[0].mxu0 %v838
  %v985 = vpop.f32.mrb[0].mxu0
  %v986 = vadd.f32 0.0, %v985
  %v987 = vpop.f32.mrb[0].mxu0
  %988 = vmatprep.mubr.f32.mxu0 0.0
  %989 = vmatmul.mubr.f32.gmra.mrb[0].mxu0 %v840
  %v990 = vpop.f32.mrb[0].mxu0
  %v991 = vadd.f32 0.0, %v990
  %v992 = vpop.f32.mrb[0].mxu0
  %993 = vmatprep.mubr.f32.mxu0 0.0
  %994 = vmatmul.mubr.f32.gmra.mrb[0].mxu0 %v842
  %v995 = vpop.f32.mrb[0].mxu0
  %v996 = vadd.f32 0.0, %v995
  %v997 = vpop.f32.mrb[0].mxu0
  %998 = vmatprep.mubr.f32.mxu0 0.0
  %999 = vmatmul.mubr.f32.gmra.mrb[0].mxu0 %v844
  %v1000 = vpop.f32.mrb[0].mxu0
  %v1001 = vadd.f32 0.0, %v1000
  %v1002 = vpop.f32.mrb[0].mxu0
  %1003 = vmatprep.mubr.f32.mxu0 0.0
  %1004 = vmatmul.mubr.f32.gmra.mrb[0].mxu0 %v846
  %v1005 = vpop.f32.mrb[0].mxu0
  %v1006 = vadd.f32 0.0, %v1005
  %v1007 = vpop.f32.mrb[0].mxu0
  %1008 = vmatprep.mubr.f32.mxu0 0.0
  %1009 = vmatmul.mubr.f32.gmra.mrb[0].mxu0 %v848
  %v1010 = vpop.f32.mrb[0].mxu0
  %v1011 = vadd.f32 0.0, %v1010
  %v1012 = vpop.f32.mrb[0].mxu0
  %1013 = vmatprep.mubr.f32.mxu0 0.0
  %1014 = vmatmul.mubr.f32.gmra.mrb[0].mxu0 %v850
  %v1015 = vpop.f32.mrb[0].mxu0
  %v1016 = vadd.f32 0.0, %v1015
  %v1017 = vpop.f32.mrb[0].mxu0
  %1018 = vmatprep.mubr.f32.mxu0 0.0
  %1019 = vmatmul.mubr.f32.gmra.mrb[0].mxu0 %v852
  %v1020 = vpop.f32.mrb[0].mxu0
  %v1021 = vadd.f32 0.0, %v1020
  %v1022 = vpop.f32.mrb[0].mxu0
  %1023 = vmatprep.mubr.f32.mxu0 0.0
  %1024 = vmatmul.mubr.f32.gmra.mrb[0].mxu0 %v854
  %v1025 = vpop.f32.mrb[0].mxu0
  %v1026 = vadd.f32 0.0, %v1025
  %v1027 = vpop.f32.mrb[0].mxu0
  %1028 = vmatprep.mubr.f32.mxu0 0.0
  %1029 = vmatmul.mubr.f32.gmra.mrb[0].mxu0 %v856
  %v1030 = vpop.f32.mrb[0].mxu0
  %v1031 = vadd.f32 0.0, %v1030
  %v1032 = vpop.f32.mrb[0].mxu0
  %1033 = vmatprep.mubr.f32.mxu0 0.0
  %1034 = vmatmul.mubr.f32.gmra.mrb[0].mxu0 %v858
  %v1035 = vpop.f32.mrb[0].mxu0
  %v1036 = vadd.f32 0.0, %v1035
  %v1037 = vpop.f32.mrb[0].mxu0
  %1038 = vmatprep.mubr.f32.mxu0 0.0
  %1039 = vmatmul.mubr.f32.gmra.mrb[0].mxu0 %v860
  %v1040 = vpop.f32.mrb[0].mxu0
  %v1041 = vadd.f32 0.0, %v1040
  %v1042 = vpop.f32.mrb[0].mxu0
  %1043 = vmatprep.mubr.f32.mxu0 0.0
  %1044 = vmatmul.mubr.f32.gmra.mrb[0].mxu0 %v862
  %v1045 = vpop.f32.mrb[0].mxu0
  %v1046 = vadd.f32 0.0, %v1045
  %v1047 = vpop.f32.mrb[0].mxu0
  %1048 = vdwg.mxu0
  %v1049 = vld [vmem:[%s7] sm:$0xf]
  %vm1050 = vcmask 31744
  %v1052 = vsel %vm1050, %v946, 0
  %v1055 = vsel %vm1050, %v951, 0
  %v1058 = vsel %vm1050, %v956, 0
  %v1061 = vsel %vm1050, %v961, 0
  %v1064 = vsel %vm1050, %v966, 0
  %v1067 = vsel %vm1050, %v971, 0
  %v1070 = vsel %vm1050, %v976, 0
  %v1073 = vsel %vm1050, %v981, 0
  %v1076 = vsel %vm1050, %v986, 0
  %v1079 = vsel %vm1050, %v991, 0
  %v1082 = vsel %vm1050, %v996, 0
  %v1085 = vsel %vm1050, %v1001, 0
  %v1088 = vsel %vm1050, %v1006, 0
  %v1091 = vsel %vm1050, %v1011, 0
  %v1094 = vsel %vm1050, %v1016, 0
  %v1097 = vsel %vm1050, %v1021, 0
  %v1100 = vsel %vm1050, %v1026, 0
  %v1103 = vsel %vm1050, %v1031, 0
  %v1106 = vsel %vm1050, %v1036, 0
  %v1109 = vsel %vm1050, %v1041, 0
  %v1112 = vsel %vm1050, %v1046, 0
  %vm1114 = vcmask 1043456
  %v1116 = vsel %vm1114, %v1049, 0
  %1118 = vmatprep.subr.mxu0 0.0
  %1119 = vmatpush1.msra.mxu0 %v1116
  %1120 = vmatprep.subr.mxu0 0.0
  %1121 = vmatpush1.msra.mxu0 0.0
  %1122 = vmatprep.subr.mxu0 0.0
  %1123 = vmatpush1.msra.mxu0 0.0
  %1124 = vmatprep.subr.mxu0 0.0
  %1125 = vmatpush1.msra.mxu0 0.0
  %1126 = vmatprep.subr.mxu0 0.0
  %1127 = vmatpush1.msra.mxu0 0.0
  %1128 = vmatprep.subr.mxu0 0.0
  %1129 = vmatpush1.msra.mxu0 0.0
  %1130 = vmatprep.subr.mxu0 0.0
  %1131 = vmatpush1.msra.mxu0 0.0
  %1132 = vmatprep.subr.mxu0 0.0
  %1133 = vmatpush1.msra.mxu0 0.0
  %1134 = vmatprep.subr.mxu0 0.0
  %1135 = vmatpush1.msra.mxu0 0.0
  %1136 = vmatprep.subr.mxu0 0.0
  %1137 = vmatpush1.msra.mxu0 0.0
  %1138 = vmatprep.subr.mxu0 0.0
  %1139 = vmatpush1.msra.mxu0 0.0
  %1140 = vmatprep.subr.mxu0 0.0
  %1141 = vmatpush1.msra.mxu0 0.0
  %1142 = vmatprep.subr.mxu0 0.0
  %1143 = vmatpush1.msra.mxu0 0.0
  %1144 = vmatprep.subr.mxu0 0.0
  %1145 = vmatpush1.msra.mxu0 0.0
  %1146 = vmatprep.subr.mxu0 0.0
  %1147 = vmatpush1.msra.mxu0 0.0
  %1148 = vmatprep.subr.mxu0 0.0
  %1149 = vmatpush1.msra.mxu0 0.0
  %1150 = vmatprep.subr.mxu0 0.0
  %1151 = vmatpush1.msra.mxu0 0.0
  %1152 = vmatprep.subr.mxu0 0.0
  %1153 = vmatpush1.msra.mxu0 0.0
  %1154 = vmatprep.subr.mxu0 0.0
  %1155 = vmatpush1.msra.mxu0 0.0
  %1156 = vmatprep.subr.mxu0 0.0
  %1157 = vmatpush1.msra.mxu0 0.0
  %1158 = vmatprep.subr.mxu0 0.0
  %1159 = vmatpush1.msra.mxu0 0.0
  %1160 = vmatprep.subr.mxu0 0.0
  %1161 = vmatpush1.msra.mxu0 0.0
  %1162 = vmatprep.subr.mxu0 0.0
  %1163 = vmatpush1.msra.mxu0 0.0
  %1164 = vmatprep.subr.mxu0 0.0
  %1165 = vmatpush1.msra.mxu0 0.0
  %1166 = vmatprep.subr.mxu0 0.0
  %1167 = vmatpush1.msra.mxu0 0.0
  %1168 = vmatprep.subr.mxu0 0.0
  %1169 = vmatpush1.msra.mxu0 0.0
  %1170 = vmatprep.subr.mxu0 0.0
  %1171 = vmatpush1.msra.mxu0 0.0
  %1172 = vmatprep.subr.mxu0 0.0
  %1173 = vmatpush1.msra.mxu0 0.0
  %1174 = vmatprep.subr.mxu0 0.0
  %1175 = vmatpush1.msra.mxu0 0.0
  %1176 = vmatprep.subr.mxu0 0.0
  %1177 = vmatpush1.msra.mxu0 0.0
  %1178 = vmatprep.subr.mxu0 0.0
  %1179 = vmatpush1.msra.mxu0 0.0
  %1180 = vmatprep.subr.mxu0 0.0
  %1181 = vmatpush1.msra.mxu0 0.0
  %1182 = vmatprep.mubr.f32.mxu0 0.0
  %1183 = vmatmul.mubr.f32.gmra.mrb[0].mxu0 %v1052
  %v1184 = vpop.f32.mrb[0].mxu0
  %v1185 = vadd.f32 0.0, %v1184
  %v1186 = vpop.f32.mrb[0].mxu0
  %1187 = vmatprep.mubr.f32.mxu0 0.0
  %1188 = vmatmul.mubr.f32.gmra.mrb[0].mxu0 %v1055
  %v1189 = vpop.f32.mrb[0].mxu0
  %v1190 = vadd.f32 0.0, %v1189
  %v1191 = vpop.f32.mrb[0].mxu0
  %1192 = vmatprep.mubr.f32.mxu0 0.0
  %1193 = vmatmul.mubr.f32.gmra.mrb[0].mxu0 %v1058
  %v1194 = vpop.f32.mrb[0].mxu0
  %v1195 = vadd.f32 0.0, %v1194
  %v1196 = vpop.f32.mrb[0].mxu0
  %1197 = vmatprep.mubr.f32.mxu0 0.0
  %1198 = vmatmul.mubr.f32.gmra.mrb[0].mxu0 %v1061
  %v1199 = vpop.f32.mrb[0].mxu0
  %v1200 = vadd.f32 0.0, %v1199
  %v1201 = vpop.f32.mrb[0].mxu0
  %1202 = vmatprep.mubr.f32.mxu0 0.0
  %1203 = vmatmul.mubr.f32.gmra.mrb[0].mxu0 %v1064
  %v1204 = vpop.f32.mrb[0].mxu0
  %v1205 = vadd.f32 0.0, %v1204
  %v1206 = vpop.f32.mrb[0].mxu0
  %1207 = vmatprep.mubr.f32.mxu0 0.0
  %1208 = vmatmul.mubr.f32.gmra.mrb[0].mxu0 %v1067
  %v1209 = vpop.f32.mrb[0].mxu0
  %v1210 = vadd.f32 0.0, %v1209
  %v1211 = vpop.f32.mrb[0].mxu0
  %1212 = vmatprep.mubr.f32.mxu0 0.0
  %1213 = vmatmul.mubr.f32.gmra.mrb[0].mxu0 %v1070
  %v1214 = vpop.f32.mrb[0].mxu0
  %v1215 = vadd.f32 0.0, %v1214
  %v1216 = vpop.f32.mrb[0].mxu0
  %1217 = vmatprep.mubr.f32.mxu0 0.0
  %1218 = vmatmul.mubr.f32.gmra.mrb[0].mxu0 %v1073
  %v1219 = vpop.f32.mrb[0].mxu0
  %v1220 = vadd.f32 0.0, %v1219
  %v1221 = vpop.f32.mrb[0].mxu0
  %1222 = vmatprep.mubr.f32.mxu0 0.0
  %1223 = vmatmul.mubr.f32.gmra.mrb[0].mxu0 %v1076
  %v1224 = vpop.f32.mrb[0].mxu0
  %v1225 = vadd.f32 0.0, %v1224
  %v1226 = vpop.f32.mrb[0].mxu0
  %1227 = vmatprep.mubr.f32.mxu0 0.0
  %1228 = vmatmul.mubr.f32.gmra.mrb[0].mxu0 %v1079
  %v1229 = vpop.f32.mrb[0].mxu0
  %v1230 = vadd.f32 0.0, %v1229
  %v1231 = vpop.f32.mrb[0].mxu0
  %1232 = vmatprep.mubr.f32.mxu0 0.0
  %1233 = vmatmul.mubr.f32.gmra.mrb[0].mxu0 %v1082
  %v1234 = vpop.f32.mrb[0].mxu0
  %v1235 = vadd.f32 0.0, %v1234
  %v1236 = vpop.f32.mrb[0].mxu0
  %1237 = vmatprep.mubr.f32.mxu0 0.0
  %1238 = vmatmul.mubr.f32.gmra.mrb[0].mxu0 %v1085
  %v1239 = vpop.f32.mrb[0].mxu0
  %v1240 = vadd.f32 0.0, %v1239
  %v1241 = vpop.f32.mrb[0].mxu0
  %1242 = vmatprep.mubr.f32.mxu0 0.0
  %1243 = vmatmul.mubr.f32.gmra.mrb[0].mxu0 %v1088
  %v1244 = vpop.f32.mrb[0].mxu0
  %v1245 = vadd.f32 0.0, %v1244
  %v1246 = vpop.f32.mrb[0].mxu0
  %1247 = vmatprep.mubr.f32.mxu0 0.0
  %1248 = vmatmul.mubr.f32.gmra.mrb[0].mxu0 %v1091
  %v1249 = vpop.f32.mrb[0].mxu0
  %v1250 = vadd.f32 0.0, %v1249
  %v1251 = vpop.f32.mrb[0].mxu0
  %1252 = vmatprep.mubr.f32.mxu0 0.0
  %1253 = vmatmul.mubr.f32.gmra.mrb[0].mxu0 %v1094
  %v1254 = vpop.f32.mrb[0].mxu0
  %v1255 = vadd.f32 0.0, %v1254
  %v1256 = vpop.f32.mrb[0].mxu0
  %1257 = vmatprep.mubr.f32.mxu0 0.0
  %1258 = vmatmul.mubr.f32.gmra.mrb[0].mxu0 %v1097
  %v1259 = vpop.f32.mrb[0].mxu0
  %v1260 = vadd.f32 0.0, %v1259
  %v1261 = vpop.f32.mrb[0].mxu0
  %1262 = vmatprep.mubr.f32.mxu0 0.0
  %1263 = vmatmul.mubr.f32.gmra.mrb[0].mxu0 %v1100
  %v1264 = vpop.f32.mrb[0].mxu0
  %v1265 = vadd.f32 0.0, %v1264
  %v1266 = vpop.f32.mrb[0].mxu0
  %1267 = vmatprep.mubr.f32.mxu0 0.0
  %1268 = vmatmul.mubr.f32.gmra.mrb[0].mxu0 %v1103
  %v1269 = vpop.f32.mrb[0].mxu0
  %v1270 = vadd.f32 0.0, %v1269
  %v1271 = vpop.f32.mrb[0].mxu0
  %1272 = vmatprep.mubr.f32.mxu0 0.0
  %1273 = vmatmul.mubr.f32.gmra.mrb[0].mxu0 %v1106
  %v1274 = vpop.f32.mrb[0].mxu0
  %v1275 = vadd.f32 0.0, %v1274
  %v1276 = vpop.f32.mrb[0].mxu0
  %1277 = vmatprep.mubr.f32.mxu0 0.0
  %1278 = vmatmul.mubr.f32.gmra.mrb[0].mxu0 %v1109
  %v1279 = vpop.f32.mrb[0].mxu0
  %v1280 = vadd.f32 0.0, %v1279
  %v1281 = vpop.f32.mrb[0].mxu0
  %1282 = vmatprep.mubr.f32.mxu0 0.0
  %1283 = vmatmul.mubr.f32.gmra.mrb[0].mxu0 %v1112
  %v1284 = vpop.f32.mrb[0].mxu0
  %v1285 = vadd.f32 0.0, %v1284
  %v1286 = vpop.f32.mrb[0].mxu0
  %1287 = vdwg.mxu0
  %v1288 = vmax.f32 %v1185, 1e-30
  %v1289 = vmax.f32 %v1190, 1e-30
  %v1290 = vmax.f32 %v1195, 1e-30
  %v1291 = vmax.f32 %v1200, 1e-30
  %v1292 = vmax.f32 %v1205, 1e-30
  %v1293 = vmax.f32 %v1210, 1e-30
  %v1294 = vmax.f32 %v1215, 1e-30
  %v1295 = vmax.f32 %v1220, 1e-30
  %v1296 = vmax.f32 %v1225, 1e-30
  %v1297 = vmax.f32 %v1230, 1e-30
  %v1298 = vmax.f32 %v1235, 1e-30
  %v1299 = vmax.f32 %v1240, 1e-30
  %v1300 = vmax.f32 %v1245, 1e-30
  %v1301 = vmax.f32 %v1250, 1e-30
  %v1302 = vmax.f32 %v1255, 1e-30
  %v1303 = vmax.f32 %v1260, 1e-30
  %v1304 = vmax.f32 %v1265, 1e-30
  %v1305 = vmax.f32 %v1270, 1e-30
  %v1306 = vmax.f32 %v1275, 1e-30
  %v1307 = vmax.f32 %v1280, 1e-30
  %v1308 = vmax.f32 %v1285, 1e-30
  %v1309 = vsel %vm736, %v1288, 1.0
  %v1310 = vsel %vm736, %v1289, 1.0
  %v1311 = vsel %vm736, %v1290, 1.0
  %v1312 = vsel %vm736, %v1291, 1.0
  %v1313 = vsel %vm736, %v1292, 1.0
  %v1314 = vsel %vm736, %v1293, 1.0
  %v1315 = vsel %vm736, %v1294, 1.0
  %v1316 = vsel %vm736, %v1295, 1.0
  %v1317 = vsel %vm736, %v1296, 1.0
  %v1318 = vsel %vm736, %v1297, 1.0
  %v1319 = vsel %vm736, %v1298, 1.0
  %v1320 = vsel %vm736, %v1299, 1.0
  %v1321 = vsel %vm736, %v1300, 1.0
  %v1322 = vsel %vm736, %v1301, 1.0
  %v1323 = vsel %vm736, %v1302, 1.0
  %v1324 = vsel %vm736, %v1303, 1.0
  %v1325 = vsel %vm736, %v1304, 1.0
  %v1326 = vsel %vm736, %v1305, 1.0
  %v1327 = vsel %vm736, %v1306, 1.0
  %v1328 = vsel %vm736, %v1307, 1.0
  %v1329 = vsel %vm736, %v1308, 1.0
  %v1330 = vrcp.pop %v1309
  %v1331 = vrcp.pop %v1310
  %v1332 = vrcp.pop %v1311
  %v1333 = vrcp.pop %v1312
  %v1334 = vrcp.pop %v1313
  %v1335 = vrcp.pop %v1314
  %v1336 = vrcp.pop %v1315
  %v1337 = vrcp.pop %v1316
  %v1338 = vrcp.pop %v1317
  %v1339 = vrcp.pop %v1318
  %v1340 = vrcp.pop %v1319
  %v1341 = vrcp.pop %v1320
  %v1342 = vrcp.pop %v1321
  %v1343 = vrcp.pop %v1322
  %v1344 = vrcp.pop %v1323
  %v1345 = vrcp.pop %v1324
  %v1346 = vrcp.pop %v1325
  %v1347 = vrcp.pop %v1326
  %v1348 = vrcp.pop %v1327
  %v1349 = vrcp.pop %v1328
  %v1350 = vrcp.pop %v1329
  %v1351 = vmul.f32 %v822, %v1330
  %v1352 = vmul.f32 %v824, %v1331
  %v1353 = vmul.f32 %v826, %v1332
  %v1354 = vmul.f32 %v828, %v1333
  %v1355 = vmul.f32 %v830, %v1334
  %v1356 = vmul.f32 %v832, %v1335
  %v1357 = vmul.f32 %v834, %v1336
  %v1358 = vmul.f32 %v836, %v1337
  %v1359 = vmul.f32 %v838, %v1338
  %v1360 = vmul.f32 %v840, %v1339
  %v1361 = vmul.f32 %v842, %v1340
  %v1362 = vmul.f32 %v844, %v1341
  %v1363 = vmul.f32 %v846, %v1342
  %v1364 = vmul.f32 %v848, %v1343
  %v1365 = vmul.f32 %v850, %v1344
  %v1366 = vmul.f32 %v852, %v1345
  %v1367 = vmul.f32 %v854, %v1346
  %v1368 = vmul.f32 %v856, %v1347
  %v1369 = vmul.f32 %v858, %v1348
  %v1370 = vmul.f32 %v860, %v1349
  %v1371 = vmul.f32 %v862, %v1350
  %1372 = vst [vmem:[%s12] sm:$0xff] %v435
  %1373 = vst [vmem:[%s12 + $0x10] sm:$0xff] %v436
  %1374 = vst [vmem:[%s12 + $0x20] sm:$0xff] %v437
  %1375 = vst [vmem:[%s12 + $0x30] sm:$0xff] %v438
  %1376 = vst [vmem:[%s12 + $0x40] sm:$0xff] %v439
  %1377 = vst [vmem:[%s12 + $0x50] sm:$0xff] %v440
  %1378 = vst [vmem:[%s12 + $0x60] sm:$0xff] %v441
  %1379 = vst [vmem:[%s12 + $0x70] sm:$0xff] %v442
  %1380 = vst [vmem:[%s12 + $0x80] sm:$0xff] %v443
  %1381 = vst [vmem:[%s12 + $0x90] sm:$0xff] %v444
  %1382 = vst [vmem:[%s12 + $0xa0] sm:$0xff] %v445
  %1383 = vst [vmem:[%s12 + $0xb0] sm:$0xff] %v446
  %1384 = vst [vmem:[%s12 + $0xc0] sm:$0xff] %v447
  %1385 = vst [vmem:[%s12 + $0xd0] sm:$0xff] %v448
  %1386 = vst [vmem:[%s12 + $0xe0] sm:$0xff] %v449
  %1387 = vst [vmem:[%s12 + $0xf0] sm:$0xff] %v450
  %1388 = vst [vmem:[%s12 + $0x100] sm:$0xff] %v451
  %1389 = vst [vmem:[%s12 + $0x110] sm:$0xff] %v452
  %1390 = vst [vmem:[%s12 + $0x120] sm:$0xff] %v453
  %1391 = vst [vmem:[%s12 + $0x130] sm:$0xff] %v454
  %1392 = vst [vmem:[%s12 + $0x140] sm:$0xff] %v455
  %v1393 = vsel %vm736, %v1351, %v709
  %v1394 = vsel %vm736, %v1352, %v710
  %v1395 = vsel %vm736, %v1353, %v711
  %v1396 = vsel %vm736, %v1354, %v712
  %v1397 = vsel %vm736, %v1355, %v713
  %v1398 = vsel %vm736, %v1356, %v714
  %v1399 = vsel %vm736, %v1357, %v715
  %v1400 = vsel %vm736, %v1358, %v716
  %v1401 = vsel %vm736, %v1359, %v717
  %v1402 = vsel %vm736, %v1360, %v718
  %v1403 = vsel %vm736, %v1361, %v719
  %v1404 = vsel %vm736, %v1362, %v720
  %v1405 = vsel %vm736, %v1363, %v721
  %v1406 = vsel %vm736, %v1364, %v722
  %v1407 = vsel %vm736, %v1365, %v723
  %v1408 = vsel %vm736, %v1366, %v724
  %v1409 = vsel %vm736, %v1367, %v725
  %v1410 = vsel %vm736, %v1368, %v726
  %v1411 = vsel %vm736, %v1369, %v727
  %v1412 = vsel %vm736, %v1370, %v728
  %v1413 = vsel %vm736, %v1371, %v729
  %1414 = vst [vmem:[%s12 + $0x8] sm:$0xff] %v1393
  %1415 = vst [vmem:[%s12 + $0x18] sm:$0xff] %v1394
  %1416 = vst [vmem:[%s12 + $0x28] sm:$0xff] %v1395
  %1417 = vst [vmem:[%s12 + $0x38] sm:$0xff] %v1396
  %1418 = vst [vmem:[%s12 + $0x48] sm:$0xff] %v1397
  %1419 = vst [vmem:[%s12 + $0x58] sm:$0xff] %v1398
  %1420 = vst [vmem:[%s12 + $0x68] sm:$0xff] %v1399
  %1421 = vst [vmem:[%s12 + $0x78] sm:$0xff] %v1400
  %1422 = vst [vmem:[%s12 + $0x88] sm:$0xff] %v1401
  %1423 = vst [vmem:[%s12 + $0x98] sm:$0xff] %v1402
  %1424 = vst [vmem:[%s12 + $0xa8] sm:$0xff] %v1403
  %1425 = vst [vmem:[%s12 + $0xb8] sm:$0xff] %v1404
  %1426 = vst [vmem:[%s12 + $0xc8] sm:$0xff] %v1405
  %1427 = vst [vmem:[%s12 + $0xd8] sm:$0xff] %v1406
  %1428 = vst [vmem:[%s12 + $0xe8] sm:$0xff] %v1407
  %1429 = vst [vmem:[%s12 + $0xf8] sm:$0xff] %v1408
  %1430 = vst [vmem:[%s12 + $0x108] sm:$0xff] %v1409
  %1431 = vst [vmem:[%s12 + $0x118] sm:$0xff] %v1410
  %1432 = vst [vmem:[%s12 + $0x128] sm:$0xff] %v1411
  %1433 = vst [vmem:[%s12 + $0x138] sm:$0xff] %v1412
  %1434 = vst [vmem:[%s12 + $0x148] sm:$0xff] %v1413
  // Predicated region
  $region50: #{spatial_encoder_transformer_forward.10} parent=0 // pred_check
    _
  $region51: #{spatial_encoder_transformer_forward.10} parent=0 // pred_check_branch
    %1436 = sbr.rel (0) target = $region53
  $region52: #{spatial_encoder_transformer_forward.10} parent=0 // pred_region
    _
  $region53: #{spatial_encoder_transformer_forward.10} parent=0 // pred_fallthru
    _
  // Predicated region
  $region54: #{spatial_encoder_transformer_forward.10} parent=0 // pred_check
    _
  $region55: #{spatial_encoder_transformer_forward.10} parent=0 // pred_check_branch
    %1438 = sbr.rel (0) target = $region57
  $region56: #{spatial_encoder_transformer_forward.10} parent=0 // pred_region
    _
  $region57: #{spatial_encoder_transformer_forward.10} parent=0 // pred_fallthru
    _

// kernel: spatial_encoder_transformer_forward.11
$region0: #{spatial_encoder_transformer_forward.11}
  #allocation0 [shape = 'u32[]', space=smem, size = 0x4, offset = 0x4, fixed_abs, tag = 'smem constant byte address 0x4 - core index']
  #allocation1 [shape = 'u32[144,128]{1,0:T(1,128)}', space=vmem, size = 0x12000, scoped, tag = 'internal scratch']
  %s0 = inlined_call_operand.vmem [shape: f32[168,64], index: 0, kind: input, shape index: {}]
  %s1 = inlined_call_operand.vmem [shape: f32[168,64], index: 1, kind: input, shape index: {}]
  %s2 = inlined_call_operand.vmem [shape: bf16[64,64], index: 2, kind: input, shape index: {}]
  %s3 = inlined_call_operand.vmem [shape: f32[1,64], index: 3, kind: input, shape index: {}]
  %s4 = inlined_call_operand.vmem [shape: f32[1,64], index: 4, kind: input, shape index: {}]
  %s5 = inlined_call_operand.vmem [shape: f32[1,64], index: 5, kind: input, shape index: {}]
  %s6 = inlined_call_operand.vmem [shape: bf16[64,128], index: 6, kind: input, shape index: {}]
  %s7 = inlined_call_operand.vmem [shape: f32[1,128], index: 7, kind: input, shape index: {}]
  %s8 = inlined_call_operand.vmem [shape: bf16[128,64], index: 8, kind: input, shape index: {}]
  %s9 = inlined_call_operand.vmem [shape: f32[1,64], index: 9, kind: input, shape index: {}]
  %s10 = inlined_call_operand.vmem [shape: f32[1,64], index: 10, kind: input, shape index: {}]
  %s11 = inlined_call_operand.vmem [shape: f32[1,64], index: 11, kind: input, shape index: {}]
  %s12 = inlined_call_operand.vmem [shape: f32[168,64], index: 12, kind: output, shape index: {}]
  %s13 = sld [smem:[#allocation0]]
  $region58: #{spatial_encoder_transformer_forward.11} parent=0
    _
  %s15 = ssub.s32 1, %s13
  %s16 = scalar_select 0, %s15, %s13
  // Predicated region
  $region2: #{spatial_encoder_transformer_forward.11} parent=0 // pred_check
    _
  $region3: #{spatial_encoder_transformer_forward.11} parent=0 // pred_check_branch
    %18 = sbr.rel (0) target = $region5
  $region4: #{spatial_encoder_transformer_forward.11} parent=0 // pred_region
    _
  $region5: #{spatial_encoder_transformer_forward.11} parent=0 // pred_fallthru
    _
  // Predicated region
  $region6: #{spatial_encoder_transformer_forward.11} parent=0 // pred_check
    _
  $region7: #{spatial_encoder_transformer_forward.11} parent=0 // pred_check_branch
    %20 = sbr.rel (0) target = $region9
  $region8: #{spatial_encoder_transformer_forward.11} parent=0 // pred_region
    _
  $region9: #{spatial_encoder_transformer_forward.11} parent=0 // pred_fallthru
    _
  // Predicated region
  $region10: #{spatial_encoder_transformer_forward.11} parent=0 // pred_check
    _
  $region11: #{spatial_encoder_transformer_forward.11} parent=0 // pred_check_branch
    %22 = sbr.rel (0) target = $region13
  $region12: #{spatial_encoder_transformer_forward.11} parent=0 // pred_region
    _
  $region13: #{spatial_encoder_transformer_forward.11} parent=0 // pred_fallthru
    _
  // Predicated region
  $region14: #{spatial_encoder_transformer_forward.11} parent=0 // pred_check
    _
  $region15: #{spatial_encoder_transformer_forward.11} parent=0 // pred_check_branch
    %24 = sbr.rel (0) target = $region17
  $region16: #{spatial_encoder_transformer_forward.11} parent=0 // pred_region
    _
  $region17: #{spatial_encoder_transformer_forward.11} parent=0 // pred_fallthru
    _
  // Predicated region
  $region18: #{spatial_encoder_transformer_forward.11} parent=0 // pred_check
    _
  $region19: #{spatial_encoder_transformer_forward.11} parent=0 // pred_check_branch
    %26 = sbr.rel (0) target = $region21
  $region20: #{spatial_encoder_transformer_forward.11} parent=0 // pred_region
    _
  $region21: #{spatial_encoder_transformer_forward.11} parent=0 // pred_fallthru
    _
  // Predicated region
  $region22: #{spatial_encoder_transformer_forward.11} parent=0 // pred_check
    _
  $region23: #{spatial_encoder_transformer_forward.11} parent=0 // pred_check_branch
    %28 = sbr.rel (0) target = $region25
  $region24: #{spatial_encoder_transformer_forward.11} parent=0 // pred_region
    _
  $region25: #{spatial_encoder_transformer_forward.11} parent=0 // pred_fallthru
    _
  // Predicated region
  $region26: #{spatial_encoder_transformer_forward.11} parent=0 // pred_check
    _
  $region27: #{spatial_encoder_transformer_forward.11} parent=0 // pred_check_branch
    %30 = sbr.rel (0) target = $region29
  $region28: #{spatial_encoder_transformer_forward.11} parent=0 // pred_region
    _
  $region29: #{spatial_encoder_transformer_forward.11} parent=0 // pred_fallthru
    _
  // Predicated region
  $region30: #{spatial_encoder_transformer_forward.11} parent=0 // pred_check
    _
  $region31: #{spatial_encoder_transformer_forward.11} parent=0 // pred_check_branch
    %32 = sbr.rel (0) target = $region33
  $region32: #{spatial_encoder_transformer_forward.11} parent=0 // pred_region
    _
  $region33: #{spatial_encoder_transformer_forward.11} parent=0 // pred_fallthru
    _
  // Predicated region
  $region34: #{spatial_encoder_transformer_forward.11} parent=0 // pred_check
    _
  $region35: #{spatial_encoder_transformer_forward.11} parent=0 // pred_check_branch
    %34 = sbr.rel (0) target = $region37
  $region36: #{spatial_encoder_transformer_forward.11} parent=0 // pred_region
    _
  $region37: #{spatial_encoder_transformer_forward.11} parent=0 // pred_fallthru
    _
  // Predicated region
  $region38: #{spatial_encoder_transformer_forward.11} parent=0 // pred_check
    _
  $region39: #{spatial_encoder_transformer_forward.11} parent=0 // pred_check_branch
    %36 = sbr.rel (0) target = $region41
  $region40: #{spatial_encoder_transformer_forward.11} parent=0 // pred_region
    _
  $region41: #{spatial_encoder_transformer_forward.11} parent=0 // pred_fallthru
    _
  // Predicated region
  $region42: #{spatial_encoder_transformer_forward.11} parent=0 // pred_check
    _
  $region43: #{spatial_encoder_transformer_forward.11} parent=0 // pred_check_branch
    %38 = sbr.rel (0) target = $region45
  $region44: #{spatial_encoder_transformer_forward.11} parent=0 // pred_region
    _
  $region45: #{spatial_encoder_transformer_forward.11} parent=0 // pred_fallthru
    _
  // Predicated region
  $region46: #{spatial_encoder_transformer_forward.11} parent=0 // pred_check
    _
  $region47: #{spatial_encoder_transformer_forward.11} parent=0 // pred_check_branch
    %40 = sbr.rel (0) target = $region49
  $region48: #{spatial_encoder_transformer_forward.11} parent=0 // pred_region
    _
  $region49: #{spatial_encoder_transformer_forward.11} parent=0 // pred_fallthru
    _
  %v42 = vld [vmem:[%s1] sm:$0xff]
  %v43 = vld [vmem:[%s1 + $0x8] sm:$0xff]
  %v44 = vld [vmem:[%s1 + $0x10] sm:$0xff]
  %v45 = vld [vmem:[%s1 + $0x18] sm:$0xff]
  %v46 = vld [vmem:[%s1 + $0x20] sm:$0xff]
  %v47 = vld [vmem:[%s1 + $0x28] sm:$0xff]
  %v48 = vld [vmem:[%s1 + $0x30] sm:$0xff]
  %v49 = vld [vmem:[%s1 + $0x38] sm:$0xff]
  %v50 = vld [vmem:[%s1 + $0x40] sm:$0xff]
  %v51 = vld [vmem:[%s1 + $0x48] sm:$0xff]
  %v52 = vld [vmem:[%s1 + $0x50] sm:$0xff]
  %v53 = vld [vmem:[%s1 + $0x58] sm:$0xff]
  %v54 = vld [vmem:[%s1 + $0x60] sm:$0xff]
  %v55 = vld [vmem:[%s1 + $0x68] sm:$0xff]
  %v56 = vld [vmem:[%s1 + $0x70] sm:$0xff]
  %v57 = vld [vmem:[%s1 + $0x78] sm:$0xff]
  %v58 = vld [vmem:[%s1 + $0x80] sm:$0xff]
  %v59 = vld [vmem:[%s1 + $0x88] sm:$0xff]
  %v60 = vld [vmem:[%s1 + $0x90] sm:$0xff]
  %v61 = vld [vmem:[%s1 + $0x98] sm:$0xff]
  %v62 = vld [vmem:[%s1 + $0xa0] sm:$0xff]
  %v63 = vld [vmem:[%s0] sm:$0xff]
  %v64 = vld [vmem:[%s0 + $0x8] sm:$0xff]
  %v65 = vld [vmem:[%s0 + $0x10] sm:$0xff]
  %v66 = vld [vmem:[%s0 + $0x18] sm:$0xff]
  %v67 = vld [vmem:[%s0 + $0x20] sm:$0xff]
  %v68 = vld [vmem:[%s0 + $0x28] sm:$0xff]
  %v69 = vld [vmem:[%s0 + $0x30] sm:$0xff]
  %v70 = vld [vmem:[%s0 + $0x38] sm:$0xff]
  %v71 = vld [vmem:[%s0 + $0x40] sm:$0xff]
  %v72 = vld [vmem:[%s0 + $0x48] sm:$0xff]
  %v73 = vld [vmem:[%s0 + $0x50] sm:$0xff]
  %v74 = vld [vmem:[%s0 + $0x58] sm:$0xff]
  %v75 = vld [vmem:[%s0 + $0x60] sm:$0xff]
  %v76 = vld [vmem:[%s0 + $0x68] sm:$0xff]
  %v77 = vld [vmem:[%s0 + $0x70] sm:$0xff]
  %v78 = vld [vmem:[%s0 + $0x78] sm:$0xff]
  %v79 = vld [vmem:[%s0 + $0x80] sm:$0xff]
  %v80 = vld [vmem:[%s0 + $0x88] sm:$0xff]
  %v81 = vld [vmem:[%s0 + $0x90] sm:$0xff]
  %v82 = vld [vmem:[%s0 + $0x98] sm:$0xff]
  %v83 = vld [vmem:[%s0 + $0xa0] sm:$0xff]
  %v84 = vpack.c.bf16 %v64, %v63
  %v85 = vpack.c.bf16 %v66, %v65
  %v86 = vpack.c.bf16 %v68, %v67
  %v87 = vpack.c.bf16 %v70, %v69
  %v88 = vpack.c.bf16 %v72, %v71
  %v89 = vpack.c.bf16 %v74, %v73
  %v90 = vpack.c.bf16 %v76, %v75
  %v91 = vpack.c.bf16 %v78, %v77
  %v92 = vpack.c.bf16 %v80, %v79
  %v93 = vpack.c.bf16 %v82, %v81
  %v94 = vpack.c.bf16 %v83, %v83
  %v95 = vld [vmem:[%s2] sm:$0xf]
  %v96 = vld [vmem:[%s2 + $0x4] sm:$0xf]
  %v97 = vld [vmem:[%s2 + $0x8] sm:$0xf]
  %v98 = vld [vmem:[%s2 + $0xc] sm:$0xf]
  %v99 = vld [vmem:[%s2 + $0x10] sm:$0xf]
  %v100 = vld [vmem:[%s2 + $0x14] sm:$0xf]
  %v101 = vld [vmem:[%s2 + $0x18] sm:$0xf]
  %v102 = vld [vmem:[%s2 + $0x1c] sm:$0xf]
  %v111 = vunpack.c.l.b16 %v95
  %v112 = vunpack.c.l.b16 %v96
  %v113 = vunpack.c.l.b16 %v97
  %v114 = vunpack.c.l.b16 %v98
  %v115 = vunpack.c.l.b16 %v99
  %v116 = vunpack.c.l.b16 %v100
  %v117 = vunpack.c.l.b16 %v101
  %v118 = vunpack.c.l.b16 %v102
  %v119 = vpack.c.b16 %v112, %v111
  %v120 = vpack.c.b16 %v114, %v113
  %v121 = vpack.c.b16 %v116, %v115
  %v122 = vpack.c.b16 %v118, %v117
  %vm127 = vcmask 523264
  %v129 = vsel %vm127, %v84, 0
  %v132 = vsel %vm127, %v85, 0
  %v135 = vsel %vm127, %v86, 0
  %v138 = vsel %vm127, %v87, 0
  %v141 = vsel %vm127, %v88, 0
  %v144 = vsel %vm127, %v89, 0
  %v147 = vsel %vm127, %v90, 0
  %v150 = vsel %vm127, %v91, 0
  %v153 = vsel %vm127, %v92, 0
  %v156 = vsel %vm127, %v93, 0
  %v159 = vsel %vm127, %v94, 0
  %161 = vmatprep.subr.bf16.mxu0 0
  %162 = vmatpush1.bf16.msra.mxu0 %v119
  %163 = vmatprep.subr.bf16.mxu0 0
  %164 = vmatpush1.bf16.msra.mxu0 %v120
  %165 = vmatprep.subr.bf16.mxu0 0
  %166 = vmatpush1.bf16.msra.mxu0 %v121
  %167 = vmatprep.subr.bf16.mxu0 0
  %168 = vmatpush1.bf16.msra.mxu0 %v122
  %169 = vmatprep.subr.bf16.mxu0 0
  %170 = vmatpush1.bf16.msra.mxu0 0
  %171 = vmatprep.subr.bf16.mxu0 0
  %172 = vmatpush1.bf16.msra.mxu0 0
  %173 = vmatprep.subr.bf16.mxu0 0
  %174 = vmatpush1.bf16.msra.mxu0 0
  %175 = vmatprep.subr.bf16.mxu0 0
  %176 = vmatpush1.bf16.msra.mxu0 0
  %177 = vmatprep.subr.bf16.mxu0 0
  %178 = vmatpush1.bf16.msra.mxu0 0
  %179 = vmatprep.subr.bf16.mxu0 0
  %180 = vmatpush1.bf16.msra.mxu0 0
  %181 = vmatprep.subr.bf16.mxu0 0
  %182 = vmatpush1.bf16.msra.mxu0 0
  %183 = vmatprep.subr.bf16.mxu0 0
  %184 = vmatpush1.bf16.msra.mxu0 0
  %185 = vmatprep.subr.bf16.mxu0 0
  %186 = vmatpush1.bf16.msra.mxu0 0
  %187 = vmatprep.subr.bf16.mxu0 0
  %188 = vmatpush1.bf16.msra.mxu0 0
  %189 = vmatprep.subr.bf16.mxu0 0
  %190 = vmatpush1.bf16.msra.mxu0 0
  %191 = vmatprep.subr.bf16.mxu0 0
  %192 = vmatpush1.bf16.msra.mxu0 0
  %193 = vmatprep.mubr.bf16.mxu0 0
  %194 = vmatmul.mubr.bf16.gmra.mrb[0].mxu0 %v129
  %v195 = vpop.f32.mrb[0].mxu0
  %v196 = vadd.f32 0.0, %v195
  %v197 = vpop.f32.mrb[0].mxu0
  %v198 = vpop.f32.mrb[0].mxu0
  %v199 = vadd.f32 0.0, %v198
  %v200 = vpop.f32.mrb[0].mxu0
  %201 = vmatprep.mubr.bf16.mxu0 0
  %202 = vmatmul.mubr.bf16.gmra.mrb[0].mxu0 %v132
  %v203 = vpop.f32.mrb[0].mxu0
  %v204 = vadd.f32 0.0, %v203
  %v205 = vpop.f32.mrb[0].mxu0
  %v206 = vpop.f32.mrb[0].mxu0
  %v207 = vadd.f32 0.0, %v206
  %v208 = vpop.f32.mrb[0].mxu0
  %209 = vmatprep.mubr.bf16.mxu0 0
  %210 = vmatmul.mubr.bf16.gmra.mrb[0].mxu0 %v135
  %v211 = vpop.f32.mrb[0].mxu0
  %v212 = vadd.f32 0.0, %v211
  %v213 = vpop.f32.mrb[0].mxu0
  %v214 = vpop.f32.mrb[0].mxu0
  %v215 = vadd.f32 0.0, %v214
  %v216 = vpop.f32.mrb[0].mxu0
  %217 = vmatprep.mubr.bf16.mxu0 0
  %218 = vmatmul.mubr.bf16.gmra.mrb[0].mxu0 %v138
  %v219 = vpop.f32.mrb[0].mxu0
  %v220 = vadd.f32 0.0, %v219
  %v221 = vpop.f32.mrb[0].mxu0
  %v222 = vpop.f32.mrb[0].mxu0
  %v223 = vadd.f32 0.0, %v222
  %v224 = vpop.f32.mrb[0].mxu0
  %225 = vmatprep.mubr.bf16.mxu0 0
  %226 = vmatmul.mubr.bf16.gmra.mrb[0].mxu0 %v141
  %v227 = vpop.f32.mrb[0].mxu0
  %v228 = vadd.f32 0.0, %v227
  %v229 = vpop.f32.mrb[0].mxu0
  %v230 = vpop.f32.mrb[0].mxu0
  %v231 = vadd.f32 0.0, %v230
  %v232 = vpop.f32.mrb[0].mxu0
  %233 = vmatprep.mubr.bf16.mxu0 0
  %234 = vmatmul.mubr.bf16.gmra.mrb[0].mxu0 %v144
  %v235 = vpop.f32.mrb[0].mxu0
  %v236 = vadd.f32 0.0, %v235
  %v237 = vpop.f32.mrb[0].mxu0
  %v238 = vpop.f32.mrb[0].mxu0
  %v239 = vadd.f32 0.0, %v238
  %v240 = vpop.f32.mrb[0].mxu0
  %241 = vmatprep.mubr.bf16.mxu0 0
  %242 = vmatmul.mubr.bf16.gmra.mrb[0].mxu0 %v147
  %v243 = vpop.f32.mrb[0].mxu0
  %v244 = vadd.f32 0.0, %v243
  %v245 = vpop.f32.mrb[0].mxu0
  %v246 = vpop.f32.mrb[0].mxu0
  %v247 = vadd.f32 0.0, %v246
  %v248 = vpop.f32.mrb[0].mxu0
  %249 = vmatprep.mubr.bf16.mxu0 0
  %250 = vmatmul.mubr.bf16.gmra.mrb[0].mxu0 %v150
  %v251 = vpop.f32.mrb[0].mxu0
  %v252 = vadd.f32 0.0, %v251
  %v253 = vpop.f32.mrb[0].mxu0
  %v254 = vpop.f32.mrb[0].mxu0
  %v255 = vadd.f32 0.0, %v254
  %v256 = vpop.f32.mrb[0].mxu0
  %257 = vmatprep.mubr.bf16.mxu0 0
  %258 = vmatmul.mubr.bf16.gmra.mrb[0].mxu0 %v153
  %v259 = vpop.f32.mrb[0].mxu0
  %v260 = vadd.f32 0.0, %v259
  %v261 = vpop.f32.mrb[0].mxu0
  %v262 = vpop.f32.mrb[0].mxu0
  %v263 = vadd.f32 0.0, %v262
  %v264 = vpop.f32.mrb[0].mxu0
  %265 = vmatprep.mubr.bf16.mxu0 0
  %266 = vmatmul.mubr.bf16.gmra.mrb[0].mxu0 %v156
  %v267 = vpop.f32.mrb[0].mxu0
  %v268 = vadd.f32 0.0, %v267
  %v269 = vpop.f32.mrb[0].mxu0
  %v270 = vpop.f32.mrb[0].mxu0
  %v271 = vadd.f32 0.0, %v270
  %v272 = vpop.f32.mrb[0].mxu0
  %273 = vmatprep.mubr.bf16.mxu0 0
  %274 = vmatmul.mubr.bf16.gmra.mrb[0].mxu0 %v159
  %v275 = vpop.f32.mrb[0].mxu0
  %v276 = vadd.f32 0.0, %v275
  %v277 = vpop.f32.mrb[0].mxu0
  %v278 = vpop.f32.mrb[0].mxu0
  %v279 = vpop.f32.mrb[0].mxu0
  %280 = vdwg.mxu0
  %v281 = vadd.f32 %v42, %v196
  %v282 = vadd.f32 %v43, %v199
  %v283 = vadd.f32 %v44, %v204
  %v284 = vadd.f32 %v45, %v207
  %v285 = vadd.f32 %v46, %v212
  %v286 = vadd.f32 %v47, %v215
  %v287 = vadd.f32 %v48, %v220
  %v288 = vadd.f32 %v49, %v223
  %v289 = vadd.f32 %v50, %v228
  %v290 = vadd.f32 %v51, %v231
  %v291 = vadd.f32 %v52, %v236
  %v292 = vadd.f32 %v53, %v239
  %v293 = vadd.f32 %v54, %v244
  %v294 = vadd.f32 %v55, %v247
  %v295 = vadd.f32 %v56, %v252
  %v296 = vadd.f32 %v57, %v255
  %v297 = vadd.f32 %v58, %v260
  %v298 = vadd.f32 %v59, %v263
  %v299 = vadd.f32 %v60, %v268
  %v300 = vadd.f32 %v61, %v271
  %v301 = vadd.f32 %v62, %v276
  %v302 = vld [vmem:[%s3] sm:$0x1]
  %v304 = vlaneseq
  %v305 = vshrl.u32 %v304, 7
  %v306 = vsub.s32 0, %v305
  %v307 = vrot.slane %v302, %v306
  %v309 = vadd.f32 %v281, %v307
  %v310 = vadd.f32 %v282, %v307
  %v311 = vadd.f32 %v283, %v307
  %v312 = vadd.f32 %v284, %v307
  %v313 = vadd.f32 %v285, %v307
  %v314 = vadd.f32 %v286, %v307
  %v315 = vadd.f32 %v287, %v307
  %v316 = vadd.f32 %v288, %v307
  %v317 = vadd.f32 %v289, %v307
  %v318 = vadd.f32 %v290, %v307
  %v319 = vadd.f32 %v291, %v307
  %v320 = vadd.f32 %v292, %v307
  %v321 = vadd.f32 %v293, %v307
  %v322 = vadd.f32 %v294, %v307
  %v323 = vadd.f32 %v295, %v307
  %v324 = vadd.f32 %v296, %v307
  %v325 = vadd.f32 %v297, %v307
  %v326 = vadd.f32 %v298, %v307
  %v327 = vadd.f32 %v299, %v307
  %v328 = vadd.f32 %v300, %v307
  %v329 = vadd.f32 %v301, %v307
  %v330 = vsel %vm127, %v309, 0.0
  %331 = vadd.xlane.f32.xlu0 %v330
  %v332 = vpop.xlane.xlu0 %331
  %v333 = vsel %vm127, %v310, 0.0
  %334 = vadd.xlane.f32.xlu0 %v333
  %v335 = vpop.xlane.xlu0 %334
  %v336 = vsel %vm127, %v311, 0.0
  %337 = vadd.xlane.f32.xlu0 %v336
  %v338 = vpop.xlane.xlu0 %337
  %v339 = vsel %vm127, %v312, 0.0
  %340 = vadd.xlane.f32.xlu0 %v339
  %v341 = vpop.xlane.xlu0 %340
  %v342 = vsel %vm127, %v313, 0.0
  %343 = vadd.xlane.f32.xlu0 %v342
  %v344 = vpop.xlane.xlu0 %343
  %v345 = vsel %vm127, %v314, 0.0
  %346 = vadd.xlane.f32.xlu0 %v345
  %v347 = vpop.xlane.xlu0 %346
  %v348 = vsel %vm127, %v315, 0.0
  %349 = vadd.xlane.f32.xlu0 %v348
  %v350 = vpop.xlane.xlu0 %349
  %v351 = vsel %vm127, %v316, 0.0
  %352 = vadd.xlane.f32.xlu0 %v351
  %v353 = vpop.xlane.xlu0 %352
  %v354 = vsel %vm127, %v317, 0.0
  %355 = vadd.xlane.f32.xlu0 %v354
  %v356 = vpop.xlane.xlu0 %355
  %v357 = vsel %vm127, %v318, 0.0
  %358 = vadd.xlane.f32.xlu0 %v357
  %v359 = vpop.xlane.xlu0 %358
  %v360 = vsel %vm127, %v319, 0.0
  %361 = vadd.xlane.f32.xlu0 %v360
  %v362 = vpop.xlane.xlu0 %361
  %v363 = vsel %vm127, %v320, 0.0
  %364 = vadd.xlane.f32.xlu0 %v363
  %v365 = vpop.xlane.xlu0 %364
  %v366 = vsel %vm127, %v321, 0.0
  %367 = vadd.xlane.f32.xlu0 %v366
  %v368 = vpop.xlane.xlu0 %367
  %v369 = vsel %vm127, %v322, 0.0
  %370 = vadd.xlane.f32.xlu0 %v369
  %v371 = vpop.xlane.xlu0 %370
  %v372 = vsel %vm127, %v323, 0.0
  %373 = vadd.xlane.f32.xlu0 %v372
  %v374 = vpop.xlane.xlu0 %373
  %v375 = vsel %vm127, %v324, 0.0
  %376 = vadd.xlane.f32.xlu0 %v375
  %v377 = vpop.xlane.xlu0 %376
  %v378 = vsel %vm127, %v325, 0.0
  %379 = vadd.xlane.f32.xlu0 %v378
  %v380 = vpop.xlane.xlu0 %379
  %v381 = vsel %vm127, %v326, 0.0
  %382 = vadd.xlane.f32.xlu0 %v381
  %v383 = vpop.xlane.xlu0 %382
  %v384 = vsel %vm127, %v327, 0.0
  %385 = vadd.xlane.f32.xlu0 %v384
  %v386 = vpop.xlane.xlu0 %385
  %v387 = vsel %vm127, %v328, 0.0
  %388 = vadd.xlane.f32.xlu0 %v387
  %v389 = vpop.xlane.xlu0 %388
  %v390 = vsel %vm127, %v329, 0.0
  %391 = vadd.xlane.f32.xlu0 %v390
  %v392 = vpop.xlane.xlu0 %391
  %v393 = vrcp.pop 64.0
  %v394 = vmul.f32 %v332, %v393
  %v395 = vmul.f32 %v335, %v393
  %v396 = vmul.f32 %v338, %v393
  %v397 = vmul.f32 %v341, %v393
  %v398 = vmul.f32 %v344, %v393
  %v399 = vmul.f32 %v347, %v393
  %v400 = vmul.f32 %v350, %v393
  %v401 = vmul.f32 %v353, %v393
  %v402 = vmul.f32 %v356, %v393
  %v403 = vmul.f32 %v359, %v393
  %v404 = vmul.f32 %v362, %v393
  %v405 = vmul.f32 %v365, %v393
  %v406 = vmul.f32 %v368, %v393
  %v407 = vmul.f32 %v371, %v393
  %v408 = vmul.f32 %v374, %v393
  %v409 = vmul.f32 %v377, %v393
  %v410 = vmul.f32 %v380, %v393
  %v411 = vmul.f32 %v383, %v393
  %v412 = vmul.f32 %v386, %v393
  %v413 = vmul.f32 %v389, %v393
  %v414 = vmul.f32 %v392, %v393
  %v415 = vsub.f32 %v309, %v394
  %v416 = vsub.f32 %v310, %v395
  %v417 = vsub.f32 %v311, %v396
  %v418 = vsub.f32 %v312, %v397
  %v419 = vsub.f32 %v313, %v398
  %v420 = vsub.f32 %v314, %v399
  %v421 = vsub.f32 %v315, %v400
  %v422 = vsub.f32 %v316, %v401
  %v423 = vsub.f32 %v317, %v402
  %v424 = vsub.f32 %v318, %v403
  %v425 = vsub.f32 %v319, %v404
  %v426 = vsub.f32 %v320, %v405
  %v427 = vsub.f32 %v321, %v406
  %v428 = vsub.f32 %v322, %v407
  %v429 = vsub.f32 %v323, %v408
  %v430 = vsub.f32 %v324, %v409
  %v431 = vsub.f32 %v325, %v410
  %v432 = vsub.f32 %v326, %v411
  %v433 = vsub.f32 %v327, %v412
  %v434 = vsub.f32 %v328, %v413
  %v435 = vsub.f32 %v329, %v414
  %v436 = vmul.f32 %v415, %v415
  %v437 = vmul.f32 %v416, %v416
  %v438 = vmul.f32 %v417, %v417
  %v439 = vmul.f32 %v418, %v418
  %v440 = vmul.f32 %v419, %v419
  %v441 = vmul.f32 %v420, %v420
  %v442 = vmul.f32 %v421, %v421
  %v443 = vmul.f32 %v422, %v422
  %v444 = vmul.f32 %v423, %v423
  %v445 = vmul.f32 %v424, %v424
  %v446 = vmul.f32 %v425, %v425
  %v447 = vmul.f32 %v426, %v426
  %v448 = vmul.f32 %v427, %v427
  %v449 = vmul.f32 %v428, %v428
  %v450 = vmul.f32 %v429, %v429
  %v451 = vmul.f32 %v430, %v430
  %v452 = vmul.f32 %v431, %v431
  %v453 = vmul.f32 %v432, %v432
  %v454 = vmul.f32 %v433, %v433
  %v455 = vmul.f32 %v434, %v434
  %v456 = vmul.f32 %v435, %v435
  %v457 = vsel %vm127, %v436, 0.0
  %458 = vadd.xlane.f32.xlu0 %v457
  %v459 = vpop.xlane.xlu0 %458
  %v460 = vsel %vm127, %v437, 0.0
  %461 = vadd.xlane.f32.xlu0 %v460
  %v462 = vpop.xlane.xlu0 %461
  %v463 = vsel %vm127, %v438, 0.0
  %464 = vadd.xlane.f32.xlu0 %v463
  %v465 = vpop.xlane.xlu0 %464
  %v466 = vsel %vm127, %v439, 0.0
  %467 = vadd.xlane.f32.xlu0 %v466
  %v468 = vpop.xlane.xlu0 %467
  %v469 = vsel %vm127, %v440, 0.0
  %470 = vadd.xlane.f32.xlu0 %v469
  %v471 = vpop.xlane.xlu0 %470
  %v472 = vsel %vm127, %v441, 0.0
  %473 = vadd.xlane.f32.xlu0 %v472
  %v474 = vpop.xlane.xlu0 %473
  %v475 = vsel %vm127, %v442, 0.0
  %476 = vadd.xlane.f32.xlu0 %v475
  %v477 = vpop.xlane.xlu0 %476
  %v478 = vsel %vm127, %v443, 0.0
  %479 = vadd.xlane.f32.xlu0 %v478
  %v480 = vpop.xlane.xlu0 %479
  %v481 = vsel %vm127, %v444, 0.0
  %482 = vadd.xlane.f32.xlu0 %v481
  %v483 = vpop.xlane.xlu0 %482
  %v484 = vsel %vm127, %v445, 0.0
  %485 = vadd.xlane.f32.xlu0 %v484
  %v486 = vpop.xlane.xlu0 %485
  %v487 = vsel %vm127, %v446, 0.0
  %488 = vadd.xlane.f32.xlu0 %v487
  %v489 = vpop.xlane.xlu0 %488
  %v490 = vsel %vm127, %v447, 0.0
  %491 = vadd.xlane.f32.xlu0 %v490
  %v492 = vpop.xlane.xlu0 %491
  %v493 = vsel %vm127, %v448, 0.0
  %494 = vadd.xlane.f32.xlu0 %v493
  %v495 = vpop.xlane.xlu0 %494
  %v496 = vsel %vm127, %v449, 0.0
  %497 = vadd.xlane.f32.xlu0 %v496
  %v498 = vpop.xlane.xlu0 %497
  %v499 = vsel %vm127, %v450, 0.0
  %500 = vadd.xlane.f32.xlu0 %v499
  %v501 = vpop.xlane.xlu0 %500
  %v502 = vsel %vm127, %v451, 0.0
  %503 = vadd.xlane.f32.xlu0 %v502
  %v504 = vpop.xlane.xlu0 %503
  %v505 = vsel %vm127, %v452, 0.0
  %506 = vadd.xlane.f32.xlu0 %v505
  %v507 = vpop.xlane.xlu0 %506
  %v508 = vsel %vm127, %v453, 0.0
  %509 = vadd.xlane.f32.xlu0 %v508
  %v510 = vpop.xlane.xlu0 %509
  %v511 = vsel %vm127, %v454, 0.0
  %512 = vadd.xlane.f32.xlu0 %v511
  %v513 = vpop.xlane.xlu0 %512
  %v514 = vsel %vm127, %v455, 0.0
  %515 = vadd.xlane.f32.xlu0 %v514
  %v516 = vpop.xlane.xlu0 %515
  %v517 = vsel %vm127, %v456, 0.0
  %518 = vadd.xlane.f32.xlu0 %v517
  %v519 = vpop.xlane.xlu0 %518
  %v520 = vmul.f32 %v459, %v393
  %v521 = vmul.f32 %v462, %v393
  %v522 = vmul.f32 %v465, %v393
  %v523 = vmul.f32 %v468, %v393
  %v524 = vmul.f32 %v471, %v393
  %v525 = vmul.f32 %v474, %v393
  %v526 = vmul.f32 %v477, %v393
  %v527 = vmul.f32 %v480, %v393
  %v528 = vmul.f32 %v483, %v393
  %v529 = vmul.f32 %v486, %v393
  %v530 = vmul.f32 %v489, %v393
  %v531 = vmul.f32 %v492, %v393
  %v532 = vmul.f32 %v495, %v393
  %v533 = vmul.f32 %v498, %v393
  %v534 = vmul.f32 %v501, %v393
  %v535 = vmul.f32 %v504, %v393
  %v536 = vmul.f32 %v507, %v393
  %v537 = vmul.f32 %v510, %v393
  %v538 = vmul.f32 %v513, %v393
  %v539 = vmul.f32 %v516, %v393
  %v540 = vmul.f32 %v519, %v393
  %v541 = vadd.f32 %v520, 1e-05
  %v542 = vadd.f32 %v521, 1e-05
  %v543 = vadd.f32 %v522, 1e-05
  %v544 = vadd.f32 %v523, 1e-05
  %v545 = vadd.f32 %v524, 1e-05
  %v546 = vadd.f32 %v525, 1e-05
  %v547 = vadd.f32 %v526, 1e-05
  %v548 = vadd.f32 %v527, 1e-05
  %v549 = vadd.f32 %v528, 1e-05
  %v550 = vadd.f32 %v529, 1e-05
  %v551 = vadd.f32 %v530, 1e-05
  %v552 = vadd.f32 %v531, 1e-05
  %v553 = vadd.f32 %v532, 1e-05
  %v554 = vadd.f32 %v533, 1e-05
  %v555 = vadd.f32 %v534, 1e-05
  %v556 = vadd.f32 %v535, 1e-05
  %v557 = vadd.f32 %v536, 1e-05
  %v558 = vadd.f32 %v537, 1e-05
  %v559 = vadd.f32 %v538, 1e-05
  %v560 = vadd.f32 %v539, 1e-05
  %v561 = vadd.f32 %v540, 1e-05
  %v562 = vrsqrt.pop %v541
  %v563 = vrsqrt.pop %v542
  %v564 = vrsqrt.pop %v543
  %v565 = vrsqrt.pop %v544
  %v566 = vrsqrt.pop %v545
  %v567 = vrsqrt.pop %v546
  %v568 = vrsqrt.pop %v547
  %v569 = vrsqrt.pop %v548
  %v570 = vrsqrt.pop %v549
  %v571 = vrsqrt.pop %v550
  %v572 = vrsqrt.pop %v551
  %v573 = vrsqrt.pop %v552
  %v574 = vrsqrt.pop %v553
  %v575 = vrsqrt.pop %v554
  %v576 = vrsqrt.pop %v555
  %v577 = vrsqrt.pop %v556
  %v578 = vrsqrt.pop %v557
  %v579 = vrsqrt.pop %v558
  %v580 = vrsqrt.pop %v559
  %v581 = vrsqrt.pop %v560
  %v582 = vrsqrt.pop %v561
  %v583 = vmul.f32 %v415, %v562
  %v584 = vmul.f32 %v416, %v563
  %v585 = vmul.f32 %v417, %v564
  %v586 = vmul.f32 %v418, %v565
  %v587 = vmul.f32 %v419, %v566
  %v588 = vmul.f32 %v420, %v567
  %v589 = vmul.f32 %v421, %v568
  %v590 = vmul.f32 %v422, %v569
  %v591 = vmul.f32 %v423, %v570
  %v592 = vmul.f32 %v424, %v571
  %v593 = vmul.f32 %v425, %v572
  %v594 = vmul.f32 %v426, %v573
  %v595 = vmul.f32 %v427, %v574
  %v596 = vmul.f32 %v428, %v575
  %v597 = vmul.f32 %v429, %v576
  %v598 = vmul.f32 %v430, %v577
  %v599 = vmul.f32 %v431, %v578
  %v600 = vmul.f32 %v432, %v579
  %v601 = vmul.f32 %v433, %v580
  %v602 = vmul.f32 %v434, %v581
  %v603 = vmul.f32 %v435, %v582
  %v604 = vld [vmem:[%s4] sm:$0x1]
  %v606 = vlaneseq
  %v607 = vshrl.u32 %v606, 7
  %v608 = vsub.s32 0, %v607
  %v609 = vrot.slane %v604, %v608
  %v611 = vmul.f32 %v583, %v609
  %v612 = vmul.f32 %v584, %v609
  %v613 = vmul.f32 %v585, %v609
  %v614 = vmul.f32 %v586, %v609
  %v615 = vmul.f32 %v587, %v609
  %v616 = vmul.f32 %v588, %v609
  %v617 = vmul.f32 %v589, %v609
  %v618 = vmul.f32 %v590, %v609
  %v619 = vmul.f32 %v591, %v609
  %v620 = vmul.f32 %v592, %v609
  %v621 = vmul.f32 %v593, %v609
  %v622 = vmul.f32 %v594, %v609
  %v623 = vmul.f32 %v595, %v609
  %v624 = vmul.f32 %v596, %v609
  %v625 = vmul.f32 %v597, %v609
  %v626 = vmul.f32 %v598, %v609
  %v627 = vmul.f32 %v599, %v609
  %v628 = vmul.f32 %v600, %v609
  %v629 = vmul.f32 %v601, %v609
  %v630 = vmul.f32 %v602, %v609
  %v631 = vmul.f32 %v603, %v609
  %v632 = vld [vmem:[%s5] sm:$0x1]
  %v634 = vlaneseq
  %v635 = vshrl.u32 %v634, 7
  %v636 = vsub.s32 0, %v635
  %v637 = vrot.slane %v632, %v636
  %v639 = vadd.f32 %v611, %v637
  %v640 = vadd.f32 %v612, %v637
  %v641 = vadd.f32 %v613, %v637
  %v642 = vadd.f32 %v614, %v637
  %v643 = vadd.f32 %v615, %v637
  %v644 = vadd.f32 %v616, %v637
  %v645 = vadd.f32 %v617, %v637
  %v646 = vadd.f32 %v618, %v637
  %v647 = vadd.f32 %v619, %v637
  %v648 = vadd.f32 %v620, %v637
  %v649 = vadd.f32 %v621, %v637
  %v650 = vadd.f32 %v622, %v637
  %v651 = vadd.f32 %v623, %v637
  %v652 = vadd.f32 %v624, %v637
  %v653 = vadd.f32 %v625, %v637
  %v654 = vadd.f32 %v626, %v637
  %v655 = vadd.f32 %v627, %v637
  %v656 = vadd.f32 %v628, %v637
  %v657 = vadd.f32 %v629, %v637
  %v658 = vadd.f32 %v630, %v637
  %v659 = vadd.f32 %v631, %v637
  %v660 = vpack.c.bf16 %v640, %v639
  %v661 = vpack.c.bf16 %v642, %v641
  %v662 = vpack.c.bf16 %v644, %v643
  %v663 = vpack.c.bf16 %v646, %v645
  %v664 = vpack.c.bf16 %v648, %v647
  %v665 = vpack.c.bf16 %v650, %v649
  %v666 = vpack.c.bf16 %v652, %v651
  %v667 = vpack.c.bf16 %v654, %v653
  %v668 = vpack.c.bf16 %v656, %v655
  %v669 = vpack.c.bf16 %v658, %v657
  %v670 = vpack.c.bf16 %v659, %v659
  %v671 = vld [vmem:[%s6] sm:$0xf]
  %v672 = vld [vmem:[%s6 + $0x4] sm:$0xf]
  %v673 = vld [vmem:[%s6 + $0x8] sm:$0xf]
  %v674 = vld [vmem:[%s6 + $0xc] sm:$0xf]
  %v675 = vld [vmem:[%s6 + $0x10] sm:$0xf]
  %v676 = vld [vmem:[%s6 + $0x14] sm:$0xf]
  %v677 = vld [vmem:[%s6 + $0x18] sm:$0xf]
  %v678 = vld [vmem:[%s6 + $0x1c] sm:$0xf]
  %v679 = vld [vmem:[%s7] sm:$0x1]
  %v681 = vlaneseq
  %v682 = vshrl.u32 %v681, 7
  %v683 = vsub.s32 0, %v682
  %v684 = vrot.slane %v679, %v683
  %v694 = vunpack.c.l.b16 %v671
  %v695 = vunpack.c.l.b16 %v672
  %v696 = vunpack.c.l.b16 %v673
  %v697 = vunpack.c.l.b16 %v674
  %v698 = vunpack.c.l.b16 %v675
  %v699 = vunpack.c.l.b16 %v676
  %v700 = vunpack.c.l.b16 %v677
  %v701 = vunpack.c.l.b16 %v678
  %v702 = vpack.c.b16 %v695, %v694
  %v703 = vpack.c.b16 %v697, %v696
  %v704 = vpack.c.b16 %v699, %v698
  %v705 = vpack.c.b16 %v701, %v700
  %v711 = vsel %vm127, %v660, 0
  %v714 = vsel %vm127, %v661, 0
  %v717 = vsel %vm127, %v662, 0
  %v720 = vsel %vm127, %v663, 0
  %v723 = vsel %vm127, %v664, 0
  %v726 = vsel %vm127, %v665, 0
  %v729 = vsel %vm127, %v666, 0
  %v732 = vsel %vm127, %v667, 0
  %v735 = vsel %vm127, %v668, 0
  %v738 = vsel %vm127, %v669, 0
  %v741 = vsel %vm127, %v670, 0
  %743 = vmatprep.subr.bf16.mxu0 0
  %744 = vmatpush1.bf16.msra.mxu0 %v702
  %745 = vmatprep.subr.bf16.mxu0 0
  %746 = vmatpush1.bf16.msra.mxu0 %v703
  %747 = vmatprep.subr.bf16.mxu0 0
  %748 = vmatpush1.bf16.msra.mxu0 %v704
  %749 = vmatprep.subr.bf16.mxu0 0
  %750 = vmatpush1.bf16.msra.mxu0 %v705
  %751 = vmatprep.subr.bf16.mxu0 0
  %752 = vmatpush1.bf16.msra.mxu0 0
  %753 = vmatprep.subr.bf16.mxu0 0
  %754 = vmatpush1.bf16.msra.mxu0 0
  %755 = vmatprep.subr.bf16.mxu0 0
  %756 = vmatpush1.bf16.msra.mxu0 0
  %757 = vmatprep.subr.bf16.mxu0 0
  %758 = vmatpush1.bf16.msra.mxu0 0
  %759 = vmatprep.subr.bf16.mxu0 0
  %760 = vmatpush1.bf16.msra.mxu0 0
  %761 = vmatprep.subr.bf16.mxu0 0
  %762 = vmatpush1.bf16.msra.mxu0 0
  %763 = vmatprep.subr.bf16.mxu0 0
  %764 = vmatpush1.bf16.msra.mxu0 0
  %765 = vmatprep.subr.bf16.mxu0 0
  %766 = vmatpush1.bf16.msra.mxu0 0
  %767 = vmatprep.subr.bf16.mxu0 0
  %768 = vmatpush1.bf16.msra.mxu0 0
  %769 = vmatprep.subr.bf16.mxu0 0
  %770 = vmatpush1.bf16.msra.mxu0 0
  %771 = vmatprep.subr.bf16.mxu0 0
  %772 = vmatpush1.bf16.msra.mxu0 0
  %773 = vmatprep.subr.bf16.mxu0 0
  %774 = vmatpush1.bf16.msra.mxu0 0
  %775 = vmatprep.mubr.bf16.mxu0 0
  %776 = vmatmul.mubr.bf16.gmra.mrb[0].mxu0 %v711
  %v777 = vpop.f32.mrb[0].mxu0
  %v778 = vadd.f32 %v684, %v777
  %v779 = vpop.f32.mrb[0].mxu0
  %v780 = vpop.f32.mrb[0].mxu0
  %v781 = vadd.f32 %v684, %v780
  %v782 = vpop.f32.mrb[0].mxu0
  %783 = vmatprep.mubr.bf16.mxu0 0
  %784 = vmatmul.mubr.bf16.gmra.mrb[0].mxu0 %v714
  %v785 = vpop.f32.mrb[0].mxu0
  %v786 = vadd.f32 %v684, %v785
  %v787 = vpop.f32.mrb[0].mxu0
  %v788 = vpop.f32.mrb[0].mxu0
  %v789 = vadd.f32 %v684, %v788
  %v790 = vpop.f32.mrb[0].mxu0
  %791 = vmatprep.mubr.bf16.mxu0 0
  %792 = vmatmul.mubr.bf16.gmra.mrb[0].mxu0 %v717
  %v793 = vpop.f32.mrb[0].mxu0
  %v794 = vadd.f32 %v684, %v793
  %v795 = vpop.f32.mrb[0].mxu0
  %v796 = vpop.f32.mrb[0].mxu0
  %v797 = vadd.f32 %v684, %v796
  %v798 = vpop.f32.mrb[0].mxu0
  %799 = vmatprep.mubr.bf16.mxu0 0
  %800 = vmatmul.mubr.bf16.gmra.mrb[0].mxu0 %v720
  %v801 = vpop.f32.mrb[0].mxu0
  %v802 = vadd.f32 %v684, %v801
  %v803 = vpop.f32.mrb[0].mxu0
  %v804 = vpop.f32.mrb[0].mxu0
  %v805 = vadd.f32 %v684, %v804
  %v806 = vpop.f32.mrb[0].mxu0
  %807 = vmatprep.mubr.bf16.mxu0 0
  %808 = vmatmul.mubr.bf16.gmra.mrb[0].mxu0 %v723
  %v809 = vpop.f32.mrb[0].mxu0
  %v810 = vadd.f32 %v684, %v809
  %v811 = vpop.f32.mrb[0].mxu0
  %v812 = vpop.f32.mrb[0].mxu0
  %v813 = vadd.f32 %v684, %v812
  %v814 = vpop.f32.mrb[0].mxu0
  %815 = vmatprep.mubr.bf16.mxu0 0
  %816 = vmatmul.mubr.bf16.gmra.mrb[0].mxu0 %v726
  %v817 = vpop.f32.mrb[0].mxu0
  %v818 = vadd.f32 %v684, %v817
  %v819 = vpop.f32.mrb[0].mxu0
  %v820 = vpop.f32.mrb[0].mxu0
  %v821 = vadd.f32 %v684, %v820
  %v822 = vpop.f32.mrb[0].mxu0
  %823 = vmatprep.mubr.bf16.mxu0 0
  %824 = vmatmul.mubr.bf16.gmra.mrb[0].mxu0 %v729
  %v825 = vpop.f32.mrb[0].mxu0
  %v826 = vadd.f32 %v684, %v825
  %v827 = vpop.f32.mrb[0].mxu0
  %v828 = vpop.f32.mrb[0].mxu0
  %v829 = vadd.f32 %v684, %v828
  %v830 = vpop.f32.mrb[0].mxu0
  %831 = vmatprep.mubr.bf16.mxu0 0
  %832 = vmatmul.mubr.bf16.gmra.mrb[0].mxu0 %v732
  %v833 = vpop.f32.mrb[0].mxu0
  %v834 = vadd.f32 %v684, %v833
  %v835 = vpop.f32.mrb[0].mxu0
  %v836 = vpop.f32.mrb[0].mxu0
  %v837 = vadd.f32 %v684, %v836
  %v838 = vpop.f32.mrb[0].mxu0
  %839 = vmatprep.mubr.bf16.mxu0 0
  %840 = vmatmul.mubr.bf16.gmra.mrb[0].mxu0 %v735
  %v841 = vpop.f32.mrb[0].mxu0
  %v842 = vadd.f32 %v684, %v841
  %v843 = vpop.f32.mrb[0].mxu0
  %v844 = vpop.f32.mrb[0].mxu0
  %v845 = vadd.f32 %v684, %v844
  %v846 = vpop.f32.mrb[0].mxu0
  %847 = vmatprep.mubr.bf16.mxu0 0
  %848 = vmatmul.mubr.bf16.gmra.mrb[0].mxu0 %v738
  %v849 = vpop.f32.mrb[0].mxu0
  %v850 = vadd.f32 %v684, %v849
  %v851 = vpop.f32.mrb[0].mxu0
  %v852 = vpop.f32.mrb[0].mxu0
  %v853 = vadd.f32 %v684, %v852
  %v854 = vpop.f32.mrb[0].mxu0
  %855 = vmatprep.mubr.bf16.mxu0 0
  %856 = vmatmul.mubr.bf16.gmra.mrb[0].mxu0 %v741
  %v857 = vpop.f32.mrb[0].mxu0
  %v858 = vadd.f32 %v684, %v857
  %v859 = vpop.f32.mrb[0].mxu0
  %v860 = vpop.f32.mrb[0].mxu0
  %v861 = vpop.f32.mrb[0].mxu0
  %862 = vdwg.mxu0
  %v863 = vmax.f32 %v778, 0.0
  %v864 = vmax.f32 %v781, 0.0
  %v865 = vmax.f32 %v786, 0.0
  %v866 = vmax.f32 %v789, 0.0
  %v867 = vmax.f32 %v794, 0.0
  %v868 = vmax.f32 %v797, 0.0
  %v869 = vmax.f32 %v802, 0.0
  %v870 = vmax.f32 %v805, 0.0
  %v871 = vmax.f32 %v810, 0.0
  %v872 = vmax.f32 %v813, 0.0
  %v873 = vmax.f32 %v818, 0.0
  %v874 = vmax.f32 %v821, 0.0
  %v875 = vmax.f32 %v826, 0.0
  %v876 = vmax.f32 %v829, 0.0
  %v877 = vmax.f32 %v834, 0.0
  %v878 = vmax.f32 %v837, 0.0
  %v879 = vmax.f32 %v842, 0.0
  %v880 = vmax.f32 %v845, 0.0
  %v881 = vmax.f32 %v850, 0.0
  %v882 = vmax.f32 %v853, 0.0
  %v883 = vmax.f32 %v858, 0.0
  %v884 = vpack.c.bf16 %v864, %v863
  %v885 = vpack.c.bf16 %v866, %v865
  %v886 = vpack.c.bf16 %v868, %v867
  %v887 = vpack.c.bf16 %v870, %v869
  %v888 = vpack.c.bf16 %v872, %v871
  %v889 = vpack.c.bf16 %v874, %v873
  %v890 = vpack.c.bf16 %v876, %v875
  %v891 = vpack.c.bf16 %v878, %v877
  %v892 = vpack.c.bf16 %v880, %v879
  %v893 = vpack.c.bf16 %v882, %v881
  %v894 = vpack.c.bf16 %v883, %v883
  %v895 = vld [vmem:[%s8] sm:$0xf]
  %v896 = vld [vmem:[%s8 + $0x4] sm:$0xf]
  %v897 = vld [vmem:[%s8 + $0x8] sm:$0xf]
  %v898 = vld [vmem:[%s8 + $0xc] sm:$0xf]
  %v899 = vld [vmem:[%s8 + $0x10] sm:$0xf]
  %v900 = vld [vmem:[%s8 + $0x14] sm:$0xf]
  %v901 = vld [vmem:[%s8 + $0x18] sm:$0xf]
  %v902 = vld [vmem:[%s8 + $0x1c] sm:$0xf]
  %v903 = vld [vmem:[%s8 + $0x20] sm:$0xf]
  %v904 = vld [vmem:[%s8 + $0x24] sm:$0xf]
  %v905 = vld [vmem:[%s8 + $0x28] sm:$0xf]
  %v906 = vld [vmem:[%s8 + $0x2c] sm:$0xf]
  %v907 = vld [vmem:[%s8 + $0x30] sm:$0xf]
  %v908 = vld [vmem:[%s8 + $0x34] sm:$0xf]
  %v909 = vld [vmem:[%s8 + $0x38] sm:$0xf]
  %v910 = vld [vmem:[%s8 + $0x3c] sm:$0xf]
  %v927 = vunpack.c.l.b16 %v895
  %v928 = vunpack.c.l.b16 %v896
  %v929 = vunpack.c.l.b16 %v897
  %v930 = vunpack.c.l.b16 %v898
  %v931 = vunpack.c.l.b16 %v899
  %v932 = vunpack.c.l.b16 %v900
  %v933 = vunpack.c.l.b16 %v901
  %v934 = vunpack.c.l.b16 %v902
  %v935 = vunpack.c.l.b16 %v903
  %v936 = vunpack.c.l.b16 %v904
  %v937 = vunpack.c.l.b16 %v905
  %v938 = vunpack.c.l.b16 %v906
  %v939 = vunpack.c.l.b16 %v907
  %v940 = vunpack.c.l.b16 %v908
  %v941 = vunpack.c.l.b16 %v909
  %v942 = vunpack.c.l.b16 %v910
  %v943 = vpack.c.b16 %v928, %v927
  %v944 = vpack.c.b16 %v930, %v929
  %v945 = vpack.c.b16 %v932, %v931
  %v946 = vpack.c.b16 %v934, %v933
  %v947 = vpack.c.b16 %v936, %v935
  %v948 = vpack.c.b16 %v938, %v937
  %v949 = vpack.c.b16 %v940, %v939
  %v950 = vpack.c.b16 %v942, %v941
  %959 = vmatprep.subr.bf16.mxu0 0
  %960 = vmatpush1.bf16.msra.mxu0 %v943
  %961 = vmatprep.subr.bf16.mxu0 0
  %962 = vmatpush1.bf16.msra.mxu0 %v944
  %963 = vmatprep.subr.bf16.mxu0 0
  %964 = vmatpush1.bf16.msra.mxu0 %v945
  %965 = vmatprep.subr.bf16.mxu0 0
  %966 = vmatpush1.bf16.msra.mxu0 %v946
  %967 = vmatprep.subr.bf16.mxu0 0
  %968 = vmatpush1.bf16.msra.mxu0 %v947
  %969 = vmatprep.subr.bf16.mxu0 0
  %970 = vmatpush1.bf16.msra.mxu0 %v948
  %971 = vmatprep.subr.bf16.mxu0 0
  %972 = vmatpush1.bf16.msra.mxu0 %v949
  %973 = vmatprep.subr.bf16.mxu0 0
  %974 = vmatpush1.bf16.msra.mxu0 %v950
  %975 = vmatprep.subr.bf16.mxu0 0
  %976 = vmatpush1.bf16.msra.mxu0 0
  %977 = vmatprep.subr.bf16.mxu0 0
  %978 = vmatpush1.bf16.msra.mxu0 0
  %979 = vmatprep.subr.bf16.mxu0 0
  %980 = vmatpush1.bf16.msra.mxu0 0
  %981 = vmatprep.subr.bf16.mxu0 0
  %982 = vmatpush1.bf16.msra.mxu0 0
  %983 = vmatprep.subr.bf16.mxu0 0
  %984 = vmatpush1.bf16.msra.mxu0 0
  %985 = vmatprep.subr.bf16.mxu0 0
  %986 = vmatpush1.bf16.msra.mxu0 0
  %987 = vmatprep.subr.bf16.mxu0 0
  %988 = vmatpush1.bf16.msra.mxu0 0
  %989 = vmatprep.subr.bf16.mxu0 0
  %990 = vmatpush1.bf16.msra.mxu0 0
  %991 = vmatprep.mubr.bf16.mxu0 0
  %992 = vmatmul.mubr.bf16.gmra.mrb[0].mxu0 %v884
  %v993 = vpop.f32.mrb[0].mxu0
  %v994 = vadd.f32 0.0, %v993
  %v995 = vpop.f32.mrb[0].mxu0
  %v996 = vpop.f32.mrb[0].mxu0
  %v997 = vadd.f32 0.0, %v996
  %v998 = vpop.f32.mrb[0].mxu0
  %999 = vmatprep.mubr.bf16.mxu0 0
  %1000 = vmatmul.mubr.bf16.gmra.mrb[0].mxu0 %v885
  %v1001 = vpop.f32.mrb[0].mxu0
  %v1002 = vadd.f32 0.0, %v1001
  %v1003 = vpop.f32.mrb[0].mxu0
  %v1004 = vpop.f32.mrb[0].mxu0
  %v1005 = vadd.f32 0.0, %v1004
  %v1006 = vpop.f32.mrb[0].mxu0
  %1007 = vmatprep.mubr.bf16.mxu0 0
  %1008 = vmatmul.mubr.bf16.gmra.mrb[0].mxu0 %v886
  %v1009 = vpop.f32.mrb[0].mxu0
  %v1010 = vadd.f32 0.0, %v1009
  %v1011 = vpop.f32.mrb[0].mxu0
  %v1012 = vpop.f32.mrb[0].mxu0
  %v1013 = vadd.f32 0.0, %v1012
  %v1014 = vpop.f32.mrb[0].mxu0
  %1015 = vmatprep.mubr.bf16.mxu0 0
  %1016 = vmatmul.mubr.bf16.gmra.mrb[0].mxu0 %v887
  %v1017 = vpop.f32.mrb[0].mxu0
  %v1018 = vadd.f32 0.0, %v1017
  %v1019 = vpop.f32.mrb[0].mxu0
  %v1020 = vpop.f32.mrb[0].mxu0
  %v1021 = vadd.f32 0.0, %v1020
  %v1022 = vpop.f32.mrb[0].mxu0
  %1023 = vmatprep.mubr.bf16.mxu0 0
  %1024 = vmatmul.mubr.bf16.gmra.mrb[0].mxu0 %v888
  %v1025 = vpop.f32.mrb[0].mxu0
  %v1026 = vadd.f32 0.0, %v1025
  %v1027 = vpop.f32.mrb[0].mxu0
  %v1028 = vpop.f32.mrb[0].mxu0
  %v1029 = vadd.f32 0.0, %v1028
  %v1030 = vpop.f32.mrb[0].mxu0
  %1031 = vmatprep.mubr.bf16.mxu0 0
  %1032 = vmatmul.mubr.bf16.gmra.mrb[0].mxu0 %v889
  %v1033 = vpop.f32.mrb[0].mxu0
  %v1034 = vadd.f32 0.0, %v1033
  %v1035 = vpop.f32.mrb[0].mxu0
  %v1036 = vpop.f32.mrb[0].mxu0
  %v1037 = vadd.f32 0.0, %v1036
  %v1038 = vpop.f32.mrb[0].mxu0
  %1039 = vmatprep.mubr.bf16.mxu0 0
  %1040 = vmatmul.mubr.bf16.gmra.mrb[0].mxu0 %v890
  %v1041 = vpop.f32.mrb[0].mxu0
  %v1042 = vadd.f32 0.0, %v1041
  %v1043 = vpop.f32.mrb[0].mxu0
  %v1044 = vpop.f32.mrb[0].mxu0
  %v1045 = vadd.f32 0.0, %v1044
  %v1046 = vpop.f32.mrb[0].mxu0
  %1047 = vmatprep.mubr.bf16.mxu0 0
  %1048 = vmatmul.mubr.bf16.gmra.mrb[0].mxu0 %v891
  %v1049 = vpop.f32.mrb[0].mxu0
  %v1050 = vadd.f32 0.0, %v1049
  %v1051 = vpop.f32.mrb[0].mxu0
  %v1052 = vpop.f32.mrb[0].mxu0
  %v1053 = vadd.f32 0.0, %v1052
  %v1054 = vpop.f32.mrb[0].mxu0
  %1055 = vmatprep.mubr.bf16.mxu0 0
  %1056 = vmatmul.mubr.bf16.gmra.mrb[0].mxu0 %v892
  %v1057 = vpop.f32.mrb[0].mxu0
  %v1058 = vadd.f32 0.0, %v1057
  %v1059 = vpop.f32.mrb[0].mxu0
  %v1060 = vpop.f32.mrb[0].mxu0
  %v1061 = vadd.f32 0.0, %v1060
  %v1062 = vpop.f32.mrb[0].mxu0
  %1063 = vmatprep.mubr.bf16.mxu0 0
  %1064 = vmatmul.mubr.bf16.gmra.mrb[0].mxu0 %v893
  %v1065 = vpop.f32.mrb[0].mxu0
  %v1066 = vadd.f32 0.0, %v1065
  %v1067 = vpop.f32.mrb[0].mxu0
  %v1068 = vpop.f32.mrb[0].mxu0
  %v1069 = vadd.f32 0.0, %v1068
  %v1070 = vpop.f32.mrb[0].mxu0
  %1071 = vmatprep.mubr.bf16.mxu0 0
  %1072 = vmatmul.mubr.bf16.gmra.mrb[0].mxu0 %v894
  %v1073 = vpop.f32.mrb[0].mxu0
  %v1074 = vadd.f32 0.0, %v1073
  %v1075 = vpop.f32.mrb[0].mxu0
  %v1076 = vpop.f32.mrb[0].mxu0
  %v1077 = vpop.f32.mrb[0].mxu0
  %1078 = vdwg.mxu0
  %v1079 = vadd.f32 %v639, %v994
  %v1080 = vadd.f32 %v640, %v997
  %v1081 = vadd.f32 %v641, %v1002
  %v1082 = vadd.f32 %v642, %v1005
  %v1083 = vadd.f32 %v643, %v1010
  %v1084 = vadd.f32 %v644, %v1013
  %v1085 = vadd.f32 %v645, %v1018
  %v1086 = vadd.f32 %v646, %v1021
  %v1087 = vadd.f32 %v647, %v1026
  %v1088 = vadd.f32 %v648, %v1029
  %v1089 = vadd.f32 %v649, %v1034
  %v1090 = vadd.f32 %v650, %v1037
  %v1091 = vadd.f32 %v651, %v1042
  %v1092 = vadd.f32 %v652, %v1045
  %v1093 = vadd.f32 %v653, %v1050
  %v1094 = vadd.f32 %v654, %v1053
  %v1095 = vadd.f32 %v655, %v1058
  %v1096 = vadd.f32 %v656, %v1061
  %v1097 = vadd.f32 %v657, %v1066
  %v1098 = vadd.f32 %v658, %v1069
  %v1099 = vadd.f32 %v659, %v1074
  %v1100 = vld [vmem:[%s9] sm:$0x1]
  %v1102 = vlaneseq
  %v1103 = vshrl.u32 %v1102, 7
  %v1104 = vsub.s32 0, %v1103
  %v1105 = vrot.slane %v1100, %v1104
  %v1107 = vadd.f32 %v1079, %v1105
  %v1108 = vadd.f32 %v1080, %v1105
  %v1109 = vadd.f32 %v1081, %v1105
  %v1110 = vadd.f32 %v1082, %v1105
  %v1111 = vadd.f32 %v1083, %v1105
  %v1112 = vadd.f32 %v1084, %v1105
  %v1113 = vadd.f32 %v1085, %v1105
  %v1114 = vadd.f32 %v1086, %v1105
  %v1115 = vadd.f32 %v1087, %v1105
  %v1116 = vadd.f32 %v1088, %v1105
  %v1117 = vadd.f32 %v1089, %v1105
  %v1118 = vadd.f32 %v1090, %v1105
  %v1119 = vadd.f32 %v1091, %v1105
  %v1120 = vadd.f32 %v1092, %v1105
  %v1121 = vadd.f32 %v1093, %v1105
  %v1122 = vadd.f32 %v1094, %v1105
  %v1123 = vadd.f32 %v1095, %v1105
  %v1124 = vadd.f32 %v1096, %v1105
  %v1125 = vadd.f32 %v1097, %v1105
  %v1126 = vadd.f32 %v1098, %v1105
  %v1127 = vadd.f32 %v1099, %v1105
  %v1128 = vsel %vm127, %v1107, 0.0
  %1129 = vadd.xlane.f32.xlu0 %v1128
  %v1130 = vpop.xlane.xlu0 %1129
  %v1131 = vsel %vm127, %v1108, 0.0
  %1132 = vadd.xlane.f32.xlu0 %v1131
  %v1133 = vpop.xlane.xlu0 %1132
  %v1134 = vsel %vm127, %v1109, 0.0
  %1135 = vadd.xlane.f32.xlu0 %v1134
  %v1136 = vpop.xlane.xlu0 %1135
  %v1137 = vsel %vm127, %v1110, 0.0
  %1138 = vadd.xlane.f32.xlu0 %v1137
  %v1139 = vpop.xlane.xlu0 %1138
  %v1140 = vsel %vm127, %v1111, 0.0
  %1141 = vadd.xlane.f32.xlu0 %v1140
  %v1142 = vpop.xlane.xlu0 %1141
  %v1143 = vsel %vm127, %v1112, 0.0
  %1144 = vadd.xlane.f32.xlu0 %v1143
  %v1145 = vpop.xlane.xlu0 %1144
  %v1146 = vsel %vm127, %v1113, 0.0
  %1147 = vadd.xlane.f32.xlu0 %v1146
  %v1148 = vpop.xlane.xlu0 %1147
  %v1149 = vsel %vm127, %v1114, 0.0
  %1150 = vadd.xlane.f32.xlu0 %v1149
  %v1151 = vpop.xlane.xlu0 %1150
  %v1152 = vsel %vm127, %v1115, 0.0
  %1153 = vadd.xlane.f32.xlu0 %v1152
  %v1154 = vpop.xlane.xlu0 %1153
  %v1155 = vsel %vm127, %v1116, 0.0
  %1156 = vadd.xlane.f32.xlu0 %v1155
  %v1157 = vpop.xlane.xlu0 %1156
  %v1158 = vsel %vm127, %v1117, 0.0
  %1159 = vadd.xlane.f32.xlu0 %v1158
  %v1160 = vpop.xlane.xlu0 %1159
  %v1161 = vsel %vm127, %v1118, 0.0
  %1162 = vadd.xlane.f32.xlu0 %v1161
  %v1163 = vpop.xlane.xlu0 %1162
  %v1164 = vsel %vm127, %v1119, 0.0
  %1165 = vadd.xlane.f32.xlu0 %v1164
  %v1166 = vpop.xlane.xlu0 %1165
  %v1167 = vsel %vm127, %v1120, 0.0
  %1168 = vadd.xlane.f32.xlu0 %v1167
  %v1169 = vpop.xlane.xlu0 %1168
  %v1170 = vsel %vm127, %v1121, 0.0
  %1171 = vadd.xlane.f32.xlu0 %v1170
  %v1172 = vpop.xlane.xlu0 %1171
  %v1173 = vsel %vm127, %v1122, 0.0
  %1174 = vadd.xlane.f32.xlu0 %v1173
  %v1175 = vpop.xlane.xlu0 %1174
  %v1176 = vsel %vm127, %v1123, 0.0
  %1177 = vadd.xlane.f32.xlu0 %v1176
  %v1178 = vpop.xlane.xlu0 %1177
  %v1179 = vsel %vm127, %v1124, 0.0
  %1180 = vadd.xlane.f32.xlu0 %v1179
  %v1181 = vpop.xlane.xlu0 %1180
  %v1182 = vsel %vm127, %v1125, 0.0
  %1183 = vadd.xlane.f32.xlu0 %v1182
  %v1184 = vpop.xlane.xlu0 %1183
  %v1185 = vsel %vm127, %v1126, 0.0
  %1186 = vadd.xlane.f32.xlu0 %v1185
  %v1187 = vpop.xlane.xlu0 %1186
  %v1188 = vsel %vm127, %v1127, 0.0
  %1189 = vadd.xlane.f32.xlu0 %v1188
  %v1190 = vpop.xlane.xlu0 %1189
  %v1191 = vmul.f32 %v1130, %v393
  %v1192 = vmul.f32 %v1133, %v393
  %v1193 = vmul.f32 %v1136, %v393
  %v1194 = vmul.f32 %v1139, %v393
  %v1195 = vmul.f32 %v1142, %v393
  %v1196 = vmul.f32 %v1145, %v393
  %v1197 = vmul.f32 %v1148, %v393
  %v1198 = vmul.f32 %v1151, %v393
  %v1199 = vmul.f32 %v1154, %v393
  %v1200 = vmul.f32 %v1157, %v393
  %v1201 = vmul.f32 %v1160, %v393
  %v1202 = vmul.f32 %v1163, %v393
  %v1203 = vmul.f32 %v1166, %v393
  %v1204 = vmul.f32 %v1169, %v393
  %v1205 = vmul.f32 %v1172, %v393
  %v1206 = vmul.f32 %v1175, %v393
  %v1207 = vmul.f32 %v1178, %v393
  %v1208 = vmul.f32 %v1181, %v393
  %v1209 = vmul.f32 %v1184, %v393
  %v1210 = vmul.f32 %v1187, %v393
  %v1211 = vmul.f32 %v1190, %v393
  %v1212 = vsub.f32 %v1107, %v1191
  %v1213 = vsub.f32 %v1108, %v1192
  %v1214 = vsub.f32 %v1109, %v1193
  %v1215 = vsub.f32 %v1110, %v1194
  %v1216 = vsub.f32 %v1111, %v1195
  %v1217 = vsub.f32 %v1112, %v1196
  %v1218 = vsub.f32 %v1113, %v1197
  %v1219 = vsub.f32 %v1114, %v1198
  %v1220 = vsub.f32 %v1115, %v1199
  %v1221 = vsub.f32 %v1116, %v1200
  %v1222 = vsub.f32 %v1117, %v1201
  %v1223 = vsub.f32 %v1118, %v1202
  %v1224 = vsub.f32 %v1119, %v1203
  %v1225 = vsub.f32 %v1120, %v1204
  %v1226 = vsub.f32 %v1121, %v1205
  %v1227 = vsub.f32 %v1122, %v1206
  %v1228 = vsub.f32 %v1123, %v1207
  %v1229 = vsub.f32 %v1124, %v1208
  %v1230 = vsub.f32 %v1125, %v1209
  %v1231 = vsub.f32 %v1126, %v1210
  %v1232 = vsub.f32 %v1127, %v1211
  %v1233 = vmul.f32 %v1212, %v1212
  %v1234 = vmul.f32 %v1213, %v1213
  %v1235 = vmul.f32 %v1214, %v1214
  %v1236 = vmul.f32 %v1215, %v1215
  %v1237 = vmul.f32 %v1216, %v1216
  %v1238 = vmul.f32 %v1217, %v1217
  %v1239 = vmul.f32 %v1218, %v1218
  %v1240 = vmul.f32 %v1219, %v1219
  %v1241 = vmul.f32 %v1220, %v1220
  %v1242 = vmul.f32 %v1221, %v1221
  %v1243 = vmul.f32 %v1222, %v1222
  %v1244 = vmul.f32 %v1223, %v1223
  %v1245 = vmul.f32 %v1224, %v1224
  %v1246 = vmul.f32 %v1225, %v1225
  %v1247 = vmul.f32 %v1226, %v1226
  %v1248 = vmul.f32 %v1227, %v1227
  %v1249 = vmul.f32 %v1228, %v1228
  %v1250 = vmul.f32 %v1229, %v1229
  %v1251 = vmul.f32 %v1230, %v1230
  %v1252 = vmul.f32 %v1231, %v1231
  %v1253 = vmul.f32 %v1232, %v1232
  %v1254 = vsel %vm127, %v1233, 0.0
  %1255 = vadd.xlane.f32.xlu0 %v1254
  %v1256 = vpop.xlane.xlu0 %1255
  %v1257 = vsel %vm127, %v1234, 0.0
  %1258 = vadd.xlane.f32.xlu0 %v1257
  %v1259 = vpop.xlane.xlu0 %1258
  %v1260 = vsel %vm127, %v1235, 0.0
  %1261 = vadd.xlane.f32.xlu0 %v1260
  %v1262 = vpop.xlane.xlu0 %1261
  %v1263 = vsel %vm127, %v1236, 0.0
  %1264 = vadd.xlane.f32.xlu0 %v1263
  %v1265 = vpop.xlane.xlu0 %1264
  %v1266 = vsel %vm127, %v1237, 0.0
  %1267 = vadd.xlane.f32.xlu0 %v1266
  %v1268 = vpop.xlane.xlu0 %1267
  %v1269 = vsel %vm127, %v1238, 0.0
  %1270 = vadd.xlane.f32.xlu0 %v1269
  %v1271 = vpop.xlane.xlu0 %1270
  %v1272 = vsel %vm127, %v1239, 0.0
  %1273 = vadd.xlane.f32.xlu0 %v1272
  %v1274 = vpop.xlane.xlu0 %1273
  %v1275 = vsel %vm127, %v1240, 0.0
  %1276 = vadd.xlane.f32.xlu0 %v1275
  %v1277 = vpop.xlane.xlu0 %1276
  %v1278 = vsel %vm127, %v1241, 0.0
  %1279 = vadd.xlane.f32.xlu0 %v1278
  %v1280 = vpop.xlane.xlu0 %1279
  %v1281 = vsel %vm127, %v1242, 0.0
  %1282 = vadd.xlane.f32.xlu0 %v1281
  %v1283 = vpop.xlane.xlu0 %1282
  %v1284 = vsel %vm127, %v1243, 0.0
  %1285 = vadd.xlane.f32.xlu0 %v1284
  %v1286 = vpop.xlane.xlu0 %1285
  %v1287 = vsel %vm127, %v1244, 0.0
  %1288 = vadd.xlane.f32.xlu0 %v1287
  %v1289 = vpop.xlane.xlu0 %1288
  %v1290 = vsel %vm127, %v1245, 0.0
  %1291 = vadd.xlane.f32.xlu0 %v1290
  %v1292 = vpop.xlane.xlu0 %1291
  %v1293 = vsel %vm127, %v1246, 0.0
  %1294 = vadd.xlane.f32.xlu0 %v1293
  %v1295 = vpop.xlane.xlu0 %1294
  %v1296 = vsel %vm127, %v1247, 0.0
  %1297 = vadd.xlane.f32.xlu0 %v1296
  %v1298 = vpop.xlane.xlu0 %1297
  %v1299 = vsel %vm127, %v1248, 0.0
  %1300 = vadd.xlane.f32.xlu0 %v1299
  %v1301 = vpop.xlane.xlu0 %1300
  %v1302 = vsel %vm127, %v1249, 0.0
  %1303 = vadd.xlane.f32.xlu0 %v1302
  %v1304 = vpop.xlane.xlu0 %1303
  %v1305 = vsel %vm127, %v1250, 0.0
  %1306 = vadd.xlane.f32.xlu0 %v1305
  %v1307 = vpop.xlane.xlu0 %1306
  %v1308 = vsel %vm127, %v1251, 0.0
  %1309 = vadd.xlane.f32.xlu0 %v1308
  %v1310 = vpop.xlane.xlu0 %1309
  %v1311 = vsel %vm127, %v1252, 0.0
  %1312 = vadd.xlane.f32.xlu0 %v1311
  %v1313 = vpop.xlane.xlu0 %1312
  %v1314 = vsel %vm127, %v1253, 0.0
  %1315 = vadd.xlane.f32.xlu0 %v1314
  %v1316 = vpop.xlane.xlu0 %1315
  %v1317 = vmul.f32 %v1256, %v393
  %v1318 = vmul.f32 %v1259, %v393
  %v1319 = vmul.f32 %v1262, %v393
  %v1320 = vmul.f32 %v1265, %v393
  %v1321 = vmul.f32 %v1268, %v393
  %v1322 = vmul.f32 %v1271, %v393
  %v1323 = vmul.f32 %v1274, %v393
  %v1324 = vmul.f32 %v1277, %v393
  %v1325 = vmul.f32 %v1280, %v393
  %v1326 = vmul.f32 %v1283, %v393
  %v1327 = vmul.f32 %v1286, %v393
  %v1328 = vmul.f32 %v1289, %v393
  %v1329 = vmul.f32 %v1292, %v393
  %v1330 = vmul.f32 %v1295, %v393
  %v1331 = vmul.f32 %v1298, %v393
  %v1332 = vmul.f32 %v1301, %v393
  %v1333 = vmul.f32 %v1304, %v393
  %v1334 = vmul.f32 %v1307, %v393
  %v1335 = vmul.f32 %v1310, %v393
  %v1336 = vmul.f32 %v1313, %v393
  %v1337 = vmul.f32 %v1316, %v393
  %v1338 = vadd.f32 %v1317, 1e-05
  %v1339 = vadd.f32 %v1318, 1e-05
  %v1340 = vadd.f32 %v1319, 1e-05
  %v1341 = vadd.f32 %v1320, 1e-05
  %v1342 = vadd.f32 %v1321, 1e-05
  %v1343 = vadd.f32 %v1322, 1e-05
  %v1344 = vadd.f32 %v1323, 1e-05
  %v1345 = vadd.f32 %v1324, 1e-05
  %v1346 = vadd.f32 %v1325, 1e-05
  %v1347 = vadd.f32 %v1326, 1e-05
  %v1348 = vadd.f32 %v1327, 1e-05
  %v1349 = vadd.f32 %v1328, 1e-05
  %v1350 = vadd.f32 %v1329, 1e-05
  %v1351 = vadd.f32 %v1330, 1e-05
  %v1352 = vadd.f32 %v1331, 1e-05
  %v1353 = vadd.f32 %v1332, 1e-05
  %v1354 = vadd.f32 %v1333, 1e-05
  %v1355 = vadd.f32 %v1334, 1e-05
  %v1356 = vadd.f32 %v1335, 1e-05
  %v1357 = vadd.f32 %v1336, 1e-05
  %v1358 = vadd.f32 %v1337, 1e-05
  %v1359 = vrsqrt.pop %v1338
  %v1360 = vrsqrt.pop %v1339
  %v1361 = vrsqrt.pop %v1340
  %v1362 = vrsqrt.pop %v1341
  %v1363 = vrsqrt.pop %v1342
  %v1364 = vrsqrt.pop %v1343
  %v1365 = vrsqrt.pop %v1344
  %v1366 = vrsqrt.pop %v1345
  %v1367 = vrsqrt.pop %v1346
  %v1368 = vrsqrt.pop %v1347
  %v1369 = vrsqrt.pop %v1348
  %v1370 = vrsqrt.pop %v1349
  %v1371 = vrsqrt.pop %v1350
  %v1372 = vrsqrt.pop %v1351
  %v1373 = vrsqrt.pop %v1352
  %v1374 = vrsqrt.pop %v1353
  %v1375 = vrsqrt.pop %v1354
  %v1376 = vrsqrt.pop %v1355
  %v1377 = vrsqrt.pop %v1356
  %v1378 = vrsqrt.pop %v1357
  %v1379 = vrsqrt.pop %v1358
  %v1380 = vmul.f32 %v1212, %v1359
  %v1381 = vmul.f32 %v1213, %v1360
  %v1382 = vmul.f32 %v1214, %v1361
  %v1383 = vmul.f32 %v1215, %v1362
  %v1384 = vmul.f32 %v1216, %v1363
  %v1385 = vmul.f32 %v1217, %v1364
  %v1386 = vmul.f32 %v1218, %v1365
  %v1387 = vmul.f32 %v1219, %v1366
  %v1388 = vmul.f32 %v1220, %v1367
  %v1389 = vmul.f32 %v1221, %v1368
  %v1390 = vmul.f32 %v1222, %v1369
  %v1391 = vmul.f32 %v1223, %v1370
  %v1392 = vmul.f32 %v1224, %v1371
  %v1393 = vmul.f32 %v1225, %v1372
  %v1394 = vmul.f32 %v1226, %v1373
  %v1395 = vmul.f32 %v1227, %v1374
  %v1396 = vmul.f32 %v1228, %v1375
  %v1397 = vmul.f32 %v1229, %v1376
  %v1398 = vmul.f32 %v1230, %v1377
  %v1399 = vmul.f32 %v1231, %v1378
  %v1400 = vmul.f32 %v1232, %v1379
  %v1401 = vld [vmem:[%s10] sm:$0x1]
  %v1403 = vlaneseq
  %v1404 = vshrl.u32 %v1403, 7
  %v1405 = vsub.s32 0, %v1404
  %v1406 = vrot.slane %v1401, %v1405
  %v1408 = vmul.f32 %v1380, %v1406
  %v1409 = vmul.f32 %v1381, %v1406
  %v1410 = vmul.f32 %v1382, %v1406
  %v1411 = vmul.f32 %v1383, %v1406
  %v1412 = vmul.f32 %v1384, %v1406
  %v1413 = vmul.f32 %v1385, %v1406
  %v1414 = vmul.f32 %v1386, %v1406
  %v1415 = vmul.f32 %v1387, %v1406
  %v1416 = vmul.f32 %v1388, %v1406
  %v1417 = vmul.f32 %v1389, %v1406
  %v1418 = vmul.f32 %v1390, %v1406
  %v1419 = vmul.f32 %v1391, %v1406
  %v1420 = vmul.f32 %v1392, %v1406
  %v1421 = vmul.f32 %v1393, %v1406
  %v1422 = vmul.f32 %v1394, %v1406
  %v1423 = vmul.f32 %v1395, %v1406
  %v1424 = vmul.f32 %v1396, %v1406
  %v1425 = vmul.f32 %v1397, %v1406
  %v1426 = vmul.f32 %v1398, %v1406
  %v1427 = vmul.f32 %v1399, %v1406
  %v1428 = vmul.f32 %v1400, %v1406
  %v1429 = vld [vmem:[%s11] sm:$0x1]
  %v1431 = vlaneseq
  %v1432 = vshrl.u32 %v1431, 7
  %v1433 = vsub.s32 0, %v1432
  %v1434 = vrot.slane %v1429, %v1433
  %v1436 = vadd.f32 %v1408, %v1434
  %v1437 = vadd.f32 %v1409, %v1434
  %v1438 = vadd.f32 %v1410, %v1434
  %v1439 = vadd.f32 %v1411, %v1434
  %v1440 = vadd.f32 %v1412, %v1434
  %v1441 = vadd.f32 %v1413, %v1434
  %v1442 = vadd.f32 %v1414, %v1434
  %v1443 = vadd.f32 %v1415, %v1434
  %v1444 = vadd.f32 %v1416, %v1434
  %v1445 = vadd.f32 %v1417, %v1434
  %v1446 = vadd.f32 %v1418, %v1434
  %v1447 = vadd.f32 %v1419, %v1434
  %v1448 = vadd.f32 %v1420, %v1434
  %v1449 = vadd.f32 %v1421, %v1434
  %v1450 = vadd.f32 %v1422, %v1434
  %v1451 = vadd.f32 %v1423, %v1434
  %v1452 = vadd.f32 %v1424, %v1434
  %v1453 = vadd.f32 %v1425, %v1434
  %v1454 = vadd.f32 %v1426, %v1434
  %v1455 = vadd.f32 %v1427, %v1434
  %v1456 = vadd.f32 %v1428, %v1434
  %1457 = vst.msk [vmem:[%s12] sm:$0xff] %vm127, %v1436
  %1458 = vst.msk [vmem:[%s12 + $0x8] sm:$0xff] %vm127, %v1437
  %1459 = vst.msk [vmem:[%s12 + $0x10] sm:$0xff] %vm127, %v1438
  %1460 = vst.msk [vmem:[%s12 + $0x18] sm:$0xff] %vm127, %v1439
  %1461 = vst.msk [vmem:[%s12 + $0x20] sm:$0xff] %vm127, %v1440
  %1462 = vst.msk [vmem:[%s12 + $0x28] sm:$0xff] %vm127, %v1441
  %1463 = vst.msk [vmem:[%s12 + $0x30] sm:$0xff] %vm127, %v1442
  %1464 = vst.msk [vmem:[%s12 + $0x38] sm:$0xff] %vm127, %v1443
  %1465 = vst.msk [vmem:[%s12 + $0x40] sm:$0xff] %vm127, %v1444
  %1466 = vst.msk [vmem:[%s12 + $0x48] sm:$0xff] %vm127, %v1445
  %1467 = vst.msk [vmem:[%s12 + $0x50] sm:$0xff] %vm127, %v1446
  %1468 = vst.msk [vmem:[%s12 + $0x58] sm:$0xff] %vm127, %v1447
  %1469 = vst.msk [vmem:[%s12 + $0x60] sm:$0xff] %vm127, %v1448
  %1470 = vst.msk [vmem:[%s12 + $0x68] sm:$0xff] %vm127, %v1449
  %1471 = vst.msk [vmem:[%s12 + $0x70] sm:$0xff] %vm127, %v1450
  %1472 = vst.msk [vmem:[%s12 + $0x78] sm:$0xff] %vm127, %v1451
  %1473 = vst.msk [vmem:[%s12 + $0x80] sm:$0xff] %vm127, %v1452
  %1474 = vst.msk [vmem:[%s12 + $0x88] sm:$0xff] %vm127, %v1453
  %1475 = vst.msk [vmem:[%s12 + $0x90] sm:$0xff] %vm127, %v1454
  %1476 = vst.msk [vmem:[%s12 + $0x98] sm:$0xff] %vm127, %v1455
  %1477 = vst.msk [vmem:[%s12 + $0xa0] sm:$0xff] %vm127, %v1456
  // Predicated region
  $region50: #{spatial_encoder_transformer_forward.11} parent=0 // pred_check
    _
  $region51: #{spatial_encoder_transformer_forward.11} parent=0 // pred_check_branch
    %1479 = sbr.rel (0) target = $region53
  $region52: #{spatial_encoder_transformer_forward.11} parent=0 // pred_region
    _
  $region53: #{spatial_encoder_transformer_forward.11} parent=0 // pred_fallthru
    _
  // Predicated region
  $region54: #{spatial_encoder_transformer_forward.11} parent=0 // pred_check
    _
  $region55: #{spatial_encoder_transformer_forward.11} parent=0 // pred_check_branch
    %1481 = sbr.rel (0) target = $region57
  $region56: #{spatial_encoder_transformer_forward.11} parent=0 // pred_region
    _
  $region57: #{spatial_encoder_transformer_forward.11} parent=0 // pred_fallthru
    _

</llo_original>
